<compile_context>
chip_gen: v7x
topology: tpu7x:2x2x1
jax: 0.10.0
libtpu: 0.0.40
codegen_flags: <defaults>
</compile_context>

<pallas_src>
import functools

import jax
import jax.numpy as jnp
import numpy as np
from jax.experimental import pallas as pl
from jax.experimental.pallas import tpu as pltpu

NUM_GROUPS = 32
EPS = 1e-6


def _spatial_norm_kernel(f_ref, zq_ref, w_ref, bias_ref, gamma_ref, beta_ref,
                         pool_ref, uw_ref, o_ref,
                         sum_ref, ss_ref, scale_ref, shift_ref,
                         *, cfc, w, wz, sh, sw, tile_hz):
    # f_ref:    (1, Cfc, tile_h*W)   channels-first, lane dim = flattened spatial tile
    # zq_ref:   (1, Cz, tile_hz*Wz)  matching low-resolution zq rows
    # w_ref:    (1, 2*Cfc, Cz)       conv_y|conv_b fused 1x1 weights (this chunk)
    # bias_ref: (1, 2*Cfc, 1)        fused biases
    # gamma/beta: (1, Cfc, 1)        GroupNorm affine (this chunk)
    # pool_ref: (Cfc, Cfc)           group-averaging matrix, rows sum to 1/(cpg*HW)
    # uw_ref:   (Wz, W)              nearest width-expansion one-hot
    p = pl.program_id(2)   # 0 = statistics pass, 1 = normalize/combine pass
    t = pl.program_id(3)   # spatial (row-group) tile

    # ---------------- pass 0: per-channel sum / sum-of-squares ----------------
    @pl.when(jnp.logical_and(p == 0, t == 0))
    def _():
        sum_ref[...] = jnp.zeros_like(sum_ref)
        ss_ref[...] = jnp.zeros_like(ss_ref)

    @pl.when(p == 0)
    def _():
        ft = f_ref[0].astype(jnp.float32)                          # (Cfc, tile_hw)
        sum_ref[...] += jnp.sum(ft, axis=1, keepdims=True)
        ss_ref[...] += jnp.sum(ft * ft, axis=1, keepdims=True)

    # ---- pass 1, first tile: finalize GroupNorm statistics (once per (b, chunk)) ----
    @pl.when(jnp.logical_and(p == 1, t == 0))
    def _():
        pool = pool_ref[...]
        mean = jnp.dot(pool, sum_ref[...], preferred_element_type=jnp.float32)
        ex2 = jnp.dot(pool, ss_ref[...], preferred_element_type=jnp.float32)
        var = ex2 - mean * mean
        s = jax.lax.rsqrt(var + EPS) * gamma_ref[0].astype(jnp.float32)   # (Cfc, 1)
        scale_ref[...] = s
        shift_ref[...] = beta_ref[0].astype(jnp.float32) - mean * s

    # ------ pass 1: low-res conv + affine fold + nearest upsample + combine ------
    @pl.when(p == 1)
    def _():
        zq = zq_ref[0].astype(jnp.float32)                         # (Cz, tile_hz*Wz)
        yb = (jnp.dot(w_ref[0].astype(jnp.float32), zq,
                      preferred_element_type=jnp.float32)
              + bias_ref[0].astype(jnp.float32))                   # (2*Cfc, tile_hz*Wz)
        s = scale_ref[...]
        sf = shift_ref[...]
        y_low = yb[:cfc]
        b_low = yb[cfc:]
        a_low = s * y_low                                          # out = f*A + B
        c_low = sf * y_low + b_low

        if sh == 1 and sw == 1:
            # no upsample: one fused FMA over the whole tile
            ft = f_ref[0].astype(jnp.float32)
            o_ref[0] = (ft * a_low + c_low).astype(o_ref.dtype)
        else:
            uw = uw_ref[...]                                       # (Wz, W)
            # small static unroll (tile_hz is a handful of rows); each row-group is
            # stored straight into o_ref -> no concatenate, no slab-sized live set.
            for r in range(tile_hz):
                a_r = a_low[:, r * wz:(r + 1) * wz]
                c_r = c_low[:, r * wz:(r + 1) * wz]
                if sw > 1:
                    a_r = jnp.dot(a_r, uw, preferred_element_type=jnp.float32)
                    c_r = jnp.dot(c_r, uw, preferred_element_type=jnp.float32)
                if sh > 1:
                    # output lanes for rows [r*sh, (r+1)*sh) are ordered (di, w) ->
                    # lane tiling implements the nearest row-repeat exactly.
                    a_r = jnp.concatenate([a_r] * sh, axis=-1)     # (Cfc, sh*W)
                    c_r = jnp.concatenate([c_r] * sh, axis=-1)
                lo = r * sh * w
                f_chunk = f_ref[0, :, lo:lo + sh * w].astype(jnp.float32)
                o_ref[0, :, lo:lo + sh * w] = (f_chunk * a_r + c_r).astype(o_ref.dtype)


def _pick_tile_h(h, w, sh, target_lanes):
    """Largest row-tile that divides H, is a multiple of sh, and stays <= target lanes."""
    tile_h = sh
    for cand in range(sh, h + 1, sh):
        if h % cand == 0 and cand * w <= target_lanes:
            tile_h = cand
    return tile_h


def _vmem_limit_bytes():
    """Generation-aware VMEM budget: ~75% of physical capacity, 48 MiB fallback."""
    cap = None
    try:
        get_info = getattr(pltpu, "get_tpu_info", None)
        if get_info is not None:
            cap = getattr(get_info(), "vmem_capacity_bytes", None)
    except Exception:
        cap = None
    if not cap:
        cap = 64 * 1024 * 1024            # v7x per-core physical VMEM (smallest gen)
    return int(cap) * 3 // 4


def spatial_norm_2d(f, zq, params, *, num_channel_chunks=2, target_lanes=2048):
    """f: (B, Cf, H, W) NCHW, zq: (B, Cz, Hz, Wz) NCHW -> (B, Cf, H, W)."""
    B, Cf, H, W = f.shape
    _, Cz, Hz, Wz = zq.shape
    assert Cf % NUM_GROUPS == 0
    cpg = Cf // NUM_GROUPS
    # TODO(synk): non-integer nearest-neighbour scales (H % Hz != 0) are not supported.
    assert H % Hz == 0 and W % Wz == 0, "non-integer nearest scale not supported"
    sh, sw = H // Hz, W // Wz

    # channel chunks: second "parallel" grid axis (keeps both v7x TCs busy at B=1);
    # chunk boundaries must align with GroupNorm group and sublane boundaries.
    nc = max(1, int(num_channel_chunks))
    while nc > 1 and not (Cf % nc == 0 and (Cf // nc) % cpg == 0
                          and (Cf // nc) % 16 == 0):
        nc -= 1
    cfc = Cf // nc

    tile_h = _pick_tile_h(H, W, sh, target_lanes)
    tile_hz = tile_h // sh
    n_tiles = H // tile_h
    HW, HWz = H * W, Hz * Wz
    tile_hw, tile_hwz = tile_h * W, tile_hz * Wz

    # free row-major views (no transposes / gathers of the big activations)
    f_flat = f.reshape(B, Cf, HW)
    zq_flat = zq.reshape(B, Cz, HWz)

    f32 = jnp.float32
    # conv_y | conv_b fused per channel-chunk: (nc, 2*cfc, Cz)
    wy = jnp.asarray(params["wy"], f32).reshape(nc, cfc, Cz)
    wb = jnp.asarray(params["wb"], f32).reshape(nc, cfc, Cz)
    w_fused = jnp.concatenate([wy, wb], axis=1)
    by = jnp.asarray(params["by"], f32).reshape(nc, cfc, 1)
    bb = jnp.asarray(params["bb"], f32).reshape(nc, cfc, 1)
    bias_fused = jnp.concatenate([by, bb], axis=1)
    gamma = jnp.asarray(params["gamma"], f32).reshape(nc, cfc, 1)
    beta = jnp.asarray(params["beta"], f32).reshape(nc, cfc, 1)

    # structural matrices built ONCE on the host (constant index_map -> DMA'd once)
    grp = np.arange(cfc) // cpg
    pool = jnp.asarray((grp[:, None] == grp[None, :]).astype(np.float32)
                       / float(cpg * HW))                           # (cfc, cfc)
    w_src = (np.arange(W) * Wz) // W                                # nearest source col
    uw = jnp.asarray((np.arange(Wz)[:, None] == w_src[None, :]).astype(np.float32))

    kernel = functools.partial(_spatial_norm_kernel, cfc=cfc, w=W, wz=Wz,
                               sh=sh, sw=sw, tile_hz=tile_hz)

    grid = (B, nc, 2, n_tiles)           # (batch, chan-chunk, pass, hw-tile)

    in_specs = [
        # f: re-read in both passes (streaming two-pass GroupNorm)
        pl.BlockSpec((1, cfc, tile_hw), lambda b, c, p, t: (b, c, t)),
        # zq: only needed in pass 1; t*p pins it to tile 0 during the stats pass
        pl.BlockSpec((1, Cz, tile_hwz), lambda b, c, p, t: (b, 0, t * p)),
        pl.BlockSpec((1, 2 * cfc, Cz), lambda b, c, p, t: (c, 0, 0)),
        pl.BlockSpec((1, 2 * cfc, 1), lambda b, c, p, t: (c, 0, 0)),
        pl.BlockSpec((1, cfc, 1), lambda b, c, p, t: (c, 0, 0)),
        pl.BlockSpec((1, cfc, 1), lambda b, c, p, t: (c, 0, 0)),
        pl.BlockSpec((cfc, cfc), lambda b, c, p, t: (0, 0)),
        pl.BlockSpec((Wz, W), lambda b, c, p, t: (0, 0)),
    ]
    # pass 0 never writes; t*p pins its (never-written) out block to tile 0, which
    # pass 1 (t=0) fully overwrites before that block is ever written back to HBM.
    out_specs = pl.BlockSpec((1, cfc, tile_hw), lambda b, c, p, t: (b, c, t * p))

    out_flat = pl.pallas_call(
        kernel,
        out_shape=jax.ShapeDtypeStruct((B, Cf, HW), f.dtype),
        grid_spec=pltpu.PrefetchScalarGridSpec(
            num_scalar_prefetch=0,
            grid=grid,
            in_specs=in_specs,
            out_specs=out_specs,
            scratch_shapes=[pltpu.VMEM((cfc, 1), jnp.float32)] * 4,
        ),
        compiler_params=pltpu.CompilerParams(
            # batch & channel-chunk axes split across TensorCores (v7x megacore);
            # pass/tile axes carry the stats accumulator -> "arbitrary".
            dimension_semantics=("parallel", "parallel", "arbitrary", "arbitrary"),
            vmem_limit_bytes=_vmem_limit_bytes(),
        ),
    )(f_flat, zq_flat, w_fused, bias_fused, gamma, beta, pool, uw)

    return out_flat.reshape(B, Cf, H, W)


def reference(f, zq, params):
    """Pure-JAX reference matching the PyTorch module."""
    B, Cf, H, W = f.shape
    _, Cz, Hz, Wz = zq.shape
    cpg = Cf // NUM_GROUPS
    h_idx = (jnp.arange(H) * Hz // H).astype(jnp.int32)
    w_idx = (jnp.arange(W) * Wz // W).astype(jnp.int32)
    zq_up = zq[:, :, h_idx, :][:, :, :, w_idx]

    fg = f.reshape(B, NUM_GROUPS, cpg, H, W)
    mean = jnp.mean(fg, axis=(2, 3, 4), keepdims=True)
    var = jnp.mean((fg - mean) ** 2, axis=(2, 3, 4), keepdims=True)
    norm_f = ((fg - mean) * jax.lax.rsqrt(var + EPS)).reshape(B, Cf, H, W)
    norm_f = (norm_f * params["gamma"][None, :, None, None]
              + params["beta"][None, :, None, None])

    y = jnp.einsum("bchw,oc->bohw", zq_up, params["wy"]) + params["by"][None, :, None, None]
    b = jnp.einsum("bchw,oc->bohw", zq_up, params["wb"]) + params["bb"][None, :, None, None]
    return norm_f * y + b


if __name__ == "__main__":
    B, Cf, Cz = 2, 64, 16
    H = W = 16
    Hz = Wz = 8

    key = jax.random.PRNGKey(0)
    kf, kz, k1, k2, k3, k4, k5, k6 = jax.random.split(key, 8)

    f = jax.random.normal(kf, (B, Cf, H, W), jnp.float32)
    zq = jax.random.normal(kz, (B, Cz, Hz, Wz), jnp.float32)

    params = {
        "wy": jax.random.normal(k1, (Cf, Cz), jnp.float32) / np.sqrt(Cz),
        "by": 0.1 * jax.random.normal(k2, (Cf,), jnp.float32),
        "wb": jax.random.normal(k3, (Cf, Cz), jnp.float32) / np.sqrt(Cz),
        "bb": 0.1 * jax.random.normal(k4, (Cf,), jnp.float32),
        "gamma": 1.0 + 0.1 * jax.random.normal(k5, (Cf,), jnp.float32),
        "beta": 0.1 * jax.random.normal(k6, (Cf,), jnp.float32),
    }

    ref = jax.block_until_ready(reference(f, zq, params))

    # f32 activations: strict check against the f32 reference
    out = jax.block_until_ready(spatial_norm_2d(f, zq, params))
    np.testing.assert_allclose(np.asarray(out), np.asarray(ref), rtol=1e-4, atol=1e-4)

    # bf16 activations (HBM-bandwidth mode): arithmetic stays f32 inside the kernel
    out_bf16 = jax.block_until_ready(
        spatial_norm_2d(f.astype(jnp.bfloat16), zq.astype(jnp.bfloat16), params))
    np.testing.assert_allclose(np.asarray(out_bf16, dtype=np.float32),
                               np.asarray(ref), rtol=1e-1, atol=2e-1)

    print("KERNEL_OK")
</pallas_src>

<mosaic_0001>
module attributes {stable_mosaic.version = 11 : i64} {
  func.func @_spatial_norm_kernel(%arg0: i32, %arg1: i32, %arg2: i32, %arg3: i32, %arg4: memref<1x32x256xf32, #tpu.memory_space<vmem>>, %arg5: memref<1x16x64xf32, #tpu.memory_space<vmem>>, %arg6: memref<1x64x16xf32, #tpu.memory_space<vmem>>, %arg7: memref<1x64x1xf32, #tpu.memory_space<vmem>>, %arg8: memref<1x32x1xf32, #tpu.memory_space<vmem>>, %arg9: memref<1x32x1xf32, #tpu.memory_space<vmem>>, %arg10: memref<32x32xf32, #tpu.memory_space<vmem>>, %arg11: memref<8x16xf32, #tpu.memory_space<vmem>>, %arg12: memref<1x32x256xf32, #tpu.memory_space<vmem>>, %arg13: memref<32x1xf32, #tpu.memory_space<vmem>>, %arg14: memref<32x1xf32, #tpu.memory_space<vmem>>, %arg15: memref<32x1xf32, #tpu.memory_space<vmem>>, %arg16: memref<32x1xf32, #tpu.memory_space<vmem>>) attributes {dimension_semantics = [#tpu.dimension_semantics<parallel>, #tpu.dimension_semantics<parallel>, #tpu.dimension_semantics<arbitrary>, #tpu.dimension_semantics<arbitrary>], iteration_bounds = array<i64: 2, 2, 2, 1>, scalar_prefetch = 0 : i64, scratch_operands = 4 : i64, tpu.core_type = #tpu.core_type<tc>, window_params = [{transform_indices = @transform_0, window_bounds = array<i64: 1, 32, 256>}, {transform_indices = @transform_1, window_bounds = array<i64: 1, 16, 64>}, {transform_indices = @transform_2, window_bounds = array<i64: 1, 64, 16>}, {transform_indices = @transform_3, window_bounds = array<i64: 1, 64, 1>}, {transform_indices = @transform_4, window_bounds = array<i64: 1, 32, 1>}, {transform_indices = @transform_5, window_bounds = array<i64: 1, 32, 1>}, {pipeline_mode = #tpu.pipeline_mode<synchronous>, transform_indices = @transform_6, window_bounds = array<i64: 32, 32>}, {pipeline_mode = #tpu.pipeline_mode<synchronous>, transform_indices = @transform_7, window_bounds = array<i64: 8, 16>}, {transform_indices = @transform_8, window_bounds = array<i64: 1, 32, 256>}]} {
    %c0_i32 = arith.constant 0 : i32
    %0 = arith.cmpi eq, %arg2, %c0_i32 : i32
    %c0_i32_0 = arith.constant 0 : i32
    %1 = arith.cmpi eq, %arg3, %c0_i32_0 : i32
    %2 = arith.andi %0, %1 : i1
    %3 = arith.extui %2 : i1 to i32
    %c0_i32_1 = arith.constant 0 : i32
    %4 = arith.cmpi ne, %3, %c0_i32_1 : i32
    scf.if %4 {
      %cst = arith.constant 0.000000e+00 : f32
      %16 = vector.broadcast %cst : f32 to vector<32x1xf32>
      %c0 = arith.constant 0 : index
      %c0_8 = arith.constant 0 : index
      %17 = vector.load %arg13[%c0, %c0_8] : memref<32x1xf32, #tpu.memory_space<vmem>>, vector<32x1xf32>
      tpu.vector_store %arg13[%c0, %c0_8], %16 {strides = array<i32>} : memref<32x1xf32, #tpu.memory_space<vmem>>, vector<32x1xf32>,
      %cst_9 = arith.constant 0.000000e+00 : f32
      %18 = vector.broadcast %cst_9 : f32 to vector<32x1xf32>
      %c0_10 = arith.constant 0 : index
      %c0_11 = arith.constant 0 : index
      %19 = vector.load %arg14[%c0_10, %c0_11] : memref<32x1xf32, #tpu.memory_space<vmem>>, vector<32x1xf32>
      tpu.vector_store %arg14[%c0_10, %c0_11], %18 {strides = array<i32>} : memref<32x1xf32, #tpu.memory_space<vmem>>, vector<32x1xf32>,
    } else {
    }
    %c0_i32_2 = arith.constant 0 : i32
    %5 = arith.cmpi eq, %arg2, %c0_i32_2 : i32
    %6 = arith.extui %5 : i1 to i32
    %c0_i32_3 = arith.constant 0 : i32
    %7 = arith.cmpi ne, %6, %c0_i32_3 : i32
    scf.if %7 {
      %c0 = arith.constant 0 : index
      %c0_8 = arith.constant 0 : index
      %c0_9 = arith.constant 0 : index
      %16 = vector.load %arg4[%c0, %c0_8, %c0_9] : memref<1x32x256xf32, #tpu.memory_space<vmem>>, vector<1x32x256xf32>
      %17 = vector.shape_cast %16 : vector<1x32x256xf32> to vector<32x256xf32>
      %c0_10 = arith.constant 0 : index
      %c0_11 = arith.constant 0 : index
      %18 = vector.load %arg13[%c0_10, %c0_11] : memref<32x1xf32, #tpu.memory_space<vmem>>, vector<32x1xf32>
      %cst = arith.constant dense<0.000000e+00> : vector<32xf32>
      %19 = vector.multi_reduction <add>, %17, %cst [1] : vector<32x256xf32> to vector<32xf32>
      %20 = vector.shape_cast %19 : vector<32xf32> to vector<32x1xf32>
      %21 = arith.addf %18, %20 : vector<32x1xf32>
      %c0_12 = arith.constant 0 : index
      %c0_13 = arith.constant 0 : index
      %22 = vector.load %arg13[%c0_12, %c0_13] : memref<32x1xf32, #tpu.memory_space<vmem>>, vector<32x1xf32>
      tpu.vector_store %arg13[%c0_12, %c0_13], %21 {strides = array<i32>} : memref<32x1xf32, #tpu.memory_space<vmem>>, vector<32x1xf32>,
      %c0_14 = arith.constant 0 : index
      %c0_15 = arith.constant 0 : index
      %23 = vector.load %arg14[%c0_14, %c0_15] : memref<32x1xf32, #tpu.memory_space<vmem>>, vector<32x1xf32>
      %24 = arith.mulf %17, %17 : vector<32x256xf32>
      %cst_16 = arith.constant dense<0.000000e+00> : vector<32xf32>
      %25 = vector.multi_reduction <add>, %24, %cst_16 [1] : vector<32x256xf32> to vector<32xf32>
      %26 = vector.shape_cast %25 : vector<32xf32> to vector<32x1xf32>
      %27 = arith.addf %23, %26 : vector<32x1xf32>
      %c0_17 = arith.constant 0 : index
      %c0_18 = arith.constant 0 : index
      %28 = vector.load %arg14[%c0_17, %c0_18] : memref<32x1xf32, #tpu.memory_space<vmem>>, vector<32x1xf32>
      tpu.vector_store %arg14[%c0_17, %c0_18], %27 {strides = array<i32>} : memref<32x1xf32, #tpu.memory_space<vmem>>, vector<32x1xf32>,
    } else {
    }
    %c1_i32 = arith.constant 1 : i32
    %8 = arith.cmpi eq, %arg2, %c1_i32 : i32
    %c0_i32_4 = arith.constant 0 : i32
    %9 = arith.cmpi eq, %arg3, %c0_i32_4 : i32
    %10 = arith.andi %8, %9 : i1
    %11 = arith.extui %10 : i1 to i32
    %c0_i32_5 = arith.constant 0 : i32
    %12 = arith.cmpi ne, %11, %c0_i32_5 : i32
    scf.if %12 {
      %c0 = arith.constant 0 : index
      %c0_8 = arith.constant 0 : index
      %16 = vector.load %arg10[%c0, %c0_8] : memref<32x32xf32, #tpu.memory_space<vmem>>, vector<32x32xf32>
      %c0_9 = arith.constant 0 : index
      %c0_10 = arith.constant 0 : index
      %17 = vector.load %arg13[%c0_9, %c0_10] : memref<32x1xf32, #tpu.memory_space<vmem>>, vector<32x1xf32>
      %cst = arith.constant dense<0.000000e+00> : vector<32x1xf32>
      %18 = tpu.matmul %16, %17, %cst {dimension_numbers = #tpu.dot_dimension_numbers<[1], [0], [0], [1], [0, 0, 1, 1], [], []>} : vector<32x32xf32>, vector<32x1xf32>, vector<32x1xf32> -> vector<32x1xf32>
      %c0_11 = arith.constant 0 : index
      %c0_12 = arith.constant 0 : index
      %19 = vector.load %arg14[%c0_11, %c0_12] : memref<32x1xf32, #tpu.memory_space<vmem>>, vector<32x1xf32>
      %cst_13 = arith.constant dense<0.000000e+00> : vector<32x1xf32>
      %20 = tpu.matmul %16, %19, %cst_13 {dimension_numbers = #tpu.dot_dimension_numbers<[1], [0], [0], [1], [0, 0, 1, 1], [], []>} : vector<32x32xf32>, vector<32x1xf32>, vector<32x1xf32> -> vector<32x1xf32>
      %21 = arith.mulf %18, %18 : vector<32x1xf32>
      %22 = arith.subf %20, %21 : vector<32x1xf32>
      %cst_14 = arith.constant 9.99999997E-7 : f32
      %23 = vector.broadcast %cst_14 : f32 to vector<32x1xf32>
      %24 = arith.addf %22, %23 : vector<32x1xf32>
      %25 = math.rsqrt %24 : vector<32x1xf32>
      %c0_15 = arith.constant 0 : index
      %c0_16 = arith.constant 0 : index
      %c0_17 = arith.constant 0 : index
      %26 = vector.load %arg8[%c0_15, %c0_16, %c0_17] : memref<1x32x1xf32, #tpu.memory_space<vmem>>, vector<1x32x1xf32>
      %27 = vector.shape_cast %26 : vector<1x32x1xf32> to vector<32x1xf32>
      %28 = arith.mulf %25, %27 : vector<32x1xf32>
      %c0_18 = arith.constant 0 : index
      %c0_19 = arith.constant 0 : index
      %29 = vector.load %arg15[%c0_18, %c0_19] : memref<32x1xf32, #tpu.memory_space<vmem>>, vector<32x1xf32>
      tpu.vector_store %arg15[%c0_18, %c0_19], %28 {strides = array<i32>} : memref<32x1xf32, #tpu.memory_space<vmem>>, vector<32x1xf32>,
      %c0_20 = arith.constant 0 : index
      %c0_21 = arith.constant 0 : index
      %c0_22 = arith.constant 0 : index
      %30 = vector.load %arg9[%c0_20, %c0_21, %c0_22] : memref<1x32x1xf32, #tpu.memory_space<vmem>>, vector<1x32x1xf32>
      %31 = vector.shape_cast %30 : vector<1x32x1xf32> to vector<32x1xf32>
      %32 = arith.mulf %18, %28 : vector<32x1xf32>
      %33 = arith.subf %31, %32 : vector<32x1xf32>
      %c0_23 = arith.constant 0 : index
      %c0_24 = arith.constant 0 : index
      %34 = vector.load %arg16[%c0_23, %c0_24] : memref<32x1xf32, #tpu.memory_space<vmem>>, vector<32x1xf32>
      tpu.vector_store %arg16[%c0_23, %c0_24], %33 {strides = array<i32>} : memref<32x1xf32, #tpu.memory_space<vmem>>, vector<32x1xf32>,
    } else {
    }
    %c1_i32_6 = arith.constant 1 : i32
    %13 = arith.cmpi eq, %arg2, %c1_i32_6 : i32
    %14 = arith.extui %13 : i1 to i32
    %c0_i32_7 = arith.constant 0 : i32
    %15 = arith.cmpi ne, %14, %c0_i32_7 : i32
    scf.if %15 {
      %c0 = arith.constant 0 : index
      %c0_8 = arith.constant 0 : index
      %c0_9 = arith.constant 0 : index
      %16 = vector.load %arg5[%c0, %c0_8, %c0_9] : memref<1x16x64xf32, #tpu.memory_space<vmem>>, vector<1x16x64xf32>
      %17 = vector.shape_cast %16 : vector<1x16x64xf32> to vector<16x64xf32>
      %c0_10 = arith.constant 0 : index
      %c0_11 = arith.constant 0 : index
      %c0_12 = arith.constant 0 : index
      %18 = vector.load %arg6[%c0_10, %c0_11, %c0_12] : memref<1x64x16xf32, #tpu.memory_space<vmem>>, vector<1x64x16xf32>
      %19 = vector.shape_cast %18 : vector<1x64x16xf32> to vector<64x16xf32>
      %cst = arith.constant dense<0.000000e+00> : vector<64x64xf32>
      %20 = tpu.matmul %19, %17, %cst {dimension_numbers = #tpu.dot_dimension_numbers<[1], [0], [0], [1], [0, 0, 1, 1], [], []>} : vector<64x16xf32>, vector<16x64xf32>, vector<64x64xf32> -> vector<64x64xf32>
      %c0_13 = arith.constant 0 : index
      %c0_14 = arith.constant 0 : index
      %c0_15 = arith.constant 0 : index
      %21 = vector.load %arg7[%c0_13, %c0_14, %c0_15] : memref<1x64x1xf32, #tpu.memory_space<vmem>>, vector<1x64x1xf32>
      %22 = vector.shape_cast %21 : vector<1x64x1xf32> to vector<64x1xf32>
      %23 = vector.broadcast %22 : vector<64x1xf32> to vector<64x64xf32>
      %24 = arith.addf %20, %23 : vector<64x64xf32>
      %c0_16 = arith.constant 0 : index
      %c0_17 = arith.constant 0 : index
      %25 = vector.load %arg15[%c0_16, %c0_17] : memref<32x1xf32, #tpu.memory_space<vmem>>, vector<32x1xf32>
      %c0_18 = arith.constant 0 : index
      %c0_19 = arith.constant 0 : index
      %26 = vector.load %arg16[%c0_18, %c0_19] : memref<32x1xf32, #tpu.memory_space<vmem>>, vector<32x1xf32>
      %27 = vector.extract_strided_slice %24 {offsets = [0, 0], sizes = [32, 64], strides = [1, 1]} : vector<64x64xf32> to vector<32x64xf32>
      %28 = vector.extract_strided_slice %24 {offsets = [32, 0], sizes = [32, 64], strides = [1, 1]} : vector<64x64xf32> to vector<32x64xf32>
      %29 = vector.broadcast %25 : vector<32x1xf32> to vector<32x64xf32>
      %30 = arith.mulf %29, %27 : vector<32x64xf32>
      %31 = vector.broadcast %26 : vector<32x1xf32> to vector<32x64xf32>
      %32 = arith.mulf %31, %27 : vector<32x64xf32>
      %33 = arith.addf %32, %28 : vector<32x64xf32>
      %c0_20 = arith.constant 0 : index
      %c0_21 = arith.constant 0 : index
      %34 = vector.load %arg11[%c0_20, %c0_21] : memref<8x16xf32, #tpu.memory_space<vmem>>, vector<8x16xf32>
      %35 = vector.extract_strided_slice %30 {offsets = [0, 0], sizes = [32, 8], strides = [1, 1]} : vector<32x64xf32> to vector<32x8xf32>
      %36 = vector.extract_strided_slice %33 {offsets = [0, 0], sizes = [32, 8], strides = [1, 1]} : vector<32x64xf32> to vector<32x8xf32>
      %cst_22 = arith.constant dense<0.000000e+00> : vector<32x16xf32>
      %37 = tpu.matmul %35, %34, %cst_22 {dimension_numbers = #tpu.dot_dimension_numbers<[1], [0], [0], [1], [0, 0, 1, 1], [], []>} : vector<32x8xf32>, vector<8x16xf32>, vector<32x16xf32> -> vector<32x16xf32>
      %cst_23 = arith.constant dense<0.000000e+00> : vector<32x16xf32>
      %38 = tpu.matmul %36, %34, %cst_23 {dimension_numbers = #tpu.dot_dimension_numbers<[1], [0], [0], [1], [0, 0, 1, 1], [], []>} : vector<32x8xf32>, vector<8x16xf32>, vector<32x16xf32> -> vector<32x16xf32>
      %39 = tpu.concatenate %37, %37 in 1 : vector<32x16xf32>, vector<32x16xf32> -> vector<32x32xf32>
      %40 = tpu.concatenate %38, %38 in 1 : vector<32x16xf32>, vector<32x16xf32> -> vector<32x32xf32>
      %c0_24 = arith.constant 0 : index
      %c0_25 = arith.constant 0 : index
      %c0_26 = arith.constant 0 : index
      %41 = vector.load %arg4[%c0_24, %c0_25, %c0_26] : memref<1x32x256xf32, #tpu.memory_space<vmem>>, vector<1x32x32xf32>
      %42 = vector.shape_cast %41 : vector<1x32x32xf32> to vector<32x32xf32>
      %43 = arith.mulf %42, %39 : vector<32x32xf32>
      %44 = arith.addf %43, %40 : vector<32x32xf32>
      %c0_27 = arith.constant 0 : index
      %c0_28 = arith.constant 0 : index
      %c0_29 = arith.constant 0 : index
      %45 = vector.load %arg12[%c0_27, %c0_28, %c0_29] : memref<1x32x256xf32, #tpu.memory_space<vmem>>, vector<1x32x32xf32>
      %46 = vector.shape_cast %45 : vector<1x32x32xf32> to vector<32x32xf32>
      %47 = vector.shape_cast %44 : vector<32x32xf32> to vector<1x32x32xf32>
      tpu.vector_store %arg12[%c0_27, %c0_28, %c0_29], %47 {strides = array<i32>} : memref<1x32x256xf32, #tpu.memory_space<vmem>>, vector<1x32x32xf32>,
      %48 = vector.extract_strided_slice %30 {offsets = [0, 8], sizes = [32, 8], strides = [1, 1]} : vector<32x64xf32> to vector<32x8xf32>
      %49 = vector.extract_strided_slice %33 {offsets = [0, 8], sizes = [32, 8], strides = [1, 1]} : vector<32x64xf32> to vector<32x8xf32>
      %cst_30 = arith.constant dense<0.000000e+00> : vector<32x16xf32>
      %50 = tpu.matmul %48, %34, %cst_30 {dimension_numbers = #tpu.dot_dimension_numbers<[1], [0], [0], [1], [0, 0, 1, 1], [], []>} : vector<32x8xf32>, vector<8x16xf32>, vector<32x16xf32> -> vector<32x16xf32>
      %cst_31 = arith.constant dense<0.000000e+00> : vector<32x16xf32>
      %51 = tpu.matmul %49, %34, %cst_31 {dimension_numbers = #tpu.dot_dimension_numbers<[1], [0], [0], [1], [0, 0, 1, 1], [], []>} : vector<32x8xf32>, vector<8x16xf32>, vector<32x16xf32> -> vector<32x16xf32>
      %52 = tpu.concatenate %50, %50 in 1 : vector<32x16xf32>, vector<32x16xf32> -> vector<32x32xf32>
      %53 = tpu.concatenate %51, %51 in 1 : vector<32x16xf32>, vector<32x16xf32> -> vector<32x32xf32>
      %c0_32 = arith.constant 0 : index
      %c0_33 = arith.constant 0 : index
      %c32 = arith.constant 32 : index
      %54 = vector.load %arg4[%c0_32, %c0_33, %c32] : memref<1x32x256xf32, #tpu.memory_space<vmem>>, vector<1x32x32xf32>
      %55 = vector.shape_cast %54 : vector<1x32x32xf32> to vector<32x32xf32>
      %56 = arith.mulf %55, %52 : vector<32x32xf32>
      %57 = arith.addf %56, %53 : vector<32x32xf32>
      %c0_34 = arith.constant 0 : index
      %c0_35 = arith.constant 0 : index
      %c32_36 = arith.constant 32 : index
      %58 = vector.load %arg12[%c0_34, %c0_35, %c32_36] : memref<1x32x256xf32, #tpu.memory_space<vmem>>, vector<1x32x32xf32>
      %59 = vector.shape_cast %58 : vector<1x32x32xf32> to vector<32x32xf32>
      %60 = vector.shape_cast %57 : vector<32x32xf32> to vector<1x32x32xf32>
      tpu.vector_store %arg12[%c0_34, %c0_35, %c32_36], %60 {strides = array<i32>} : memref<1x32x256xf32, #tpu.memory_space<vmem>>, vector<1x32x32xf32>,
      %61 = vector.extract_strided_slice %30 {offsets = [0, 16], sizes = [32, 8], strides = [1, 1]} : vector<32x64xf32> to vector<32x8xf32>
      %62 = vector.extract_strided_slice %33 {offsets = [0, 16], sizes = [32, 8], strides = [1, 1]} : vector<32x64xf32> to vector<32x8xf32>
      %cst_37 = arith.constant dense<0.000000e+00> : vector<32x16xf32>
      %63 = tpu.matmul %61, %34, %cst_37 {dimension_numbers = #tpu.dot_dimension_numbers<[1], [0], [0], [1], [0, 0, 1, 1], [], []>} : vector<32x8xf32>, vector<8x16xf32>, vector<32x16xf32> -> vector<32x16xf32>
      %cst_38 = arith.constant dense<0.000000e+00> : vector<32x16xf32>
      %64 = tpu.matmul %62, %34, %cst_38 {dimension_numbers = #tpu.dot_dimension_numbers<[1], [0], [0], [1], [0, 0, 1, 1], [], []>} : vector<32x8xf32>, vector<8x16xf32>, vector<32x16xf32> -> vector<32x16xf32>
      %65 = tpu.concatenate %63, %63 in 1 : vector<32x16xf32>, vector<32x16xf32> -> vector<32x32xf32>
      %66 = tpu.concatenate %64, %64 in 1 : vector<32x16xf32>, vector<32x16xf32> -> vector<32x32xf32>
      %c0_39 = arith.constant 0 : index
      %c0_40 = arith.constant 0 : index
      %c64 = arith.constant 64 : index
      %67 = vector.load %arg4[%c0_39, %c0_40, %c64] : memref<1x32x256xf32, #tpu.memory_space<vmem>>, vector<1x32x32xf32>
      %68 = vector.shape_cast %67 : vector<1x32x32xf32> to vector<32x32xf32>
      %69 = arith.mulf %68, %65 : vector<32x32xf32>
      %70 = arith.addf %69, %66 : vector<32x32xf32>
      %c0_41 = arith.constant 0 : index
      %c0_42 = arith.constant 0 : index
      %c64_43 = arith.constant 64 : index
      %71 = vector.load %arg12[%c0_41, %c0_42, %c64_43] : memref<1x32x256xf32, #tpu.memory_space<vmem>>, vector<1x32x32xf32>
      %72 = vector.shape_cast %71 : vector<1x32x32xf32> to vector<32x32xf32>
      %73 = vector.shape_cast %70 : vector<32x32xf32> to vector<1x32x32xf32>
      tpu.vector_store %arg12[%c0_41, %c0_42, %c64_43], %73 {strides = array<i32>} : memref<1x32x256xf32, #tpu.memory_space<vmem>>, vector<1x32x32xf32>,
      %74 = vector.extract_strided_slice %30 {offsets = [0, 24], sizes = [32, 8], strides = [1, 1]} : vector<32x64xf32> to vector<32x8xf32>
      %75 = vector.extract_strided_slice %33 {offsets = [0, 24], sizes = [32, 8], strides = [1, 1]} : vector<32x64xf32> to vector<32x8xf32>
      %cst_44 = arith.constant dense<0.000000e+00> : vector<32x16xf32>
      %76 = tpu.matmul %74, %34, %cst_44 {dimension_numbers = #tpu.dot_dimension_numbers<[1], [0], [0], [1], [0, 0, 1, 1], [], []>} : vector<32x8xf32>, vector<8x16xf32>, vector<32x16xf32> -> vector<32x16xf32>
      %cst_45 = arith.constant dense<0.000000e+00> : vector<32x16xf32>
      %77 = tpu.matmul %75, %34, %cst_45 {dimension_numbers = #tpu.dot_dimension_numbers<[1], [0], [0], [1], [0, 0, 1, 1], [], []>} : vector<32x8xf32>, vector<8x16xf32>, vector<32x16xf32> -> vector<32x16xf32>
      %78 = tpu.concatenate %76, %76 in 1 : vector<32x16xf32>, vector<32x16xf32> -> vector<32x32xf32>
      %79 = tpu.concatenate %77, %77 in 1 : vector<32x16xf32>, vector<32x16xf32> -> vector<32x32xf32>
      %c0_46 = arith.constant 0 : index
      %c0_47 = arith.constant 0 : index
      %c96 = arith.constant 96 : index
      %80 = vector.load %arg4[%c0_46, %c0_47, %c96] : memref<1x32x256xf32, #tpu.memory_space<vmem>>, vector<1x32x32xf32>
      %81 = vector.shape_cast %80 : vector<1x32x32xf32> to vector<32x32xf32>
      %82 = arith.mulf %81, %78 : vector<32x32xf32>
      %83 = arith.addf %82, %79 : vector<32x32xf32>
      %c0_48 = arith.constant 0 : index
      %c0_49 = arith.constant 0 : index
      %c96_50 = arith.constant 96 : index
      %84 = vector.load %arg12[%c0_48, %c0_49, %c96_50] : memref<1x32x256xf32, #tpu.memory_space<vmem>>, vector<1x32x32xf32>
      %85 = vector.shape_cast %84 : vector<1x32x32xf32> to vector<32x32xf32>
      %86 = vector.shape_cast %83 : vector<32x32xf32> to vector<1x32x32xf32>
      tpu.vector_store %arg12[%c0_48, %c0_49, %c96_50], %86 {strides = array<i32>} : memref<1x32x256xf32, #tpu.memory_space<vmem>>, vector<1x32x32xf32>,
      %87 = vector.extract_strided_slice %30 {offsets = [0, 32], sizes = [32, 8], strides = [1, 1]} : vector<32x64xf32> to vector<32x8xf32>
      %88 = vector.extract_strided_slice %33 {offsets = [0, 32], sizes = [32, 8], strides = [1, 1]} : vector<32x64xf32> to vector<32x8xf32>
      %cst_51 = arith.constant dense<0.000000e+00> : vector<32x16xf32>
      %89 = tpu.matmul %87, %34, %cst_51 {dimension_numbers = #tpu.dot_dimension_numbers<[1], [0], [0], [1], [0, 0, 1, 1], [], []>} : vector<32x8xf32>, vector<8x16xf32>, vector<32x16xf32> -> vector<32x16xf32>
      %cst_52 = arith.constant dense<0.000000e+00> : vector<32x16xf32>
      %90 = tpu.matmul %88, %34, %cst_52 {dimension_numbers = #tpu.dot_dimension_numbers<[1], [0], [0], [1], [0, 0, 1, 1], [], []>} : vector<32x8xf32>, vector<8x16xf32>, vector<32x16xf32> -> vector<32x16xf32>
      %91 = tpu.concatenate %89, %89 in 1 : vector<32x16xf32>, vector<32x16xf32> -> vector<32x32xf32>
      %92 = tpu.concatenate %90, %90 in 1 : vector<32x16xf32>, vector<32x16xf32> -> vector<32x32xf32>
      %c0_53 = arith.constant 0 : index
      %c0_54 = arith.constant 0 : index
      %c128 = arith.constant 128 : index
      %93 = vector.load %arg4[%c0_53, %c0_54, %c128] : memref<1x32x256xf32, #tpu.memory_space<vmem>>, vector<1x32x32xf32>
      %94 = vector.shape_cast %93 : vector<1x32x32xf32> to vector<32x32xf32>
      %95 = arith.mulf %94, %91 : vector<32x32xf32>
      %96 = arith.addf %95, %92 : vector<32x32xf32>
      %c0_55 = arith.constant 0 : index
      %c0_56 = arith.constant 0 : index
      %c128_57 = arith.constant 128 : index
      %97 = vector.load %arg12[%c0_55, %c0_56, %c128_57] : memref<1x32x256xf32, #tpu.memory_space<vmem>>, vector<1x32x32xf32>
      %98 = vector.shape_cast %97 : vector<1x32x32xf32> to vector<32x32xf32>
      %99 = vector.shape_cast %96 : vector<32x32xf32> to vector<1x32x32xf32>
      tpu.vector_store %arg12[%c0_55, %c0_56, %c128_57], %99 {strides = array<i32>} : memref<1x32x256xf32, #tpu.memory_space<vmem>>, vector<1x32x32xf32>,
      %100 = vector.extract_strided_slice %30 {offsets = [0, 40], sizes = [32, 8], strides = [1, 1]} : vector<32x64xf32> to vector<32x8xf32>
      %101 = vector.extract_strided_slice %33 {offsets = [0, 40], sizes = [32, 8], strides = [1, 1]} : vector<32x64xf32> to vector<32x8xf32>
      %cst_58 = arith.constant dense<0.000000e+00> : vector<32x16xf32>
      %102 = tpu.matmul %100, %34, %cst_58 {dimension_numbers = #tpu.dot_dimension_numbers<[1], [0], [0], [1], [0, 0, 1, 1], [], []>} : vector<32x8xf32>, vector<8x16xf32>, vector<32x16xf32> -> vector<32x16xf32>
      %cst_59 = arith.constant dense<0.000000e+00> : vector<32x16xf32>
      %103 = tpu.matmul %101, %34, %cst_59 {dimension_numbers = #tpu.dot_dimension_numbers<[1], [0], [0], [1], [0, 0, 1, 1], [], []>} : vector<32x8xf32>, vector<8x16xf32>, vector<32x16xf32> -> vector<32x16xf32>
      %104 = tpu.concatenate %102, %102 in 1 : vector<32x16xf32>, vector<32x16xf32> -> vector<32x32xf32>
      %105 = tpu.concatenate %103, %103 in 1 : vector<32x16xf32>, vector<32x16xf32> -> vector<32x32xf32>
      %c0_60 = arith.constant 0 : index
      %c0_61 = arith.constant 0 : index
      %c160 = arith.constant 160 : index
      %106 = vector.load %arg4[%c0_60, %c0_61, %c160] : memref<1x32x256xf32, #tpu.memory_space<vmem>>, vector<1x32x32xf32>
      %107 = vector.shape_cast %106 : vector<1x32x32xf32> to vector<32x32xf32>
      %108 = arith.mulf %107, %104 : vector<32x32xf32>
      %109 = arith.addf %108, %105 : vector<32x32xf32>
      %c0_62 = arith.constant 0 : index
      %c0_63 = arith.constant 0 : index
      %c160_64 = arith.constant 160 : index
      %110 = vector.load %arg12[%c0_62, %c0_63, %c160_64] : memref<1x32x256xf32, #tpu.memory_space<vmem>>, vector<1x32x32xf32>
      %111 = vector.shape_cast %110 : vector<1x32x32xf32> to vector<32x32xf32>
      %112 = vector.shape_cast %109 : vector<32x32xf32> to vector<1x32x32xf32>
      tpu.vector_store %arg12[%c0_62, %c0_63, %c160_64], %112 {strides = array<i32>} : memref<1x32x256xf32, #tpu.memory_space<vmem>>, vector<1x32x32xf32>,
      %113 = vector.extract_strided_slice %30 {offsets = [0, 48], sizes = [32, 8], strides = [1, 1]} : vector<32x64xf32> to vector<32x8xf32>
      %114 = vector.extract_strided_slice %33 {offsets = [0, 48], sizes = [32, 8], strides = [1, 1]} : vector<32x64xf32> to vector<32x8xf32>
      %cst_65 = arith.constant dense<0.000000e+00> : vector<32x16xf32>
      %115 = tpu.matmul %113, %34, %cst_65 {dimension_numbers = #tpu.dot_dimension_numbers<[1], [0], [0], [1], [0, 0, 1, 1], [], []>} : vector<32x8xf32>, vector<8x16xf32>, vector<32x16xf32> -> vector<32x16xf32>
      %cst_66 = arith.constant dense<0.000000e+00> : vector<32x16xf32>
      %116 = tpu.matmul %114, %34, %cst_66 {dimension_numbers = #tpu.dot_dimension_numbers<[1], [0], [0], [1], [0, 0, 1, 1], [], []>} : vector<32x8xf32>, vector<8x16xf32>, vector<32x16xf32> -> vector<32x16xf32>
      %117 = tpu.concatenate %115, %115 in 1 : vector<32x16xf32>, vector<32x16xf32> -> vector<32x32xf32>
      %118 = tpu.concatenate %116, %116 in 1 : vector<32x16xf32>, vector<32x16xf32> -> vector<32x32xf32>
      %c0_67 = arith.constant 0 : index
      %c0_68 = arith.constant 0 : index
      %c192 = arith.constant 192 : index
      %119 = vector.load %arg4[%c0_67, %c0_68, %c192] : memref<1x32x256xf32, #tpu.memory_space<vmem>>, vector<1x32x32xf32>
      %120 = vector.shape_cast %119 : vector<1x32x32xf32> to vector<32x32xf32>
      %121 = arith.mulf %120, %117 : vector<32x32xf32>
      %122 = arith.addf %121, %118 : vector<32x32xf32>
      %c0_69 = arith.constant 0 : index
      %c0_70 = arith.constant 0 : index
      %c192_71 = arith.constant 192 : index
      %123 = vector.load %arg12[%c0_69, %c0_70, %c192_71] : memref<1x32x256xf32, #tpu.memory_space<vmem>>, vector<1x32x32xf32>
      %124 = vector.shape_cast %123 : vector<1x32x32xf32> to vector<32x32xf32>
      %125 = vector.shape_cast %122 : vector<32x32xf32> to vector<1x32x32xf32>
      tpu.vector_store %arg12[%c0_69, %c0_70, %c192_71], %125 {strides = array<i32>} : memref<1x32x256xf32, #tpu.memory_space<vmem>>, vector<1x32x32xf32>,
      %126 = vector.extract_strided_slice %30 {offsets = [0, 56], sizes = [32, 8], strides = [1, 1]} : vector<32x64xf32> to vector<32x8xf32>
      %127 = vector.extract_strided_slice %33 {offsets = [0, 56], sizes = [32, 8], strides = [1, 1]} : vector<32x64xf32> to vector<32x8xf32>
      %cst_72 = arith.constant dense<0.000000e+00> : vector<32x16xf32>
      %128 = tpu.matmul %126, %34, %cst_72 {dimension_numbers = #tpu.dot_dimension_numbers<[1], [0], [0], [1], [0, 0, 1, 1], [], []>} : vector<32x8xf32>, vector<8x16xf32>, vector<32x16xf32> -> vector<32x16xf32>
      %cst_73 = arith.constant dense<0.000000e+00> : vector<32x16xf32>
      %129 = tpu.matmul %127, %34, %cst_73 {dimension_numbers = #tpu.dot_dimension_numbers<[1], [0], [0], [1], [0, 0, 1, 1], [], []>} : vector<32x8xf32>, vector<8x16xf32>, vector<32x16xf32> -> vector<32x16xf32>
      %130 = tpu.concatenate %128, %128 in 1 : vector<32x16xf32>, vector<32x16xf32> -> vector<32x32xf32>
      %131 = tpu.concatenate %129, %129 in 1 : vector<32x16xf32>, vector<32x16xf32> -> vector<32x32xf32>
      %c0_74 = arith.constant 0 : index
      %c0_75 = arith.constant 0 : index
      %c224 = arith.constant 224 : index
      %132 = vector.load %arg4[%c0_74, %c0_75, %c224] : memref<1x32x256xf32, #tpu.memory_space<vmem>>, vector<1x32x32xf32>
      %133 = vector.shape_cast %132 : vector<1x32x32xf32> to vector<32x32xf32>
      %134 = arith.mulf %133, %130 : vector<32x32xf32>
      %135 = arith.addf %134, %131 : vector<32x32xf32>
      %c0_76 = arith.constant 0 : index
      %c0_77 = arith.constant 0 : index
      %c224_78 = arith.constant 224 : index
      %136 = vector.load %arg12[%c0_76, %c0_77, %c224_78] : memref<1x32x256xf32, #tpu.memory_space<vmem>>, vector<1x32x32xf32>
      %137 = vector.shape_cast %136 : vector<1x32x32xf32> to vector<32x32xf32>
      %138 = vector.shape_cast %135 : vector<32x32xf32> to vector<1x32x32xf32>
      tpu.vector_store %arg12[%c0_76, %c0_77, %c224_78], %138 {strides = array<i32>} : memref<1x32x256xf32, #tpu.memory_space<vmem>>, vector<1x32x32xf32>,
    } else {
    }
    return
  }
  func.func @transform_0(%arg0: i32, %arg1: i32, %arg2: i32, %arg3: i32) -> (i32, i32, i32) {
    %c0_i32 = arith.constant 0 : i32
    return %arg0, %arg1, %arg3 : i32, i32, i32
  }
  func.func @transform_1(%arg0: i32, %arg1: i32, %arg2: i32, %arg3: i32) -> (i32, i32, i32) {
    %0 = arith.muli %arg3, %arg2 : i32
    %c0_i32 = arith.constant 0 : i32
    %c0_i32_0 = arith.constant 0 : i32
    return %arg0, %c0_i32, %0 : i32, i32, i32
  }
  func.func @transform_2(%arg0: i32, %arg1: i32, %arg2: i32, %arg3: i32) -> (i32, i32, i32) {
    %c0_i32 = arith.constant 0 : i32
    %c0_i32_0 = arith.constant 0 : i32
    %c0_i32_1 = arith.constant 0 : i32
    return %arg1, %c0_i32, %c0_i32_0 : i32, i32, i32
  }
  func.func @transform_3(%arg0: i32, %arg1: i32, %arg2: i32, %arg3: i32) -> (i32, i32, i32) {
    %c0_i32 = arith.constant 0 : i32
    %c0_i32_0 = arith.constant 0 : i32
    %c0_i32_1 = arith.constant 0 : i32
    return %arg1, %c0_i32, %c0_i32_0 : i32, i32, i32
  }
  func.func @transform_4(%arg0: i32, %arg1: i32, %arg2: i32, %arg3: i32) -> (i32, i32, i32) {
    %c0_i32 = arith.constant 0 : i32
    %c0_i32_0 = arith.constant 0 : i32
    %c0_i32_1 = arith.constant 0 : i32
    return %arg1, %c0_i32, %c0_i32_0 : i32, i32, i32
  }
  func.func @transform_5(%arg0: i32, %arg1: i32, %arg2: i32, %arg3: i32) -> (i32, i32, i32) {
    %c0_i32 = arith.constant 0 : i32
    %c0_i32_0 = arith.constant 0 : i32
    %c0_i32_1 = arith.constant 0 : i32
    return %arg1, %c0_i32, %c0_i32_0 : i32, i32, i32
  }
  func.func @transform_6(%arg0: i32, %arg1: i32, %arg2: i32, %arg3: i32) -> (i32, i32) {
    %c0_i32 = arith.constant 0 : i32
    %c0_i32_0 = arith.constant 0 : i32
    %c0_i32_1 = arith.constant 0 : i32
    return %c0_i32, %c0_i32_0 : i32, i32
  }
  func.func @transform_7(%arg0: i32, %arg1: i32, %arg2: i32, %arg3: i32) -> (i32, i32) {
    %c0_i32 = arith.constant 0 : i32
    %c0_i32_0 = arith.constant 0 : i32
    %c0_i32_1 = arith.constant 0 : i32
    return %c0_i32, %c0_i32_0 : i32, i32
  }
  func.func @transform_8(%arg0: i32, %arg1: i32, %arg2: i32, %arg3: i32) -> (i32, i32, i32) {
    %0 = arith.muli %arg3, %arg2 : i32
    %c0_i32 = arith.constant 0 : i32
    return %arg0, %arg1, %0 : i32, i32, i32
  }
}

</mosaic_0001>

<llo_original>
// kernel: tpu_custom_call.1
$region0: #{tpu_custom_call.1}
  #allocation0 [shape = 'u32[]', space=smem, size = 0x4, offset = 0x4, fixed_abs, tag = 'smem constant byte address 0x4 - core index']
  #allocation1 [shape = 'u32[144,128]{1,0:T(1,128)}', space=vmem, size = 0x12000, scoped, tag = 'internal scratch']
  #allocation2 [shape = 'f32[32,1]{1,0:T(8,128)}', space=vmem, size = 0x4000, scoped, tag = 'scratch operand']
  #allocation3 [shape = 'f32[32,1]{1,0:T(8,128)}', space=vmem, size = 0x4000, scoped, tag = 'scratch operand']
  #allocation4 [shape = 'f32[32,1]{1,0:T(8,128)}', space=vmem, size = 0x4000, scoped, tag = 'scratch operand']
  #allocation5 [shape = 'f32[32,1]{1,0:T(8,128)}', space=vmem, size = 0x4000, scoped, tag = 'scratch operand']
  %s0 = inlined_call_operand.vmem [shape: f32[2,64,256], index: 0, kind: input, shape index: {}]
  %s1 = inlined_call_operand.vmem [shape: f32[2,16,64], index: 1, kind: input, shape index: {}]
  %s2 = inlined_call_operand.vmem [shape: f32[2,64,16], index: 2, kind: input, shape index: {}]
  %s3 = inlined_call_operand.vmem [shape: f32[2,64,1], index: 3, kind: input, shape index: {}]
  %s4 = inlined_call_operand.vmem [shape: f32[2,32,1], index: 4, kind: input, shape index: {}]
  %s5 = inlined_call_operand.vmem [shape: f32[2,32,1], index: 5, kind: input, shape index: {}]
  %s6 = inlined_call_operand.vmem [shape: f32[32,32], index: 6, kind: input, shape index: {}]
  %s7 = inlined_call_operand.vmem [shape: f32[8,16], index: 7, kind: input, shape index: {}]
  %s8 = inlined_call_operand.hbm [shape: f32[2,64,256], index: 8, kind: output, shape index: {}]
  %s9 = sld [smem:[#allocation0]]
  $region81: #{tpu_custom_call.1} parent=0
    _
  %s11 = ssub.s32 1, %s9
  %s12 = scalar_select 0, %s11, %s9
  $region1: #{tpu_custom_call.1} parent=0
    #allocation6 [shape = 'u8[65536]{0}', space=vmem, size = 0x10000, scoped, tag = 'output window, operand 0']
    #allocation7 [shape = 's32[2]{0}', space=sflag, size = 0x8, scoped, tag = 'scoped memory for tpu_custom_call.1']
    %13 = vsyncpa [#allocation7], 0
    %s14 = scalar_lea.sflag [#allocation7], 1
    %15 = vsyncpa %s14, 0
    loop: start=0, step=1, limit=10
    $region2: #{tpu_custom_call.1} parent=1 // loop_pre_header
      _
    $region3: #{tpu_custom_call.1} parent=1 // loop_header
      %s17 = sphi 0, %s21
      %p18 = scmp.ge.s32.totalorder %s17, 10
      %s24 = sphi 0, %s50
      %s25 = sphi 0, %s46
      %s26 = sphi 0, %s42
      %s27 = sphi 0, %s38
      %s28 = sphi 0, %s24
      %s29 = sphi 0, %s25
      %s30 = sphi 0, %s26
      %s31 = sphi 0, %s27
      %s32 = sphi 0, %s28
      %s33 = sphi 0, %s29
      %s34 = sphi 0, %s30
      %s35 = sphi 0, %s31
      %s57 = sphi 0, %s59
      %s60 = sphi 0, %s57
      %s61 = sphi 0, %s60
      %s77 = sphi 0, %s61
      %s87 = sphi 0, %s89
      %s90 = sphi 0, %s87
      %s91 = sphi 0, %s90
      %s107 = sphi 0, %s91
      %s113 = sphi 0, %s115
      %s116 = sphi 0, %s113
      %s117 = sphi 0, %s116
      %s133 = sphi 0, %s117
      %s139 = sphi 0, %s141
      %s142 = sphi 0, %s139
      %s143 = sphi 0, %s142
      %s159 = sphi 0, %s143
      %s165 = sphi 0, %s167
      %s168 = sphi 0, %s165
      %s169 = sphi 0, %s168
      %s185 = sphi 0, %s169
      %s191 = sphi 0, %s193
      %s194 = sphi 0, %s191
      %s195 = sphi 0, %s194
      %s211 = sphi 0, %s195
      %s215 = sphi 0, %s215
      %s217 = sphi 0, %s215
      %s218 = sphi 0, %s217
      %s232 = sphi 0, %s218
      %s236 = sphi 0, %s236
      %s238 = sphi 0, %s236
      %s239 = sphi 0, %s238
      %s253 = sphi 0, %s239
      %s265 = sphi 0, %s267
      %s268 = sphi 0, %s265
      %s269 = sphi 0, %s268
      %s285 = sphi 0, %s269
    $region4: #{tpu_custom_call.1} parent=1 // loop_header_branch
      %20 = sbr.rel (%p18) target = $region8
    $region5: #{tpu_custom_call.1} parent=1 // loop_body
      %s22 = ssub.s32 %s17, 1
      %s23 = ssub.s32 %s17, 2
      %s36 = sadd.s32 1, %s27
      %p37 = scmp.ge.s32.totalorder %s36, 1
      %s38 = scalar_select %p37, 0, %s36
      %s39 = sadd.s32 1, %s26
      %s40 = scalar_select %p37, %s39, %s26
      %p41 = scmp.ge.s32.totalorder %s40, 2
      %s42 = scalar_select %p41, 0, %s40
      %s43 = sadd.s32 1, %s25
      %s44 = scalar_select %p41, %s43, %s25
      %p45 = scmp.ge.s32.totalorder %s44, 2
      %s46 = scalar_select %p45, 0, %s44
      %s47 = sadd.s32 1, %s24
      %s48 = scalar_select %p45, %s47, %s24
      %p49 = scmp.ge.s32.totalorder %s48, 2
      %s50 = scalar_select %p49, 0, %s48
      %s51 = ssub.s32 %s24, %s50
      %s52 = ssub.s32 %s25, %s46
      %s53 = sor.u32 %s51, %s52
      %s54 = ssub.s32 %s27, %s38
      %s55 = sor.u32 %s53, %s54
      %p56 = scmp.eq.s32.totalorder %s55, 0
      %s58 = sadd.s32 %s57, 1
      %s59 = scalar_select %p56, %s57, %s58
      %p62 = pneg %p56
      %p63 = scmp.eq.s32.totalorder %s17, 7
      %p64 = por %p62, %p63
      %p65 = scmp.ne.s32.totalorder %s57, %s60
      %p66 = scmp.eq.s32.totalorder %s17, 0
      %p67 = por %p65, %p66
      %p68 = scmp.ne.s32.totalorder %s57, %s60
      %p69 = scmp.eq.s32.totalorder %s22, 7
      %p70 = por %p68, %p69
      %p71 = scmp.ne.s32.totalorder %s60, %s61
      %p72 = scmp.eq.s32.totalorder %s22, 0
      %p73 = por %p71, %p72
      %p74 = scmp.ne.s32.totalorder %s60, %s61
      %p75 = scmp.eq.s32.totalorder %s23, 7
      %p76 = por %p74, %p75
      %p78 = scmp.ne.s32.totalorder %s61, %s77
      %p79 = scmp.eq.s32.totalorder %s23, 0
      %p80 = por %p78, %p79
      %s81 = smul.u32 %s27, %s26
      %s82 = smul.u32 %s38, %s42
      %s83 = ssub.s32 %s24, %s50
      %s84 = ssub.s32 %s81, %s82
      %s85 = sor.u32 %s83, %s84
      %p86 = scmp.eq.s32.totalorder %s85, 0
      %s88 = sadd.s32 %s87, 1
      %s89 = scalar_select %p86, %s87, %s88
      %p92 = pneg %p86
      %p93 = scmp.eq.s32.totalorder %s17, 7
      %p94 = por %p92, %p93
      %p95 = scmp.ne.s32.totalorder %s87, %s90
      %p96 = scmp.eq.s32.totalorder %s17, 0
      %p97 = por %p95, %p96
      %p98 = scmp.ne.s32.totalorder %s87, %s90
      %p99 = scmp.eq.s32.totalorder %s22, 7
      %p100 = por %p98, %p99
      %p101 = scmp.ne.s32.totalorder %s90, %s91
      %p102 = scmp.eq.s32.totalorder %s22, 0
      %p103 = por %p101, %p102
      %p104 = scmp.ne.s32.totalorder %s90, %s91
      %p105 = scmp.eq.s32.totalorder %s23, 7
      %p106 = por %p104, %p105
      %p108 = scmp.ne.s32.totalorder %s91, %s107
      %p109 = scmp.eq.s32.totalorder %s23, 0
      %p110 = por %p108, %p109
      %s111 = ssub.s32 %s25, %s46
      %p112 = scmp.eq.s32.totalorder %s111, 0
      %s114 = sadd.s32 %s113, 1
      %s115 = scalar_select %p112, %s113, %s114
      %p118 = pneg %p112
      %p119 = scmp.eq.s32.totalorder %s17, 7
      %p120 = por %p118, %p119
      %p121 = scmp.ne.s32.totalorder %s113, %s116
      %p122 = scmp.eq.s32.totalorder %s17, 0
      %p123 = por %p121, %p122
      %p124 = scmp.ne.s32.totalorder %s113, %s116
      %p125 = scmp.eq.s32.totalorder %s22, 7
      %p126 = por %p124, %p125
      %p127 = scmp.ne.s32.totalorder %s116, %s117
      %p128 = scmp.eq.s32.totalorder %s22, 0
      %p129 = por %p127, %p128
      %p130 = scmp.ne.s32.totalorder %s116, %s117
      %p131 = scmp.eq.s32.totalorder %s23, 7
      %p132 = por %p130, %p131
      %p134 = scmp.ne.s32.totalorder %s117, %s133
      %p135 = scmp.eq.s32.totalorder %s23, 0
      %p136 = por %p134, %p135
      %s137 = ssub.s32 %s25, %s46
      %p138 = scmp.eq.s32.totalorder %s137, 0
      %s140 = sadd.s32 %s139, 1
      %s141 = scalar_select %p138, %s139, %s140
      %p144 = pneg %p138
      %p145 = scmp.eq.s32.totalorder %s17, 7
      %p146 = por %p144, %p145
      %p147 = scmp.ne.s32.totalorder %s139, %s142
      %p148 = scmp.eq.s32.totalorder %s17, 0
      %p149 = por %p147, %p148
      %p150 = scmp.ne.s32.totalorder %s139, %s142
      %p151 = scmp.eq.s32.totalorder %s22, 7
      %p152 = por %p150, %p151
      %p153 = scmp.ne.s32.totalorder %s142, %s143
      %p154 = scmp.eq.s32.totalorder %s22, 0
      %p155 = por %p153, %p154
      %p156 = scmp.ne.s32.totalorder %s142, %s143
      %p157 = scmp.eq.s32.totalorder %s23, 7
      %p158 = por %p156, %p157
      %p160 = scmp.ne.s32.totalorder %s143, %s159
      %p161 = scmp.eq.s32.totalorder %s23, 0
      %p162 = por %p160, %p161
      %s163 = ssub.s32 %s25, %s46
      %p164 = scmp.eq.s32.totalorder %s163, 0
      %s166 = sadd.s32 %s165, 1
      %s167 = scalar_select %p164, %s165, %s166
      %p170 = pneg %p164
      %p171 = scmp.eq.s32.totalorder %s17, 7
      %p172 = por %p170, %p171
      %p173 = scmp.ne.s32.totalorder %s165, %s168
      %p174 = scmp.eq.s32.totalorder %s17, 0
      %p175 = por %p173, %p174
      %p176 = scmp.ne.s32.totalorder %s165, %s168
      %p177 = scmp.eq.s32.totalorder %s22, 7
      %p178 = por %p176, %p177
      %p179 = scmp.ne.s32.totalorder %s168, %s169
      %p180 = scmp.eq.s32.totalorder %s22, 0
      %p181 = por %p179, %p180
      %p182 = scmp.ne.s32.totalorder %s168, %s169
      %p183 = scmp.eq.s32.totalorder %s23, 7
      %p184 = por %p182, %p183
      %p186 = scmp.ne.s32.totalorder %s169, %s185
      %p187 = scmp.eq.s32.totalorder %s23, 0
      %p188 = por %p186, %p187
      %s189 = ssub.s32 %s25, %s46
      %p190 = scmp.eq.s32.totalorder %s189, 0
      %s192 = sadd.s32 %s191, 1
      %s193 = scalar_select %p190, %s191, %s192
      %p196 = pneg %p190
      %p197 = scmp.eq.s32.totalorder %s17, 7
      %p198 = por %p196, %p197
      %p199 = scmp.ne.s32.totalorder %s191, %s194
      %p200 = scmp.eq.s32.totalorder %s17, 0
      %p201 = por %p199, %p200
      %p202 = scmp.ne.s32.totalorder %s191, %s194
      %p203 = scmp.eq.s32.totalorder %s22, 7
      %p204 = por %p202, %p203
      %p205 = scmp.ne.s32.totalorder %s194, %s195
      %p206 = scmp.eq.s32.totalorder %s22, 0
      %p207 = por %p205, %p206
      %p208 = scmp.ne.s32.totalorder %s194, %s195
      %p209 = scmp.eq.s32.totalorder %s23, 7
      %p210 = por %p208, %p209
      %p212 = scmp.ne.s32.totalorder %s195, %s211
      %p213 = scmp.eq.s32.totalorder %s23, 0
      %p214 = por %p212, %p213
      %s216 = sadd.s32 %s215, 1
      %p219 = scmp.eq.s32.totalorder %s17, 7
      %p220 = scmp.ne.s32.totalorder %s215, %s217
      %p221 = scmp.eq.s32.totalorder %s17, 0
      %p222 = por %p220, %p221
      %p223 = scmp.ne.s32.totalorder %s215, %s217
      %p224 = scmp.eq.s32.totalorder %s22, 7
      %p225 = por %p223, %p224
      %p226 = scmp.ne.s32.totalorder %s217, %s218
      %p227 = scmp.eq.s32.totalorder %s22, 0
      %p228 = por %p226, %p227
      %p229 = scmp.ne.s32.totalorder %s217, %s218
      %p230 = scmp.eq.s32.totalorder %s23, 7
      %p231 = por %p229, %p230
      %p233 = scmp.ne.s32.totalorder %s218, %s232
      %p234 = scmp.eq.s32.totalorder %s23, 0
      %p235 = por %p233, %p234
      %s237 = sadd.s32 %s236, 1
      %p240 = scmp.eq.s32.totalorder %s17, 7
      %p241 = scmp.ne.s32.totalorder %s236, %s238
      %p242 = scmp.eq.s32.totalorder %s17, 0
      %p243 = por %p241, %p242
      %p244 = scmp.ne.s32.totalorder %s236, %s238
      %p245 = scmp.eq.s32.totalorder %s22, 7
      %p246 = por %p244, %p245
      %p247 = scmp.ne.s32.totalorder %s238, %s239
      %p248 = scmp.eq.s32.totalorder %s22, 0
      %p249 = por %p247, %p248
      %p250 = scmp.ne.s32.totalorder %s238, %s239
      %p251 = scmp.eq.s32.totalorder %s23, 7
      %p252 = por %p250, %p251
      %p254 = scmp.ne.s32.totalorder %s239, %s253
      %p255 = scmp.eq.s32.totalorder %s23, 0
      %p256 = por %p254, %p255
      %s257 = smul.u32 %s27, %s26
      %s258 = smul.u32 %s38, %s42
      %s259 = ssub.s32 %s24, %s50
      %s260 = ssub.s32 %s25, %s46
      %s261 = sor.u32 %s259, %s260
      %s262 = ssub.s32 %s257, %s258
      %s263 = sor.u32 %s261, %s262
      %p264 = scmp.eq.s32.totalorder %s263, 0
      %s266 = sadd.s32 %s265, 1
      %s267 = scalar_select %p264, %s265, %s266
      %p270 = pneg %p264
      %p271 = scmp.eq.s32.totalorder %s17, 7
      %p272 = por %p270, %p271
      %p273 = scmp.ne.s32.totalorder %s265, %s268
      %p274 = scmp.eq.s32.totalorder %s17, 0
      %p275 = por %p273, %p274
      %p276 = scmp.ne.s32.totalorder %s265, %s268
      %p277 = scmp.eq.s32.totalorder %s22, 7
      %p278 = por %p276, %p277
      %p279 = scmp.ne.s32.totalorder %s268, %s269
      %p280 = scmp.eq.s32.totalorder %s22, 0
      %p281 = por %p279, %p280
      %p282 = scmp.ne.s32.totalorder %s268, %s269
      %p283 = scmp.eq.s32.totalorder %s23, 7
      %p284 = por %p282, %p283
      %p286 = scmp.ne.s32.totalorder %s269, %s285
      %p287 = scmp.eq.s32.totalorder %s23, 0
      %p288 = por %p286, %p287
      %p289 = scmp.le.s32.totalorder 1, %s17
      %p290 = scmp.lt.s32.totalorder %s17, 9
      %p291 = pnand %p289, %p290
      %p292 = pneg %p291
      // Predicated region
      $region9: #{tpu_custom_call.1} parent=5 // pred_check
        _
      $region10: #{tpu_custom_call.1} parent=5 // pred_check_branch
        %294 = sbr.rel (%p291) target = $region12
      $region11: #{tpu_custom_call.1} parent=5 // pred_region
        %s295 = ssub.s32 %s17, 1
        // Predicated region
        $region13: #{tpu_custom_call.1} parent=11 // pred_check
          %p296 = pneg %p228
        $region14: #{tpu_custom_call.1} parent=11 // pred_check_branch
          %298 = sbr.rel (%p296) target = $region16
        $region15: #{tpu_custom_call.1} parent=11 // pred_region
          _
        $region16: #{tpu_custom_call.1} parent=11 // pred_fallthru
          _
        // Predicated region
        $region17: #{tpu_custom_call.1} parent=11 // pred_check
          %p299 = pneg %p249
        $region18: #{tpu_custom_call.1} parent=11 // pred_check_branch
          %301 = sbr.rel (%p299) target = $region20
        $region19: #{tpu_custom_call.1} parent=11 // pred_region
          _
        $region20: #{tpu_custom_call.1} parent=11 // pred_fallthru
          _
      $region12: #{tpu_custom_call.1} parent=5 // pred_fallthru
        _
      %p302 = scmp.lt.s32.totalorder %s17, 8
      // Predicated region
      $region21: #{tpu_custom_call.1} parent=5 // pred_check
        %p303 = pneg %p302
      $region22: #{tpu_custom_call.1} parent=5 // pred_check_branch
        %305 = sbr.rel (%p303) target = $region24
      $region23: #{tpu_custom_call.1} parent=5 // pred_region
        // Predicated region
        $region25: #{tpu_custom_call.1} parent=23 // pred_check
          %p306 = pneg %p67
        $region26: #{tpu_custom_call.1} parent=23 // pred_check_branch
          %308 = sbr.rel (%p306) target = $region28
        $region27: #{tpu_custom_call.1} parent=23 // pred_region
          %s309 = smul.u32 4, %s25
          %s310 = smul.u32 2, %s27
          %p311 = scmp.lt.s32.totalorder %s24, 1
          %s312 = scalar_select %p311, %s24, 1
          %p313 = scmp.lt.s32.totalorder %s309, 7
          %s314 = scalar_select %p313, %s309, 7
          %p315 = scmp.lt.s32.totalorder %s310, 1
          %s316 = scalar_select %p315, %s310, 1
          %s317 = smul.addr %s314, 2
          %s318 = sadd.s32 %s316, %s317
          %s319 = smul.addr %s312, 16
          %s320 = sadd.s32 %s318, %s319
          %s321 = smul.addr %s320, 8
          %s322 = scalar_lea.vmem %s0, %s321
          %s323 = smul.u32 4, %s25
          %s324 = smul.u32 2, %s27
        $region28: #{tpu_custom_call.1} parent=23 // pred_fallthru
          _
        // Predicated region
        $region29: #{tpu_custom_call.1} parent=23 // pred_check
          %p325 = pneg %p97
        $region30: #{tpu_custom_call.1} parent=23 // pred_check_branch
          %327 = sbr.rel (%p325) target = $region32
        $region31: #{tpu_custom_call.1} parent=23 // pred_region
          %s328 = smul.u32 %s27, %s26
          %p329 = scmp.lt.s32.totalorder %s24, 1
          %s330 = scalar_select %p329, %s24, 1
          %p331 = scmp.lt.s32.totalorder %s328, 0
          %s332 = scalar_select %p331, %s328, 0
          %s333 = smul.addr %s330, 2
          %s334 = sadd.s32 %s332, %s333
          %s335 = smul.addr %s334, 8
          %s336 = scalar_lea.vmem %s1, %s335
          %s337 = smul.u32 %s27, %s26
        $region32: #{tpu_custom_call.1} parent=23 // pred_fallthru
          _
        // Predicated region
        $region33: #{tpu_custom_call.1} parent=23 // pred_check
          %p338 = pneg %p123
        $region34: #{tpu_custom_call.1} parent=23 // pred_check_branch
          %340 = sbr.rel (%p338) target = $region36
        $region35: #{tpu_custom_call.1} parent=23 // pred_region
          %p341 = scmp.lt.s32.totalorder %s25, 1
          %s342 = scalar_select %p341, %s25, 1
          %s343 = smul.addr %s342, 8
          %s344 = smul.addr %s343, 8
          %s345 = scalar_lea.vmem %s2, %s344
        $region36: #{tpu_custom_call.1} parent=23 // pred_fallthru
          _
        // Predicated region
        $region37: #{tpu_custom_call.1} parent=23 // pred_check
          %p346 = pneg %p149
        $region38: #{tpu_custom_call.1} parent=23 // pred_check_branch
          %348 = sbr.rel (%p346) target = $region40
        $region39: #{tpu_custom_call.1} parent=23 // pred_region
          %p349 = scmp.lt.s32.totalorder %s25, 1
          %s350 = scalar_select %p349, %s25, 1
          %s351 = smul.addr %s350, 8
          %s352 = smul.addr %s351, 8
          %s353 = scalar_lea.vmem %s3, %s352
        $region40: #{tpu_custom_call.1} parent=23 // pred_fallthru
          _
        // Predicated region
        $region41: #{tpu_custom_call.1} parent=23 // pred_check
          %p354 = pneg %p175
        $region42: #{tpu_custom_call.1} parent=23 // pred_check_branch
          %356 = sbr.rel (%p354) target = $region44
        $region43: #{tpu_custom_call.1} parent=23 // pred_region
          %p357 = scmp.lt.s32.totalorder %s25, 1
          %s358 = scalar_select %p357, %s25, 1
          %s359 = smul.addr %s358, 4
          %s360 = smul.addr %s359, 8
          %s361 = scalar_lea.vmem %s4, %s360
        $region44: #{tpu_custom_call.1} parent=23 // pred_fallthru
          _
        // Predicated region
        $region45: #{tpu_custom_call.1} parent=23 // pred_check
          %p362 = pneg %p201
        $region46: #{tpu_custom_call.1} parent=23 // pred_check_branch
          %364 = sbr.rel (%p362) target = $region48
        $region47: #{tpu_custom_call.1} parent=23 // pred_region
          %p365 = scmp.lt.s32.totalorder %s25, 1
          %s366 = scalar_select %p365, %s25, 1
          %s367 = smul.addr %s366, 4
          %s368 = smul.addr %s367, 8
          %s369 = scalar_lea.vmem %s5, %s368
        $region48: #{tpu_custom_call.1} parent=23 // pred_fallthru
          _
      $region24: #{tpu_custom_call.1} parent=5 // pred_fallthru
        _
      %p370 = scmp.le.s32.totalorder 1, %s17
      %p371 = scmp.lt.s32.totalorder %s17, 9
      %p372 = pnand %p370, %p371
      %p373 = pneg %p372
      // Predicated region
      $region49: #{tpu_custom_call.1} parent=5 // pred_check
        _
      $region50: #{tpu_custom_call.1} parent=5 // pred_check_branch
        %375 = sbr.rel (%p372) target = $region52
      $region51: #{tpu_custom_call.1} parent=5 // pred_region
        %s376 = ssub.s32 %s17, 1
        %s377 = smul.u32 4, %s29
        %s378 = smul.u32 2, %s31
        %p379 = scmp.lt.s32.totalorder %s28, 1
        %s380 = scalar_select %p379, %s28, 1
        %p381 = scmp.lt.s32.totalorder %s377, 7
        %s382 = scalar_select %p381, %s377, 7
        %p383 = scmp.lt.s32.totalorder %s378, 1
        %s384 = scalar_select %p383, %s378, 1
        %s385 = smul.addr %s382, 2
        %s386 = sadd.s32 %s384, %s385
        %s387 = smul.addr %s380, 16
        %s388 = sadd.s32 %s386, %s387
        %s389 = smul.addr %s388, 8
        %s390 = scalar_lea.vmem %s0, %s389
        %p391 = pneg %p73
        %p392 = pneg %p70
        %s393 = smul.u32 %s31, %s30
        %p394 = scmp.lt.s32.totalorder %s28, 1
        %s395 = scalar_select %p394, %s28, 1
        %p396 = scmp.lt.s32.totalorder %s393, 0
        %s397 = scalar_select %p396, %s393, 0
        %s398 = smul.addr %s395, 2
        %s399 = sadd.s32 %s397, %s398
        %s400 = smul.addr %s399, 8
        %s401 = scalar_lea.vmem %s1, %s400
        %p402 = pneg %p103
        %p403 = pneg %p100
        %p404 = scmp.lt.s32.totalorder %s29, 1
        %s405 = scalar_select %p404, %s29, 1
        %s406 = smul.addr %s405, 8
        %s407 = smul.addr %s406, 8
        %s408 = scalar_lea.vmem %s2, %s407
        %p409 = pneg %p129
        %p410 = pneg %p126
        %p411 = scmp.lt.s32.totalorder %s29, 1
        %s412 = scalar_select %p411, %s29, 1
        %s413 = smul.addr %s412, 8
        %s414 = smul.addr %s413, 8
        %s415 = scalar_lea.vmem %s3, %s414
        %p416 = pneg %p155
        %p417 = pneg %p152
        %p418 = scmp.lt.s32.totalorder %s29, 1
        %s419 = scalar_select %p418, %s29, 1
        %s420 = smul.addr %s419, 4
        %s421 = smul.addr %s420, 8
        %s422 = scalar_lea.vmem %s4, %s421
        %p423 = pneg %p181
        %p424 = pneg %p178
        %p425 = scmp.lt.s32.totalorder %s29, 1
        %s426 = scalar_select %p425, %s29, 1
        %s427 = smul.addr %s426, 4
        %s428 = smul.addr %s427, 8
        %s429 = scalar_lea.vmem %s5, %s428
        %p430 = pneg %p207
        %p431 = pneg %p204
        %p432 = pneg %p228
        %p433 = pneg %p225
        %p434 = pneg %p249
        %p435 = pneg %p246
        %p436 = pneg %p281
        %p437 = pneg %p278
        %s438 = sand.u32 %s268, 1
        %s439 = scalar_lea.sflag [#allocation7], %s438
        %s440 = sand.u32 %s268, 1
        %s441 = smul.addr %s440, 64
        %s442 = scalar_lea.vmem [#allocation6], %s441
        %s443 = smul.u32 4, %s29
        %s444 = smul.u32 2, %s31
        %p445 = scmp.lt.s32.totalorder %s28, 1
        %s446 = scalar_select %p445, %s28, 1
        %p447 = scmp.lt.s32.totalorder %s443, 7
        %s448 = scalar_select %p447, %s443, 7
        %p449 = scmp.lt.s32.totalorder %s444, 1
        %s450 = scalar_select %p449, %s444, 1
        %s451 = smul.addr %s448, 2
        %s452 = sadd.s32 %s450, %s451
        %s453 = smul.addr %s446, 16
        %s454 = sadd.s32 %s452, %s453
        %s455 = smul.addr %s454, 8
        %s456 = scalar_lea.vmem %s0, %s455
        %s457 = smul.u32 4, %s29
        %s458 = smul.u32 2, %s31
        %s459 = smul.u32 %s31, %s30
        %p460 = scmp.lt.s32.totalorder %s28, 1
        %s461 = scalar_select %p460, %s28, 1
        %p462 = scmp.lt.s32.totalorder %s459, 0
        %s463 = scalar_select %p462, %s459, 0
        %s464 = smul.addr %s461, 2
        %s465 = sadd.s32 %s463, %s464
        %s466 = smul.addr %s465, 8
        %s467 = scalar_lea.vmem %s1, %s466
        %s468 = smul.u32 %s31, %s30
        %p469 = scmp.lt.s32.totalorder %s29, 1
        %s470 = scalar_select %p469, %s29, 1
        %s471 = smul.addr %s470, 8
        %s472 = smul.addr %s471, 8
        %s473 = scalar_lea.vmem %s2, %s472
        %p474 = scmp.lt.s32.totalorder %s29, 1
        %s475 = scalar_select %p474, %s29, 1
        %s476 = smul.addr %s475, 8
        %s477 = smul.addr %s476, 8
        %s478 = scalar_lea.vmem %s3, %s477
        %p479 = scmp.lt.s32.totalorder %s29, 1
        %s480 = scalar_select %p479, %s29, 1
        %s481 = smul.addr %s480, 4
        %s482 = smul.addr %s481, 8
        %s483 = scalar_lea.vmem %s4, %s482
        %p484 = scmp.lt.s32.totalorder %s29, 1
        %s485 = scalar_select %p484, %s29, 1
        %s486 = smul.addr %s485, 4
        %s487 = smul.addr %s486, 8
        %s488 = scalar_lea.vmem %s5, %s487
        %s489 = smul.u32 %s31, %s30
        %s490 = smul.u32 4, %s29
        %s491 = smul.u32 2, %s489
        %p492 = scmp.eq.s32.totalorder %s30, 0
        %p493 = scmp.eq.s32.totalorder %s31, 0
        %p494 = pnand %p492, %p493
        %p495 = pneg %p494
        // Predicated region
        $region53: #{tpu_custom_call.1} parent=51 // pred_check
          _
        $region54: #{tpu_custom_call.1} parent=51 // pred_check_branch
          %497 = sbr.rel (%p494) target = $region56
        $region55: #{tpu_custom_call.1} parent=51 // pred_region
          %vm498 = vcmask 7168
          %499 = vst.msk [vmem:[#allocation2] sm:$0xff] %vm498, 0.0
          %500 = vst.msk [vmem:[#allocation2 + $0x8] sm:$0xff] %vm498, 0.0
          %501 = vst.msk [vmem:[#allocation2 + $0x10] sm:$0xff] %vm498, 0.0
          %502 = vst.msk [vmem:[#allocation2 + $0x18] sm:$0xff] %vm498, 0.0
          %503 = vst.msk [vmem:[#allocation3] sm:$0xff] %vm498, 0.0
          %504 = vst.msk [vmem:[#allocation3 + $0x8] sm:$0xff] %vm498, 0.0
          %505 = vst.msk [vmem:[#allocation3 + $0x10] sm:$0xff] %vm498, 0.0
          %506 = vst.msk [vmem:[#allocation3 + $0x18] sm:$0xff] %vm498, 0.0
        $region56: #{tpu_custom_call.1} parent=51 // pred_fallthru
          _
        // Predicated region
        $region57: #{tpu_custom_call.1} parent=51 // pred_check
          %p507 = pneg %p492
        $region58: #{tpu_custom_call.1} parent=51 // pred_check_branch
          %509 = sbr.rel (%p507) target = $region60
        $region59: #{tpu_custom_call.1} parent=51 // pred_region
          %v510 = vld [vmem:[%s456] sm:$0xff]
          %v511 = vld [vmem:[%s456 + $0x8] sm:$0xff]
          %v512 = vld [vmem:[%s456 + $0x10] sm:$0xff]
          %v513 = vld [vmem:[%s456 + $0x18] sm:$0xff]
          %v514 = vld [vmem:[%s456 + $0x20] sm:$0xff]
          %v515 = vld [vmem:[%s456 + $0x28] sm:$0xff]
          %v516 = vld [vmem:[%s456 + $0x30] sm:$0xff]
          %v517 = vld [vmem:[%s456 + $0x38] sm:$0xff]
          %v518 = vld [vmem:[#allocation2] sm:$0xff]
          %v519 = vld [vmem:[#allocation2 + $0x8] sm:$0xff]
          %v520 = vld [vmem:[#allocation2 + $0x10] sm:$0xff]
          %v521 = vld [vmem:[#allocation2 + $0x18] sm:$0xff]
          %v522 = vadd.f32 %v510, %v511
          %523 = vadd.xlane.f32.xlu0 %v522
          %v524 = vpop.xlane.xlu0 %523
          %v525 = vadd.f32 %v512, %v513
          %526 = vadd.xlane.f32.xlu0 %v525
          %v527 = vpop.xlane.xlu0 %526
          %v528 = vadd.f32 %v514, %v515
          %529 = vadd.xlane.f32.xlu0 %v528
          %v530 = vpop.xlane.xlu0 %529
          %v531 = vadd.f32 %v516, %v517
          %532 = vadd.xlane.f32.xlu0 %v531
          %v533 = vpop.xlane.xlu0 %532
          %v534 = vadd.f32 %v518, %v524
          %v535 = vadd.f32 %v519, %v527
          %v536 = vadd.f32 %v520, %v530
          %v537 = vadd.f32 %v521, %v533
          %vm538 = vcmask 7168
          %539 = vst.msk [vmem:[#allocation2] sm:$0xff] %vm538, %v534
          %540 = vst.msk [vmem:[#allocation2 + $0x8] sm:$0xff] %vm538, %v535
          %541 = vst.msk [vmem:[#allocation2 + $0x10] sm:$0xff] %vm538, %v536
          %542 = vst.msk [vmem:[#allocation2 + $0x18] sm:$0xff] %vm538, %v537
          %v543 = vld [vmem:[#allocation3] sm:$0xff]
          %v544 = vld [vmem:[#allocation3 + $0x8] sm:$0xff]
          %v545 = vld [vmem:[#allocation3 + $0x10] sm:$0xff]
          %v546 = vld [vmem:[#allocation3 + $0x18] sm:$0xff]
          %v547 = vmul.f32 %v510, %v510
          %v548 = vmul.f32 %v511, %v511
          %v549 = vmul.f32 %v512, %v512
          %v550 = vmul.f32 %v513, %v513
          %v551 = vmul.f32 %v514, %v514
          %v552 = vmul.f32 %v515, %v515
          %v553 = vmul.f32 %v516, %v516
          %v554 = vmul.f32 %v517, %v517
          %v555 = vadd.f32 %v547, %v548
          %556 = vadd.xlane.f32.xlu0 %v555
          %v557 = vpop.xlane.xlu0 %556
          %v558 = vadd.f32 %v549, %v550
          %559 = vadd.xlane.f32.xlu0 %v558
          %v560 = vpop.xlane.xlu0 %559
          %v561 = vadd.f32 %v551, %v552
          %562 = vadd.xlane.f32.xlu0 %v561
          %v563 = vpop.xlane.xlu0 %562
          %v564 = vadd.f32 %v553, %v554
          %565 = vadd.xlane.f32.xlu0 %v564
          %v566 = vpop.xlane.xlu0 %565
          %v567 = vadd.f32 %v543, %v557
          %v568 = vadd.f32 %v544, %v560
          %v569 = vadd.f32 %v545, %v563
          %v570 = vadd.f32 %v546, %v566
          %571 = vst.msk [vmem:[#allocation3] sm:$0xff] %vm538, %v567
          %572 = vst.msk [vmem:[#allocation3 + $0x8] sm:$0xff] %vm538, %v568
          %573 = vst.msk [vmem:[#allocation3 + $0x10] sm:$0xff] %vm538, %v569
          %574 = vst.msk [vmem:[#allocation3 + $0x18] sm:$0xff] %vm538, %v570
        $region60: #{tpu_custom_call.1} parent=51 // pred_fallthru
          _
        %p575 = scmp.eq.s32.totalorder %s30, 1
        %p576 = pnand %p575, %p493
        %p577 = pneg %p576
        // Predicated region
        $region61: #{tpu_custom_call.1} parent=51 // pred_check
          _
        $region62: #{tpu_custom_call.1} parent=51 // pred_check_branch
          %579 = sbr.rel (%p576) target = $region64
        $region63: #{tpu_custom_call.1} parent=51 // pred_region
          %v580 = vld [vmem:[%s6] sm:$0xff]
          %v581 = vld [vmem:[%s6 + $0x8] sm:$0xff]
          %v582 = vld [vmem:[%s6 + $0x10] sm:$0xff]
          %v583 = vld [vmem:[%s6 + $0x18] sm:$0xff]
          %v584 = vld [vmem:[#allocation2] sm:$0xff]
          %v585 = vld [vmem:[#allocation2 + $0x8] sm:$0xff]
          %v586 = vld [vmem:[#allocation2 + $0x10] sm:$0xff]
          %v587 = vld [vmem:[#allocation2 + $0x18] sm:$0xff]
          %vm588 = vcmask 261120
          %v590 = vsel %vm588, %v580, 0
          %v593 = vsel %vm588, %v581, 0
          %v596 = vsel %vm588, %v582, 0
          %v599 = vsel %vm588, %v583, 0
          %601 = vmatprep.subr.mxu0 0.0
          %602 = vmatpush1.msra.mxu0 %v584
          %603 = vmatprep.subr.mxu0 0.0
          %604 = vmatpush1.msra.mxu0 %v585
          %605 = vmatprep.subr.mxu0 0.0
          %606 = vmatpush1.msra.mxu0 %v586
          %607 = vmatprep.subr.mxu0 0.0
          %608 = vmatpush1.msra.mxu0 %v587
          %609 = vmatprep.subr.mxu0 0.0
          %610 = vmatpush1.msra.mxu0 0.0
          %611 = vmatprep.subr.mxu0 0.0
          %612 = vmatpush1.msra.mxu0 0.0
          %613 = vmatprep.subr.mxu0 0.0
          %614 = vmatpush1.msra.mxu0 0.0
          %615 = vmatprep.subr.mxu0 0.0
          %616 = vmatpush1.msra.mxu0 0.0
          %617 = vmatprep.subr.mxu0 0.0
          %618 = vmatpush1.msra.mxu0 0.0
          %619 = vmatprep.subr.mxu0 0.0
          %620 = vmatpush1.msra.mxu0 0.0
          %621 = vmatprep.subr.mxu0 0.0
          %622 = vmatpush1.msra.mxu0 0.0
          %623 = vmatprep.subr.mxu0 0.0
          %624 = vmatpush1.msra.mxu0 0.0
          %625 = vmatprep.subr.mxu0 0.0
          %626 = vmatpush1.msra.mxu0 0.0
          %627 = vmatprep.subr.mxu0 0.0
          %628 = vmatpush1.msra.mxu0 0.0
          %629 = vmatprep.subr.mxu0 0.0
          %630 = vmatpush1.msra.mxu0 0.0
          %631 = vmatprep.subr.mxu0 0.0
          %632 = vmatpush1.msra.mxu0 0.0
          %633 = vmatprep.subr.mxu0 0.0
          %634 = vmatpush1.msra.mxu0 0.0
          %635 = vmatprep.subr.mxu0 0.0
          %636 = vmatpush1.msra.mxu0 0.0
          %637 = vmatprep.subr.mxu0 0.0
          %638 = vmatpush1.msra.mxu0 0.0
          %639 = vmatprep.subr.mxu0 0.0
          %640 = vmatpush1.msra.mxu0 0.0
          %641 = vmatprep.subr.mxu0 0.0
          %642 = vmatpush1.msra.mxu0 0.0
          %643 = vmatprep.subr.mxu0 0.0
          %644 = vmatpush1.msra.mxu0 0.0
          %645 = vmatprep.subr.mxu0 0.0
          %646 = vmatpush1.msra.mxu0 0.0
          %647 = vmatprep.subr.mxu0 0.0
          %648 = vmatpush1.msra.mxu0 0.0
          %649 = vmatprep.subr.mxu0 0.0
          %650 = vmatpush1.msra.mxu0 0.0
          %651 = vmatprep.subr.mxu0 0.0
          %652 = vmatpush1.msra.mxu0 0.0
          %653 = vmatprep.subr.mxu0 0.0
          %654 = vmatpush1.msra.mxu0 0.0
          %655 = vmatprep.subr.mxu0 0.0
          %656 = vmatpush1.msra.mxu0 0.0
          %657 = vmatprep.subr.mxu0 0.0
          %658 = vmatpush1.msra.mxu0 0.0
          %659 = vmatprep.subr.mxu0 0.0
          %660 = vmatpush1.msra.mxu0 0.0
          %661 = vmatprep.subr.mxu0 0.0
          %662 = vmatpush1.msra.mxu0 0.0
          %663 = vmatprep.subr.mxu0 0.0
          %664 = vmatpush1.msra.mxu0 0.0
          %665 = vmatprep.mubr.f32.mxu0 0.0
          %666 = vmatmul.mubr.f32.gmra.mrb[0].mxu0 %v590
          %v667 = vpop.f32.mrb[0].mxu0
          %v668 = vadd.f32 0.0, %v667
          %v669 = vpop.f32.mrb[0].mxu0
          %670 = vmatprep.mubr.f32.mxu0 0.0
          %671 = vmatmul.mubr.f32.gmra.mrb[0].mxu0 %v593
          %v672 = vpop.f32.mrb[0].mxu0
          %v673 = vadd.f32 0.0, %v672
          %v674 = vpop.f32.mrb[0].mxu0
          %675 = vmatprep.mubr.f32.mxu0 0.0
          %676 = vmatmul.mubr.f32.gmra.mrb[0].mxu0 %v596
          %v677 = vpop.f32.mrb[0].mxu0
          %v678 = vadd.f32 0.0, %v677
          %v679 = vpop.f32.mrb[0].mxu0
          %680 = vmatprep.mubr.f32.mxu0 0.0
          %681 = vmatmul.mubr.f32.gmra.mrb[0].mxu0 %v599
          %v682 = vpop.f32.mrb[0].mxu0
          %v683 = vadd.f32 0.0, %v682
          %v684 = vpop.f32.mrb[0].mxu0
          %685 = vdwg.mxu0
          %v686 = vld [vmem:[#allocation3] sm:$0xff]
          %v687 = vld [vmem:[#allocation3 + $0x8] sm:$0xff]
          %v688 = vld [vmem:[#allocation3 + $0x10] sm:$0xff]
          %v689 = vld [vmem:[#allocation3 + $0x18] sm:$0xff]
          %690 = vmatprep.subr.mxu0 0.0
          %691 = vmatpush1.msra.mxu0 %v686
          %692 = vmatprep.subr.mxu0 0.0
          %693 = vmatpush1.msra.mxu0 %v687
          %694 = vmatprep.subr.mxu0 0.0
          %695 = vmatpush1.msra.mxu0 %v688
          %696 = vmatprep.subr.mxu0 0.0
          %697 = vmatpush1.msra.mxu0 %v689
          %698 = vmatprep.subr.mxu0 0.0
          %699 = vmatpush1.msra.mxu0 0.0
          %700 = vmatprep.subr.mxu0 0.0
          %701 = vmatpush1.msra.mxu0 0.0
          %702 = vmatprep.subr.mxu0 0.0
          %703 = vmatpush1.msra.mxu0 0.0
          %704 = vmatprep.subr.mxu0 0.0
          %705 = vmatpush1.msra.mxu0 0.0
          %706 = vmatprep.subr.mxu0 0.0
          %707 = vmatpush1.msra.mxu0 0.0
          %708 = vmatprep.subr.mxu0 0.0
          %709 = vmatpush1.msra.mxu0 0.0
          %710 = vmatprep.subr.mxu0 0.0
          %711 = vmatpush1.msra.mxu0 0.0
          %712 = vmatprep.subr.mxu0 0.0
          %713 = vmatpush1.msra.mxu0 0.0
          %714 = vmatprep.subr.mxu0 0.0
          %715 = vmatpush1.msra.mxu0 0.0
          %716 = vmatprep.subr.mxu0 0.0
          %717 = vmatpush1.msra.mxu0 0.0
          %718 = vmatprep.subr.mxu0 0.0
          %719 = vmatpush1.msra.mxu0 0.0
          %720 = vmatprep.subr.mxu0 0.0
          %721 = vmatpush1.msra.mxu0 0.0
          %722 = vmatprep.subr.mxu0 0.0
          %723 = vmatpush1.msra.mxu0 0.0
          %724 = vmatprep.subr.mxu0 0.0
          %725 = vmatpush1.msra.mxu0 0.0
          %726 = vmatprep.subr.mxu0 0.0
          %727 = vmatpush1.msra.mxu0 0.0
          %728 = vmatprep.subr.mxu0 0.0
          %729 = vmatpush1.msra.mxu0 0.0
          %730 = vmatprep.subr.mxu0 0.0
          %731 = vmatpush1.msra.mxu0 0.0
          %732 = vmatprep.subr.mxu0 0.0
          %733 = vmatpush1.msra.mxu0 0.0
          %734 = vmatprep.subr.mxu0 0.0
          %735 = vmatpush1.msra.mxu0 0.0
          %736 = vmatprep.subr.mxu0 0.0
          %737 = vmatpush1.msra.mxu0 0.0
          %738 = vmatprep.subr.mxu0 0.0
          %739 = vmatpush1.msra.mxu0 0.0
          %740 = vmatprep.subr.mxu0 0.0
          %741 = vmatpush1.msra.mxu0 0.0
          %742 = vmatprep.subr.mxu0 0.0
          %743 = vmatpush1.msra.mxu0 0.0
          %744 = vmatprep.subr.mxu0 0.0
          %745 = vmatpush1.msra.mxu0 0.0
          %746 = vmatprep.subr.mxu0 0.0
          %747 = vmatpush1.msra.mxu0 0.0
          %748 = vmatprep.subr.mxu0 0.0
          %749 = vmatpush1.msra.mxu0 0.0
          %750 = vmatprep.subr.mxu0 0.0
          %751 = vmatpush1.msra.mxu0 0.0
          %752 = vmatprep.subr.mxu0 0.0
          %753 = vmatpush1.msra.mxu0 0.0
          %754 = vmatprep.mubr.f32.mxu0 0.0
          %755 = vmatmul.mubr.f32.gmra.mrb[0].mxu0 %v590
          %v756 = vpop.f32.mrb[0].mxu0
          %v757 = vadd.f32 0.0, %v756
          %v758 = vpop.f32.mrb[0].mxu0
          %759 = vmatprep.mubr.f32.mxu0 0.0
          %760 = vmatmul.mubr.f32.gmra.mrb[0].mxu0 %v593
          %v761 = vpop.f32.mrb[0].mxu0
          %v762 = vadd.f32 0.0, %v761
          %v763 = vpop.f32.mrb[0].mxu0
          %764 = vmatprep.mubr.f32.mxu0 0.0
          %765 = vmatmul.mubr.f32.gmra.mrb[0].mxu0 %v596
          %v766 = vpop.f32.mrb[0].mxu0
          %v767 = vadd.f32 0.0, %v766
          %v768 = vpop.f32.mrb[0].mxu0
          %769 = vmatprep.mubr.f32.mxu0 0.0
          %770 = vmatmul.mubr.f32.gmra.mrb[0].mxu0 %v599
          %v771 = vpop.f32.mrb[0].mxu0
          %v772 = vadd.f32 0.0, %v771
          %v773 = vpop.f32.mrb[0].mxu0
          %774 = vdwg.mxu0
          %v775 = vmul.f32 %v668, %v668
          %v776 = vmul.f32 %v673, %v673
          %v777 = vmul.f32 %v678, %v678
          %v778 = vmul.f32 %v683, %v683
          %v779 = vsub.f32 %v757, %v775
          %v780 = vsub.f32 %v762, %v776
          %v781 = vsub.f32 %v767, %v777
          %v782 = vsub.f32 %v772, %v778
          %v783 = vadd.f32 %v779, 1e-06
          %v784 = vadd.f32 %v780, 1e-06
          %v785 = vadd.f32 %v781, 1e-06
          %v786 = vadd.f32 %v782, 1e-06
          %v787 = vrsqrt.pop %v783
          %v788 = vrsqrt.pop %v784
          %v789 = vrsqrt.pop %v785
          %v790 = vrsqrt.pop %v786
          %v791 = vld [vmem:[%s483] sm:$0xff]
          %v792 = vld [vmem:[%s483 + $0x8] sm:$0xff]
          %v793 = vld [vmem:[%s483 + $0x10] sm:$0xff]
          %v794 = vld [vmem:[%s483 + $0x18] sm:$0xff]
          %v795 = vmul.f32 %v787, %v791
          %v796 = vmul.f32 %v788, %v792
          %v797 = vmul.f32 %v789, %v793
          %v798 = vmul.f32 %v790, %v794
          %vm799 = vcmask 7168
          %800 = vst.msk [vmem:[#allocation4] sm:$0xff] %vm799, %v795
          %801 = vst.msk [vmem:[#allocation4 + $0x8] sm:$0xff] %vm799, %v796
          %802 = vst.msk [vmem:[#allocation4 + $0x10] sm:$0xff] %vm799, %v797
          %803 = vst.msk [vmem:[#allocation4 + $0x18] sm:$0xff] %vm799, %v798
          %v804 = vld [vmem:[%s488] sm:$0xff]
          %v805 = vld [vmem:[%s488 + $0x8] sm:$0xff]
          %v806 = vld [vmem:[%s488 + $0x10] sm:$0xff]
          %v807 = vld [vmem:[%s488 + $0x18] sm:$0xff]
          %v808 = vmul.f32 %v668, %v795
          %v809 = vmul.f32 %v673, %v796
          %v810 = vmul.f32 %v678, %v797
          %v811 = vmul.f32 %v683, %v798
          %v812 = vsub.f32 %v804, %v808
          %v813 = vsub.f32 %v805, %v809
          %v814 = vsub.f32 %v806, %v810
          %v815 = vsub.f32 %v807, %v811
          %816 = vst.msk [vmem:[#allocation5] sm:$0xff] %vm799, %v812
          %817 = vst.msk [vmem:[#allocation5 + $0x8] sm:$0xff] %vm799, %v813
          %818 = vst.msk [vmem:[#allocation5 + $0x10] sm:$0xff] %vm799, %v814
          %819 = vst.msk [vmem:[#allocation5 + $0x18] sm:$0xff] %vm799, %v815
        $region64: #{tpu_custom_call.1} parent=51 // pred_fallthru
          _
        // Predicated region
        $region65: #{tpu_custom_call.1} parent=51 // pred_check
          %p820 = pneg %p575
        $region66: #{tpu_custom_call.1} parent=51 // pred_check_branch
          %822 = sbr.rel (%p820) target = $region68
        $region67: #{tpu_custom_call.1} parent=51 // pred_region
          %v823 = vld [vmem:[%s467] sm:$0xff]
          %v824 = vld [vmem:[%s467 + $0x8] sm:$0xff]
          %v825 = vld [vmem:[%s473] sm:$0xff]
          %v826 = vld [vmem:[%s473 + $0x8] sm:$0xff]
          %v827 = vld [vmem:[%s473 + $0x10] sm:$0xff]
          %v828 = vld [vmem:[%s473 + $0x18] sm:$0xff]
          %v829 = vld [vmem:[%s473 + $0x20] sm:$0xff]
          %v830 = vld [vmem:[%s473 + $0x28] sm:$0xff]
          %v831 = vld [vmem:[%s473 + $0x30] sm:$0xff]
          %v832 = vld [vmem:[%s473 + $0x38] sm:$0xff]
          %v833 = vld [vmem:[%s478] sm:$0xff]
          %v834 = vld [vmem:[%s478 + $0x8] sm:$0xff]
          %v835 = vld [vmem:[%s478 + $0x10] sm:$0xff]
          %v836 = vld [vmem:[%s478 + $0x18] sm:$0xff]
          %v837 = vld [vmem:[%s478 + $0x20] sm:$0xff]
          %v838 = vld [vmem:[%s478 + $0x28] sm:$0xff]
          %v839 = vld [vmem:[%s478 + $0x30] sm:$0xff]
          %v840 = vld [vmem:[%s478 + $0x38] sm:$0xff]
          %842 = vset.pattern.permute.xlu0 0
          %843 = vperm.xlu0 %842, %v833
          %v844 = vpop.permute.xlu0 %843
          %847 = vset.pattern.permute.xlu0 0
          %848 = vperm.xlu0 %847, %v834
          %v849 = vpop.permute.xlu0 %848
          %852 = vset.pattern.permute.xlu0 0
          %853 = vperm.xlu0 %852, %v835
          %v854 = vpop.permute.xlu0 %853
          %857 = vset.pattern.permute.xlu0 0
          %858 = vperm.xlu0 %857, %v836
          %v859 = vpop.permute.xlu0 %858
          %862 = vset.pattern.permute.xlu0 0
          %863 = vperm.xlu0 %862, %v837
          %v864 = vpop.permute.xlu0 %863
          %867 = vset.pattern.permute.xlu0 0
          %868 = vperm.xlu0 %867, %v838
          %v869 = vpop.permute.xlu0 %868
          %872 = vset.pattern.permute.xlu0 0
          %873 = vperm.xlu0 %872, %v839
          %v874 = vpop.permute.xlu0 %873
          %877 = vset.pattern.permute.xlu0 0
          %878 = vperm.xlu0 %877, %v840
          %v879 = vpop.permute.xlu0 %878
          %vm881 = vcmask 130048
          %v883 = vsel %vm881, %v825, 0
          %v886 = vsel %vm881, %v826, 0
          %v889 = vsel %vm881, %v827, 0
          %v892 = vsel %vm881, %v828, 0
          %v895 = vsel %vm881, %v829, 0
          %v898 = vsel %vm881, %v830, 0
          %v901 = vsel %vm881, %v831, 0
          %v904 = vsel %vm881, %v832, 0
          %906 = vmatprep.subr.mxu0 0.0
          %907 = vmatpush1.msra.mxu0 %v823
          %908 = vmatprep.subr.mxu0 0.0
          %909 = vmatpush1.msra.mxu0 %v824
          %910 = vmatprep.subr.mxu0 0.0
          %911 = vmatpush1.msra.mxu0 0.0
          %912 = vmatprep.subr.mxu0 0.0
          %913 = vmatpush1.msra.mxu0 0.0
          %914 = vmatprep.subr.mxu0 0.0
          %915 = vmatpush1.msra.mxu0 0.0
          %916 = vmatprep.subr.mxu0 0.0
          %917 = vmatpush1.msra.mxu0 0.0
          %918 = vmatprep.subr.mxu0 0.0
          %919 = vmatpush1.msra.mxu0 0.0
          %920 = vmatprep.subr.mxu0 0.0
          %921 = vmatpush1.msra.mxu0 0.0
          %922 = vmatprep.subr.mxu0 0.0
          %923 = vmatpush1.msra.mxu0 0.0
          %924 = vmatprep.subr.mxu0 0.0
          %925 = vmatpush1.msra.mxu0 0.0
          %926 = vmatprep.subr.mxu0 0.0
          %927 = vmatpush1.msra.mxu0 0.0
          %928 = vmatprep.subr.mxu0 0.0
          %929 = vmatpush1.msra.mxu0 0.0
          %930 = vmatprep.subr.mxu0 0.0
          %931 = vmatpush1.msra.mxu0 0.0
          %932 = vmatprep.subr.mxu0 0.0
          %933 = vmatpush1.msra.mxu0 0.0
          %934 = vmatprep.subr.mxu0 0.0
          %935 = vmatpush1.msra.mxu0 0.0
          %936 = vmatprep.subr.mxu0 0.0
          %937 = vmatpush1.msra.mxu0 0.0
          %938 = vmatprep.subr.mxu0 0.0
          %939 = vmatpush1.msra.mxu0 0.0
          %940 = vmatprep.subr.mxu0 0.0
          %941 = vmatpush1.msra.mxu0 0.0
          %942 = vmatprep.subr.mxu0 0.0
          %943 = vmatpush1.msra.mxu0 0.0
          %944 = vmatprep.subr.mxu0 0.0
          %945 = vmatpush1.msra.mxu0 0.0
          %946 = vmatprep.subr.mxu0 0.0
          %947 = vmatpush1.msra.mxu0 0.0
          %948 = vmatprep.subr.mxu0 0.0
          %949 = vmatpush1.msra.mxu0 0.0
          %950 = vmatprep.subr.mxu0 0.0
          %951 = vmatpush1.msra.mxu0 0.0
          %952 = vmatprep.subr.mxu0 0.0
          %953 = vmatpush1.msra.mxu0 0.0
          %954 = vmatprep.subr.mxu0 0.0
          %955 = vmatpush1.msra.mxu0 0.0
          %956 = vmatprep.subr.mxu0 0.0
          %957 = vmatpush1.msra.mxu0 0.0
          %958 = vmatprep.subr.mxu0 0.0
          %959 = vmatpush1.msra.mxu0 0.0
          %960 = vmatprep.subr.mxu0 0.0
          %961 = vmatpush1.msra.mxu0 0.0
          %962 = vmatprep.subr.mxu0 0.0
          %963 = vmatpush1.msra.mxu0 0.0
          %964 = vmatprep.subr.mxu0 0.0
          %965 = vmatpush1.msra.mxu0 0.0
          %966 = vmatprep.subr.mxu0 0.0
          %967 = vmatpush1.msra.mxu0 0.0
          %968 = vmatprep.subr.mxu0 0.0
          %969 = vmatpush1.msra.mxu0 0.0
          %970 = vmatprep.mubr.f32.mxu0 0.0
          %971 = vmatmul.mubr.f32.gmra.mrb[0].mxu0 %v883
          %v972 = vpop.f32.mrb[0].mxu0
          %v973 = vadd.f32 %v844, %v972
          %v974 = vpop.f32.mrb[0].mxu0
          %975 = vmatprep.mubr.f32.mxu0 0.0
          %976 = vmatmul.mubr.f32.gmra.mrb[0].mxu0 %v886
          %v977 = vpop.f32.mrb[0].mxu0
          %v978 = vadd.f32 %v849, %v977
          %v979 = vpop.f32.mrb[0].mxu0
          %980 = vmatprep.mubr.f32.mxu0 0.0
          %981 = vmatmul.mubr.f32.gmra.mrb[0].mxu0 %v889
          %v982 = vpop.f32.mrb[0].mxu0
          %v983 = vadd.f32 %v854, %v982
          %v984 = vpop.f32.mrb[0].mxu0
          %985 = vmatprep.mubr.f32.mxu0 0.0
          %986 = vmatmul.mubr.f32.gmra.mrb[0].mxu0 %v892
          %v987 = vpop.f32.mrb[0].mxu0
          %v988 = vadd.f32 %v859, %v987
          %v989 = vpop.f32.mrb[0].mxu0
          %990 = vmatprep.mubr.f32.mxu0 0.0
          %991 = vmatmul.mubr.f32.gmra.mrb[0].mxu0 %v895
          %v992 = vpop.f32.mrb[0].mxu0
          %v993 = vadd.f32 %v864, %v992
          %v994 = vpop.f32.mrb[0].mxu0
          %995 = vmatprep.mubr.f32.mxu0 0.0
          %996 = vmatmul.mubr.f32.gmra.mrb[0].mxu0 %v898
          %v997 = vpop.f32.mrb[0].mxu0
          %v998 = vadd.f32 %v869, %v997
          %v999 = vpop.f32.mrb[0].mxu0
          %1000 = vmatprep.mubr.f32.mxu0 0.0
          %1001 = vmatmul.mubr.f32.gmra.mrb[0].mxu0 %v901
          %v1002 = vpop.f32.mrb[0].mxu0
          %v1003 = vadd.f32 %v874, %v1002
          %v1004 = vpop.f32.mrb[0].mxu0
          %1005 = vmatprep.mubr.f32.mxu0 0.0
          %1006 = vmatmul.mubr.f32.gmra.mrb[0].mxu0 %v904
          %v1007 = vpop.f32.mrb[0].mxu0
          %v1008 = vadd.f32 %v879, %v1007
          %v1009 = vpop.f32.mrb[0].mxu0
          %1010 = vdwg.mxu0
          %v1011 = vld [vmem:[#allocation4] sm:$0xff]
          %v1012 = vld [vmem:[#allocation4 + $0x8] sm:$0xff]
          %v1013 = vld [vmem:[#allocation4 + $0x10] sm:$0xff]
          %v1014 = vld [vmem:[#allocation4 + $0x18] sm:$0xff]
          %v1015 = vld [vmem:[#allocation5] sm:$0xff]
          %v1016 = vld [vmem:[#allocation5 + $0x8] sm:$0xff]
          %v1017 = vld [vmem:[#allocation5 + $0x10] sm:$0xff]
          %v1018 = vld [vmem:[#allocation5 + $0x18] sm:$0xff]
          %1020 = vset.pattern.permute.xlu0 0
          %1021 = vperm.xlu0 %1020, %v1011
          %v1022 = vpop.permute.xlu0 %1021
          %1025 = vset.pattern.permute.xlu0 0
          %1026 = vperm.xlu0 %1025, %v1012
          %v1027 = vpop.permute.xlu0 %1026
          %1030 = vset.pattern.permute.xlu0 0
          %1031 = vperm.xlu0 %1030, %v1013
          %v1032 = vpop.permute.xlu0 %1031
          %1035 = vset.pattern.permute.xlu0 0
          %1036 = vperm.xlu0 %1035, %v1014
          %v1037 = vpop.permute.xlu0 %1036
          %v1039 = vmul.f32 %v1022, %v973
          %v1040 = vmul.f32 %v1027, %v978
          %v1041 = vmul.f32 %v1032, %v983
          %v1042 = vmul.f32 %v1037, %v988
          %1044 = vset.pattern.permute.xlu0 0
          %1045 = vperm.xlu0 %1044, %v1015
          %v1046 = vpop.permute.xlu0 %1045
          %1049 = vset.pattern.permute.xlu0 0
          %1050 = vperm.xlu0 %1049, %v1016
          %v1051 = vpop.permute.xlu0 %1050
          %1054 = vset.pattern.permute.xlu0 0
          %1055 = vperm.xlu0 %1054, %v1017
          %v1056 = vpop.permute.xlu0 %1055
          %1059 = vset.pattern.permute.xlu0 0
          %1060 = vperm.xlu0 %1059, %v1018
          %v1061 = vpop.permute.xlu0 %1060
          %v1063 = vmul.f32 %v1046, %v973
          %v1064 = vmul.f32 %v1051, %v978
          %v1065 = vmul.f32 %v1056, %v983
          %v1066 = vmul.f32 %v1061, %v988
          %v1067 = vadd.f32 %v1063, %v993
          %v1068 = vadd.f32 %v1064, %v998
          %v1069 = vadd.f32 %v1065, %v1003
          %v1070 = vadd.f32 %v1066, %v1008
          %v1071 = vld [vmem:[%s7] sm:$0xff]
          %vm1072 = vcmask 64512
          %v1074 = vsel %vm1072, %v1039, 0
          %v1077 = vsel %vm1072, %v1040, 0
          %v1080 = vsel %vm1072, %v1041, 0
          %v1083 = vsel %vm1072, %v1042, 0
          %1085 = vmatprep.subr.mxu0 0.0
          %1086 = vmatpush1.msra.mxu0 %v1071
          %1087 = vmatprep.subr.mxu0 0.0
          %1088 = vmatpush1.msra.mxu0 0.0
          %1089 = vmatprep.subr.mxu0 0.0
          %1090 = vmatpush1.msra.mxu0 0.0
          %1091 = vmatprep.subr.mxu0 0.0
          %1092 = vmatpush1.msra.mxu0 0.0
          %1093 = vmatprep.subr.mxu0 0.0
          %1094 = vmatpush1.msra.mxu0 0.0
          %1095 = vmatprep.subr.mxu0 0.0
          %1096 = vmatpush1.msra.mxu0 0.0
          %1097 = vmatprep.subr.mxu0 0.0
          %1098 = vmatpush1.msra.mxu0 0.0
          %1099 = vmatprep.subr.mxu0 0.0
          %1100 = vmatpush1.msra.mxu0 0.0
          %1101 = vmatprep.subr.mxu0 0.0
          %1102 = vmatpush1.msra.mxu0 0.0
          %1103 = vmatprep.subr.mxu0 0.0
          %1104 = vmatpush1.msra.mxu0 0.0
          %1105 = vmatprep.subr.mxu0 0.0
          %1106 = vmatpush1.msra.mxu0 0.0
          %1107 = vmatprep.subr.mxu0 0.0
          %1108 = vmatpush1.msra.mxu0 0.0
          %1109 = vmatprep.subr.mxu0 0.0
          %1110 = vmatpush1.msra.mxu0 0.0
          %1111 = vmatprep.subr.mxu0 0.0
          %1112 = vmatpush1.msra.mxu0 0.0
          %1113 = vmatprep.subr.mxu0 0.0
          %1114 = vmatpush1.msra.mxu0 0.0
          %1115 = vmatprep.subr.mxu0 0.0
          %1116 = vmatpush1.msra.mxu0 0.0
          %1117 = vmatprep.subr.mxu0 0.0
          %1118 = vmatpush1.msra.mxu0 0.0
          %1119 = vmatprep.subr.mxu0 0.0
          %1120 = vmatpush1.msra.mxu0 0.0
          %1121 = vmatprep.subr.mxu0 0.0
          %1122 = vmatpush1.msra.mxu0 0.0
          %1123 = vmatprep.subr.mxu0 0.0
          %1124 = vmatpush1.msra.mxu0 0.0
          %1125 = vmatprep.subr.mxu0 0.0
          %1126 = vmatpush1.msra.mxu0 0.0
          %1127 = vmatprep.subr.mxu0 0.0
          %1128 = vmatpush1.msra.mxu0 0.0
          %1129 = vmatprep.subr.mxu0 0.0
          %1130 = vmatpush1.msra.mxu0 0.0
          %1131 = vmatprep.subr.mxu0 0.0
          %1132 = vmatpush1.msra.mxu0 0.0
          %1133 = vmatprep.subr.mxu0 0.0
          %1134 = vmatpush1.msra.mxu0 0.0
          %1135 = vmatprep.subr.mxu0 0.0
          %1136 = vmatpush1.msra.mxu0 0.0
          %1137 = vmatprep.subr.mxu0 0.0
          %1138 = vmatpush1.msra.mxu0 0.0
          %1139 = vmatprep.subr.mxu0 0.0
          %1140 = vmatpush1.msra.mxu0 0.0
          %1141 = vmatprep.subr.mxu0 0.0
          %1142 = vmatpush1.msra.mxu0 0.0
          %1143 = vmatprep.subr.mxu0 0.0
          %1144 = vmatpush1.msra.mxu0 0.0
          %1145 = vmatprep.subr.mxu0 0.0
          %1146 = vmatpush1.msra.mxu0 0.0
          %1147 = vmatprep.subr.mxu0 0.0
          %1148 = vmatpush1.msra.mxu0 0.0
          %1149 = vmatprep.mubr.f32.mxu0 0.0
          %1150 = vmatmul.mubr.f32.gmra.mrb[0].mxu0 %v1074
          %v1151 = vpop.f32.mrb[0].mxu0
          %v1152 = vadd.f32 0.0, %v1151
          %v1153 = vpop.f32.mrb[0].mxu0
          %1154 = vmatprep.mubr.f32.mxu0 0.0
          %1155 = vmatmul.mubr.f32.gmra.mrb[0].mxu0 %v1077
          %v1156 = vpop.f32.mrb[0].mxu0
          %v1157 = vadd.f32 0.0, %v1156
          %v1158 = vpop.f32.mrb[0].mxu0
          %1159 = vmatprep.mubr.f32.mxu0 0.0
          %1160 = vmatmul.mubr.f32.gmra.mrb[0].mxu0 %v1080
          %v1161 = vpop.f32.mrb[0].mxu0
          %v1162 = vadd.f32 0.0, %v1161
          %v1163 = vpop.f32.mrb[0].mxu0
          %1164 = vmatprep.mubr.f32.mxu0 0.0
          %1165 = vmatmul.mubr.f32.gmra.mrb[0].mxu0 %v1083
          %v1166 = vpop.f32.mrb[0].mxu0
          %v1167 = vadd.f32 0.0, %v1166
          %v1168 = vpop.f32.mrb[0].mxu0
          %1169 = vdwg.mxu0
          %v1171 = vsel %vm1072, %v1067, 0
          %v1174 = vsel %vm1072, %v1068, 0
          %v1177 = vsel %vm1072, %v1069, 0
          %v1180 = vsel %vm1072, %v1070, 0
          %1182 = vmatprep.subr.mxu0 0.0
          %1183 = vmatpush1.msra.mxu0 %v1071
          %1184 = vmatprep.subr.mxu0 0.0
          %1185 = vmatpush1.msra.mxu0 0.0
          %1186 = vmatprep.subr.mxu0 0.0
          %1187 = vmatpush1.msra.mxu0 0.0
          %1188 = vmatprep.subr.mxu0 0.0
          %1189 = vmatpush1.msra.mxu0 0.0
          %1190 = vmatprep.subr.mxu0 0.0
          %1191 = vmatpush1.msra.mxu0 0.0
          %1192 = vmatprep.subr.mxu0 0.0
          %1193 = vmatpush1.msra.mxu0 0.0
          %1194 = vmatprep.subr.mxu0 0.0
          %1195 = vmatpush1.msra.mxu0 0.0
          %1196 = vmatprep.subr.mxu0 0.0
          %1197 = vmatpush1.msra.mxu0 0.0
          %1198 = vmatprep.subr.mxu0 0.0
          %1199 = vmatpush1.msra.mxu0 0.0
          %1200 = vmatprep.subr.mxu0 0.0
          %1201 = vmatpush1.msra.mxu0 0.0
          %1202 = vmatprep.subr.mxu0 0.0
          %1203 = vmatpush1.msra.mxu0 0.0
          %1204 = vmatprep.subr.mxu0 0.0
          %1205 = vmatpush1.msra.mxu0 0.0
          %1206 = vmatprep.subr.mxu0 0.0
          %1207 = vmatpush1.msra.mxu0 0.0
          %1208 = vmatprep.subr.mxu0 0.0
          %1209 = vmatpush1.msra.mxu0 0.0
          %1210 = vmatprep.subr.mxu0 0.0
          %1211 = vmatpush1.msra.mxu0 0.0
          %1212 = vmatprep.subr.mxu0 0.0
          %1213 = vmatpush1.msra.mxu0 0.0
          %1214 = vmatprep.subr.mxu0 0.0
          %1215 = vmatpush1.msra.mxu0 0.0
          %1216 = vmatprep.subr.mxu0 0.0
          %1217 = vmatpush1.msra.mxu0 0.0
          %1218 = vmatprep.subr.mxu0 0.0
          %1219 = vmatpush1.msra.mxu0 0.0
          %1220 = vmatprep.subr.mxu0 0.0
          %1221 = vmatpush1.msra.mxu0 0.0
          %1222 = vmatprep.subr.mxu0 0.0
          %1223 = vmatpush1.msra.mxu0 0.0
          %1224 = vmatprep.subr.mxu0 0.0
          %1225 = vmatpush1.msra.mxu0 0.0
          %1226 = vmatprep.subr.mxu0 0.0
          %1227 = vmatpush1.msra.mxu0 0.0
          %1228 = vmatprep.subr.mxu0 0.0
          %1229 = vmatpush1.msra.mxu0 0.0
          %1230 = vmatprep.subr.mxu0 0.0
          %1231 = vmatpush1.msra.mxu0 0.0
          %1232 = vmatprep.subr.mxu0 0.0
          %1233 = vmatpush1.msra.mxu0 0.0
          %1234 = vmatprep.subr.mxu0 0.0
          %1235 = vmatpush1.msra.mxu0 0.0
          %1236 = vmatprep.subr.mxu0 0.0
          %1237 = vmatpush1.msra.mxu0 0.0
          %1238 = vmatprep.subr.mxu0 0.0
          %1239 = vmatpush1.msra.mxu0 0.0
          %1240 = vmatprep.subr.mxu0 0.0
          %1241 = vmatpush1.msra.mxu0 0.0
          %1242 = vmatprep.subr.mxu0 0.0
          %1243 = vmatpush1.msra.mxu0 0.0
          %1244 = vmatprep.subr.mxu0 0.0
          %1245 = vmatpush1.msra.mxu0 0.0
          %1246 = vmatprep.mubr.f32.mxu0 0.0
          %1247 = vmatmul.mubr.f32.gmra.mrb[0].mxu0 %v1171
          %v1248 = vpop.f32.mrb[0].mxu0
          %v1249 = vadd.f32 0.0, %v1248
          %v1250 = vpop.f32.mrb[0].mxu0
          %1251 = vmatprep.mubr.f32.mxu0 0.0
          %1252 = vmatmul.mubr.f32.gmra.mrb[0].mxu0 %v1174
          %v1253 = vpop.f32.mrb[0].mxu0
          %v1254 = vadd.f32 0.0, %v1253
          %v1255 = vpop.f32.mrb[0].mxu0
          %1256 = vmatprep.mubr.f32.mxu0 0.0
          %1257 = vmatmul.mubr.f32.gmra.mrb[0].mxu0 %v1177
          %v1258 = vpop.f32.mrb[0].mxu0
          %v1259 = vadd.f32 0.0, %v1258
          %v1260 = vpop.f32.mrb[0].mxu0
          %1261 = vmatprep.mubr.f32.mxu0 0.0
          %1262 = vmatmul.mubr.f32.gmra.mrb[0].mxu0 %v1180
          %v1263 = vpop.f32.mrb[0].mxu0
          %v1264 = vadd.f32 0.0, %v1263
          %v1265 = vpop.f32.mrb[0].mxu0
          %1266 = vdwg.mxu0
          %1271 = vrot.lane.b32.xlu0 %v1152, 16
          %v1272 = vpop.permute.xlu0 %1271
          %1273 = vrot.lane.b32.xlu0 %v1157, 16
          %v1274 = vpop.permute.xlu0 %1273
          %1275 = vrot.lane.b32.xlu0 %v1162, 16
          %v1276 = vpop.permute.xlu0 %1275
          %1277 = vrot.lane.b32.xlu0 %v1167, 16
          %v1278 = vpop.permute.xlu0 %1277
          %v1283 = vsel %vm881, %v1152, %v1272
          %v1284 = vsel %vm881, %v1157, %v1274
          %v1285 = vsel %vm881, %v1162, %v1276
          %v1286 = vsel %vm881, %v1167, %v1278
          %1291 = vrot.lane.b32.xlu0 %v1249, 16
          %v1292 = vpop.permute.xlu0 %1291
          %1293 = vrot.lane.b32.xlu0 %v1254, 16
          %v1294 = vpop.permute.xlu0 %1293
          %1295 = vrot.lane.b32.xlu0 %v1259, 16
          %v1296 = vpop.permute.xlu0 %1295
          %1297 = vrot.lane.b32.xlu0 %v1264, 16
          %v1298 = vpop.permute.xlu0 %1297
          %v1303 = vsel %vm881, %v1249, %v1292
          %v1304 = vsel %vm881, %v1254, %v1294
          %v1305 = vsel %vm881, %v1259, %v1296
          %v1306 = vsel %vm881, %v1264, %v1298
          %v1307 = vld [vmem:[%s456] sm:$0xff]
          %v1308 = vld [vmem:[%s456 + $0x10] sm:$0xff]
          %v1309 = vld [vmem:[%s456 + $0x20] sm:$0xff]
          %v1310 = vld [vmem:[%s456 + $0x30] sm:$0xff]
          %v1311 = vmul.f32 %v1307, %v1283
          %v1312 = vmul.f32 %v1308, %v1284
          %v1313 = vmul.f32 %v1309, %v1285
          %v1314 = vmul.f32 %v1310, %v1286
          %v1315 = vadd.f32 %v1311, %v1303
          %v1316 = vadd.f32 %v1312, %v1304
          %v1317 = vadd.f32 %v1313, %v1305
          %v1318 = vadd.f32 %v1314, %v1306
          %vm1319 = vcmask 261120
          %1320 = vst.msk [vmem:[%s442] sm:$0xff] %vm1319, %v1315
          %1321 = vst.msk [vmem:[%s442 + $0x10] sm:$0xff] %vm1319, %v1316
          %1322 = vst.msk [vmem:[%s442 + $0x20] sm:$0xff] %vm1319, %v1317
          %1323 = vst.msk [vmem:[%s442 + $0x30] sm:$0xff] %vm1319, %v1318
          %1324 = vrot.lane.b32.xlu0 %v1039, 120
          %v1325 = vpop.permute.xlu0 %1324
          %1326 = vrot.lane.b32.xlu0 %v1040, 120
          %v1327 = vpop.permute.xlu0 %1326
          %1328 = vrot.lane.b32.xlu0 %v1041, 120
          %v1329 = vpop.permute.xlu0 %1328
          %1330 = vrot.lane.b32.xlu0 %v1042, 120
          %v1331 = vpop.permute.xlu0 %1330
          %v1332 = vsel %vm1072, %v1325, 0
          %v1334 = vsel %vm1072, %v1327, 0
          %v1336 = vsel %vm1072, %v1329, 0
          %v1338 = vsel %vm1072, %v1331, 0
          %1340 = vmatprep.subr.mxu0 0.0
          %1341 = vmatpush1.msra.mxu0 %v1071
          %1342 = vmatprep.subr.mxu0 0.0
          %1343 = vmatpush1.msra.mxu0 0.0
          %1344 = vmatprep.subr.mxu0 0.0
          %1345 = vmatpush1.msra.mxu0 0.0
          %1346 = vmatprep.subr.mxu0 0.0
          %1347 = vmatpush1.msra.mxu0 0.0
          %1348 = vmatprep.subr.mxu0 0.0
          %1349 = vmatpush1.msra.mxu0 0.0
          %1350 = vmatprep.subr.mxu0 0.0
          %1351 = vmatpush1.msra.mxu0 0.0
          %1352 = vmatprep.subr.mxu0 0.0
          %1353 = vmatpush1.msra.mxu0 0.0
          %1354 = vmatprep.subr.mxu0 0.0
          %1355 = vmatpush1.msra.mxu0 0.0
          %1356 = vmatprep.subr.mxu0 0.0
          %1357 = vmatpush1.msra.mxu0 0.0
          %1358 = vmatprep.subr.mxu0 0.0
          %1359 = vmatpush1.msra.mxu0 0.0
          %1360 = vmatprep.subr.mxu0 0.0
          %1361 = vmatpush1.msra.mxu0 0.0
          %1362 = vmatprep.subr.mxu0 0.0
          %1363 = vmatpush1.msra.mxu0 0.0
          %1364 = vmatprep.subr.mxu0 0.0
          %1365 = vmatpush1.msra.mxu0 0.0
          %1366 = vmatprep.subr.mxu0 0.0
          %1367 = vmatpush1.msra.mxu0 0.0
          %1368 = vmatprep.subr.mxu0 0.0
          %1369 = vmatpush1.msra.mxu0 0.0
          %1370 = vmatprep.subr.mxu0 0.0
          %1371 = vmatpush1.msra.mxu0 0.0
          %1372 = vmatprep.subr.mxu0 0.0
          %1373 = vmatpush1.msra.mxu0 0.0
          %1374 = vmatprep.subr.mxu0 0.0
          %1375 = vmatpush1.msra.mxu0 0.0
          %1376 = vmatprep.subr.mxu0 0.0
          %1377 = vmatpush1.msra.mxu0 0.0
          %1378 = vmatprep.subr.mxu0 0.0
          %1379 = vmatpush1.msra.mxu0 0.0
          %1380 = vmatprep.subr.mxu0 0.0
          %1381 = vmatpush1.msra.mxu0 0.0
          %1382 = vmatprep.subr.mxu0 0.0
          %1383 = vmatpush1.msra.mxu0 0.0
          %1384 = vmatprep.subr.mxu0 0.0
          %1385 = vmatpush1.msra.mxu0 0.0
          %1386 = vmatprep.subr.mxu0 0.0
          %1387 = vmatpush1.msra.mxu0 0.0
          %1388 = vmatprep.subr.mxu0 0.0
          %1389 = vmatpush1.msra.mxu0 0.0
          %1390 = vmatprep.subr.mxu0 0.0
          %1391 = vmatpush1.msra.mxu0 0.0
          %1392 = vmatprep.subr.mxu0 0.0
          %1393 = vmatpush1.msra.mxu0 0.0
          %1394 = vmatprep.subr.mxu0 0.0
          %1395 = vmatpush1.msra.mxu0 0.0
          %1396 = vmatprep.subr.mxu0 0.0
          %1397 = vmatpush1.msra.mxu0 0.0
          %1398 = vmatprep.subr.mxu0 0.0
          %1399 = vmatpush1.msra.mxu0 0.0
          %1400 = vmatprep.subr.mxu0 0.0
          %1401 = vmatpush1.msra.mxu0 0.0
          %1402 = vmatprep.subr.mxu0 0.0
          %1403 = vmatpush1.msra.mxu0 0.0
          %1404 = vmatprep.mubr.f32.mxu0 0.0
          %1405 = vmatmul.mubr.f32.gmra.mrb[0].mxu0 %v1332
          %v1406 = vpop.f32.mrb[0].mxu0
          %v1407 = vadd.f32 0.0, %v1406
          %v1408 = vpop.f32.mrb[0].mxu0
          %1409 = vmatprep.mubr.f32.mxu0 0.0
          %1410 = vmatmul.mubr.f32.gmra.mrb[0].mxu0 %v1334
          %v1411 = vpop.f32.mrb[0].mxu0
          %v1412 = vadd.f32 0.0, %v1411
          %v1413 = vpop.f32.mrb[0].mxu0
          %1414 = vmatprep.mubr.f32.mxu0 0.0
          %1415 = vmatmul.mubr.f32.gmra.mrb[0].mxu0 %v1336
          %v1416 = vpop.f32.mrb[0].mxu0
          %v1417 = vadd.f32 0.0, %v1416
          %v1418 = vpop.f32.mrb[0].mxu0
          %1419 = vmatprep.mubr.f32.mxu0 0.0
          %1420 = vmatmul.mubr.f32.gmra.mrb[0].mxu0 %v1338
          %v1421 = vpop.f32.mrb[0].mxu0
          %v1422 = vadd.f32 0.0, %v1421
          %v1423 = vpop.f32.mrb[0].mxu0
          %1424 = vdwg.mxu0
          %1425 = vrot.lane.b32.xlu0 %v1067, 120
          %v1426 = vpop.permute.xlu0 %1425
          %1427 = vrot.lane.b32.xlu0 %v1068, 120
          %v1428 = vpop.permute.xlu0 %1427
          %1429 = vrot.lane.b32.xlu0 %v1069, 120
          %v1430 = vpop.permute.xlu0 %1429
          %1431 = vrot.lane.b32.xlu0 %v1070, 120
          %v1432 = vpop.permute.xlu0 %1431
          %v1433 = vsel %vm1072, %v1426, 0
          %v1435 = vsel %vm1072, %v1428, 0
          %v1437 = vsel %vm1072, %v1430, 0
          %v1439 = vsel %vm1072, %v1432, 0
          %1441 = vmatprep.subr.mxu0 0.0
          %1442 = vmatpush1.msra.mxu0 %v1071
          %1443 = vmatprep.subr.mxu0 0.0
          %1444 = vmatpush1.msra.mxu0 0.0
          %1445 = vmatprep.subr.mxu0 0.0
          %1446 = vmatpush1.msra.mxu0 0.0
          %1447 = vmatprep.subr.mxu0 0.0
          %1448 = vmatpush1.msra.mxu0 0.0
          %1449 = vmatprep.subr.mxu0 0.0
          %1450 = vmatpush1.msra.mxu0 0.0
          %1451 = vmatprep.subr.mxu0 0.0
          %1452 = vmatpush1.msra.mxu0 0.0
          %1453 = vmatprep.subr.mxu0 0.0
          %1454 = vmatpush1.msra.mxu0 0.0
          %1455 = vmatprep.subr.mxu0 0.0
          %1456 = vmatpush1.msra.mxu0 0.0
          %1457 = vmatprep.subr.mxu0 0.0
          %1458 = vmatpush1.msra.mxu0 0.0
          %1459 = vmatprep.subr.mxu0 0.0
          %1460 = vmatpush1.msra.mxu0 0.0
          %1461 = vmatprep.subr.mxu0 0.0
          %1462 = vmatpush1.msra.mxu0 0.0
          %1463 = vmatprep.subr.mxu0 0.0
          %1464 = vmatpush1.msra.mxu0 0.0
          %1465 = vmatprep.subr.mxu0 0.0
          %1466 = vmatpush1.msra.mxu0 0.0
          %1467 = vmatprep.subr.mxu0 0.0
          %1468 = vmatpush1.msra.mxu0 0.0
          %1469 = vmatprep.subr.mxu0 0.0
          %1470 = vmatpush1.msra.mxu0 0.0
          %1471 = vmatprep.subr.mxu0 0.0
          %1472 = vmatpush1.msra.mxu0 0.0
          %1473 = vmatprep.subr.mxu0 0.0
          %1474 = vmatpush1.msra.mxu0 0.0
          %1475 = vmatprep.subr.mxu0 0.0
          %1476 = vmatpush1.msra.mxu0 0.0
          %1477 = vmatprep.subr.mxu0 0.0
          %1478 = vmatpush1.msra.mxu0 0.0
          %1479 = vmatprep.subr.mxu0 0.0
          %1480 = vmatpush1.msra.mxu0 0.0
          %1481 = vmatprep.subr.mxu0 0.0
          %1482 = vmatpush1.msra.mxu0 0.0
          %1483 = vmatprep.subr.mxu0 0.0
          %1484 = vmatpush1.msra.mxu0 0.0
          %1485 = vmatprep.subr.mxu0 0.0
          %1486 = vmatpush1.msra.mxu0 0.0
          %1487 = vmatprep.subr.mxu0 0.0
          %1488 = vmatpush1.msra.mxu0 0.0
          %1489 = vmatprep.subr.mxu0 0.0
          %1490 = vmatpush1.msra.mxu0 0.0
          %1491 = vmatprep.subr.mxu0 0.0
          %1492 = vmatpush1.msra.mxu0 0.0
          %1493 = vmatprep.subr.mxu0 0.0
          %1494 = vmatpush1.msra.mxu0 0.0
          %1495 = vmatprep.subr.mxu0 0.0
          %1496 = vmatpush1.msra.mxu0 0.0
          %1497 = vmatprep.subr.mxu0 0.0
          %1498 = vmatpush1.msra.mxu0 0.0
          %1499 = vmatprep.subr.mxu0 0.0
          %1500 = vmatpush1.msra.mxu0 0.0
          %1501 = vmatprep.subr.mxu0 0.0
          %1502 = vmatpush1.msra.mxu0 0.0
          %1503 = vmatprep.subr.mxu0 0.0
          %1504 = vmatpush1.msra.mxu0 0.0
          %1505 = vmatprep.mubr.f32.mxu0 0.0
          %1506 = vmatmul.mubr.f32.gmra.mrb[0].mxu0 %v1433
          %v1507 = vpop.f32.mrb[0].mxu0
          %v1508 = vadd.f32 0.0, %v1507
          %v1509 = vpop.f32.mrb[0].mxu0
          %1510 = vmatprep.mubr.f32.mxu0 0.0
          %1511 = vmatmul.mubr.f32.gmra.mrb[0].mxu0 %v1435
          %v1512 = vpop.f32.mrb[0].mxu0
          %v1513 = vadd.f32 0.0, %v1512
          %v1514 = vpop.f32.mrb[0].mxu0
          %1515 = vmatprep.mubr.f32.mxu0 0.0
          %1516 = vmatmul.mubr.f32.gmra.mrb[0].mxu0 %v1437
          %v1517 = vpop.f32.mrb[0].mxu0
          %v1518 = vadd.f32 0.0, %v1517
          %v1519 = vpop.f32.mrb[0].mxu0
          %1520 = vmatprep.mubr.f32.mxu0 0.0
          %1521 = vmatmul.mubr.f32.gmra.mrb[0].mxu0 %v1439
          %v1522 = vpop.f32.mrb[0].mxu0
          %v1523 = vadd.f32 0.0, %v1522
          %v1524 = vpop.f32.mrb[0].mxu0
          %1525 = vdwg.mxu0
          %1530 = vrot.lane.b32.xlu0 %v1407, 16
          %v1531 = vpop.permute.xlu0 %1530
          %1532 = vrot.lane.b32.xlu0 %v1412, 16
          %v1533 = vpop.permute.xlu0 %1532
          %1534 = vrot.lane.b32.xlu0 %v1417, 16
          %v1535 = vpop.permute.xlu0 %1534
          %1536 = vrot.lane.b32.xlu0 %v1422, 16
          %v1537 = vpop.permute.xlu0 %1536
          %v1542 = vsel %vm881, %v1407, %v1531
          %v1543 = vsel %vm881, %v1412, %v1533
          %v1544 = vsel %vm881, %v1417, %v1535
          %v1545 = vsel %vm881, %v1422, %v1537
          %1550 = vrot.lane.b32.xlu0 %v1508, 16
          %v1551 = vpop.permute.xlu0 %1550
          %1552 = vrot.lane.b32.xlu0 %v1513, 16
          %v1553 = vpop.permute.xlu0 %1552
          %1554 = vrot.lane.b32.xlu0 %v1518, 16
          %v1555 = vpop.permute.xlu0 %1554
          %1556 = vrot.lane.b32.xlu0 %v1523, 16
          %v1557 = vpop.permute.xlu0 %1556
          %v1562 = vsel %vm881, %v1508, %v1551
          %v1563 = vsel %vm881, %v1513, %v1553
          %v1564 = vsel %vm881, %v1518, %v1555
          %v1565 = vsel %vm881, %v1523, %v1557
          %v1566 = vld [vmem:[%s456] sm:$0xff]
          %v1567 = vld [vmem:[%s456 + $0x10] sm:$0xff]
          %v1568 = vld [vmem:[%s456 + $0x20] sm:$0xff]
          %v1569 = vld [vmem:[%s456 + $0x30] sm:$0xff]
          %1574 = vrot.lane.b32.xlu0 %v1542, 32
          %v1575 = vpop.permute.xlu0 %1574
          %1576 = vrot.lane.b32.xlu0 %v1543, 32
          %v1577 = vpop.permute.xlu0 %1576
          %1578 = vrot.lane.b32.xlu0 %v1544, 32
          %v1579 = vpop.permute.xlu0 %1578
          %1580 = vrot.lane.b32.xlu0 %v1545, 32
          %v1581 = vpop.permute.xlu0 %1580
          %v1586 = vmul.f32 %v1566, %v1575
          %v1587 = vmul.f32 %v1567, %v1577
          %v1588 = vmul.f32 %v1568, %v1579
          %v1589 = vmul.f32 %v1569, %v1581
          %1594 = vrot.lane.b32.xlu0 %v1562, 32
          %v1595 = vpop.permute.xlu0 %1594
          %1596 = vrot.lane.b32.xlu0 %v1563, 32
          %v1597 = vpop.permute.xlu0 %1596
          %1598 = vrot.lane.b32.xlu0 %v1564, 32
          %v1599 = vpop.permute.xlu0 %1598
          %1600 = vrot.lane.b32.xlu0 %v1565, 32
          %v1601 = vpop.permute.xlu0 %1600
          %v1606 = vadd.f32 %v1586, %v1595
          %v1607 = vadd.f32 %v1587, %v1597
          %v1608 = vadd.f32 %v1588, %v1599
          %v1609 = vadd.f32 %v1589, %v1601
          %vm1610 = vcmask 523520
          %1611 = vst.msk [vmem:[%s442] sm:$0xff] %vm1610, %v1606
          %1612 = vst.msk [vmem:[%s442 + $0x10] sm:$0xff] %vm1610, %v1607
          %1613 = vst.msk [vmem:[%s442 + $0x20] sm:$0xff] %vm1610, %v1608
          %1614 = vst.msk [vmem:[%s442 + $0x30] sm:$0xff] %vm1610, %v1609
          %1615 = vrot.lane.b32.xlu0 %v1039, 112
          %v1616 = vpop.permute.xlu0 %1615
          %1617 = vrot.lane.b32.xlu0 %v1040, 112
          %v1618 = vpop.permute.xlu0 %1617
          %1619 = vrot.lane.b32.xlu0 %v1041, 112
          %v1620 = vpop.permute.xlu0 %1619
          %1621 = vrot.lane.b32.xlu0 %v1042, 112
          %v1622 = vpop.permute.xlu0 %1621
          %v1623 = vsel %vm1072, %v1616, 0
          %v1625 = vsel %vm1072, %v1618, 0
          %v1627 = vsel %vm1072, %v1620, 0
          %v1629 = vsel %vm1072, %v1622, 0
          %1631 = vmatprep.subr.mxu0 0.0
          %1632 = vmatpush1.msra.mxu0 %v1071
          %1633 = vmatprep.subr.mxu0 0.0
          %1634 = vmatpush1.msra.mxu0 0.0
          %1635 = vmatprep.subr.mxu0 0.0
          %1636 = vmatpush1.msra.mxu0 0.0
          %1637 = vmatprep.subr.mxu0 0.0
          %1638 = vmatpush1.msra.mxu0 0.0
          %1639 = vmatprep.subr.mxu0 0.0
          %1640 = vmatpush1.msra.mxu0 0.0
          %1641 = vmatprep.subr.mxu0 0.0
          %1642 = vmatpush1.msra.mxu0 0.0
          %1643 = vmatprep.subr.mxu0 0.0
          %1644 = vmatpush1.msra.mxu0 0.0
          %1645 = vmatprep.subr.mxu0 0.0
          %1646 = vmatpush1.msra.mxu0 0.0
          %1647 = vmatprep.subr.mxu0 0.0
          %1648 = vmatpush1.msra.mxu0 0.0
          %1649 = vmatprep.subr.mxu0 0.0
          %1650 = vmatpush1.msra.mxu0 0.0
          %1651 = vmatprep.subr.mxu0 0.0
          %1652 = vmatpush1.msra.mxu0 0.0
          %1653 = vmatprep.subr.mxu0 0.0
          %1654 = vmatpush1.msra.mxu0 0.0
          %1655 = vmatprep.subr.mxu0 0.0
          %1656 = vmatpush1.msra.mxu0 0.0
          %1657 = vmatprep.subr.mxu0 0.0
          %1658 = vmatpush1.msra.mxu0 0.0
          %1659 = vmatprep.subr.mxu0 0.0
          %1660 = vmatpush1.msra.mxu0 0.0
          %1661 = vmatprep.subr.mxu0 0.0
          %1662 = vmatpush1.msra.mxu0 0.0
          %1663 = vmatprep.subr.mxu0 0.0
          %1664 = vmatpush1.msra.mxu0 0.0
          %1665 = vmatprep.subr.mxu0 0.0
          %1666 = vmatpush1.msra.mxu0 0.0
          %1667 = vmatprep.subr.mxu0 0.0
          %1668 = vmatpush1.msra.mxu0 0.0
          %1669 = vmatprep.subr.mxu0 0.0
          %1670 = vmatpush1.msra.mxu0 0.0
          %1671 = vmatprep.subr.mxu0 0.0
          %1672 = vmatpush1.msra.mxu0 0.0
          %1673 = vmatprep.subr.mxu0 0.0
          %1674 = vmatpush1.msra.mxu0 0.0
          %1675 = vmatprep.subr.mxu0 0.0
          %1676 = vmatpush1.msra.mxu0 0.0
          %1677 = vmatprep.subr.mxu0 0.0
          %1678 = vmatpush1.msra.mxu0 0.0
          %1679 = vmatprep.subr.mxu0 0.0
          %1680 = vmatpush1.msra.mxu0 0.0
          %1681 = vmatprep.subr.mxu0 0.0
          %1682 = vmatpush1.msra.mxu0 0.0
          %1683 = vmatprep.subr.mxu0 0.0
          %1684 = vmatpush1.msra.mxu0 0.0
          %1685 = vmatprep.subr.mxu0 0.0
          %1686 = vmatpush1.msra.mxu0 0.0
          %1687 = vmatprep.subr.mxu0 0.0
          %1688 = vmatpush1.msra.mxu0 0.0
          %1689 = vmatprep.subr.mxu0 0.0
          %1690 = vmatpush1.msra.mxu0 0.0
          %1691 = vmatprep.subr.mxu0 0.0
          %1692 = vmatpush1.msra.mxu0 0.0
          %1693 = vmatprep.subr.mxu0 0.0
          %1694 = vmatpush1.msra.mxu0 0.0
          %1695 = vmatprep.mubr.f32.mxu0 0.0
          %1696 = vmatmul.mubr.f32.gmra.mrb[0].mxu0 %v1623
          %v1697 = vpop.f32.mrb[0].mxu0
          %v1698 = vadd.f32 0.0, %v1697
          %v1699 = vpop.f32.mrb[0].mxu0
          %1700 = vmatprep.mubr.f32.mxu0 0.0
          %1701 = vmatmul.mubr.f32.gmra.mrb[0].mxu0 %v1625
          %v1702 = vpop.f32.mrb[0].mxu0
          %v1703 = vadd.f32 0.0, %v1702
          %v1704 = vpop.f32.mrb[0].mxu0
          %1705 = vmatprep.mubr.f32.mxu0 0.0
          %1706 = vmatmul.mubr.f32.gmra.mrb[0].mxu0 %v1627
          %v1707 = vpop.f32.mrb[0].mxu0
          %v1708 = vadd.f32 0.0, %v1707
          %v1709 = vpop.f32.mrb[0].mxu0
          %1710 = vmatprep.mubr.f32.mxu0 0.0
          %1711 = vmatmul.mubr.f32.gmra.mrb[0].mxu0 %v1629
          %v1712 = vpop.f32.mrb[0].mxu0
          %v1713 = vadd.f32 0.0, %v1712
          %v1714 = vpop.f32.mrb[0].mxu0
          %1715 = vdwg.mxu0
          %1716 = vrot.lane.b32.xlu0 %v1067, 112
          %v1717 = vpop.permute.xlu0 %1716
          %1718 = vrot.lane.b32.xlu0 %v1068, 112
          %v1719 = vpop.permute.xlu0 %1718
          %1720 = vrot.lane.b32.xlu0 %v1069, 112
          %v1721 = vpop.permute.xlu0 %1720
          %1722 = vrot.lane.b32.xlu0 %v1070, 112
          %v1723 = vpop.permute.xlu0 %1722
          %v1724 = vsel %vm1072, %v1717, 0
          %v1726 = vsel %vm1072, %v1719, 0
          %v1728 = vsel %vm1072, %v1721, 0
          %v1730 = vsel %vm1072, %v1723, 0
          %1732 = vmatprep.subr.mxu0 0.0
          %1733 = vmatpush1.msra.mxu0 %v1071
          %1734 = vmatprep.subr.mxu0 0.0
          %1735 = vmatpush1.msra.mxu0 0.0
          %1736 = vmatprep.subr.mxu0 0.0
          %1737 = vmatpush1.msra.mxu0 0.0
          %1738 = vmatprep.subr.mxu0 0.0
          %1739 = vmatpush1.msra.mxu0 0.0
          %1740 = vmatprep.subr.mxu0 0.0
          %1741 = vmatpush1.msra.mxu0 0.0
          %1742 = vmatprep.subr.mxu0 0.0
          %1743 = vmatpush1.msra.mxu0 0.0
          %1744 = vmatprep.subr.mxu0 0.0
          %1745 = vmatpush1.msra.mxu0 0.0
          %1746 = vmatprep.subr.mxu0 0.0
          %1747 = vmatpush1.msra.mxu0 0.0
          %1748 = vmatprep.subr.mxu0 0.0
          %1749 = vmatpush1.msra.mxu0 0.0
          %1750 = vmatprep.subr.mxu0 0.0
          %1751 = vmatpush1.msra.mxu0 0.0
          %1752 = vmatprep.subr.mxu0 0.0
          %1753 = vmatpush1.msra.mxu0 0.0
          %1754 = vmatprep.subr.mxu0 0.0
          %1755 = vmatpush1.msra.mxu0 0.0
          %1756 = vmatprep.subr.mxu0 0.0
          %1757 = vmatpush1.msra.mxu0 0.0
          %1758 = vmatprep.subr.mxu0 0.0
          %1759 = vmatpush1.msra.mxu0 0.0
          %1760 = vmatprep.subr.mxu0 0.0
          %1761 = vmatpush1.msra.mxu0 0.0
          %1762 = vmatprep.subr.mxu0 0.0
          %1763 = vmatpush1.msra.mxu0 0.0
          %1764 = vmatprep.subr.mxu0 0.0
          %1765 = vmatpush1.msra.mxu0 0.0
          %1766 = vmatprep.subr.mxu0 0.0
          %1767 = vmatpush1.msra.mxu0 0.0
          %1768 = vmatprep.subr.mxu0 0.0
          %1769 = vmatpush1.msra.mxu0 0.0
          %1770 = vmatprep.subr.mxu0 0.0
          %1771 = vmatpush1.msra.mxu0 0.0
          %1772 = vmatprep.subr.mxu0 0.0
          %1773 = vmatpush1.msra.mxu0 0.0
          %1774 = vmatprep.subr.mxu0 0.0
          %1775 = vmatpush1.msra.mxu0 0.0
          %1776 = vmatprep.subr.mxu0 0.0
          %1777 = vmatpush1.msra.mxu0 0.0
          %1778 = vmatprep.subr.mxu0 0.0
          %1779 = vmatpush1.msra.mxu0 0.0
          %1780 = vmatprep.subr.mxu0 0.0
          %1781 = vmatpush1.msra.mxu0 0.0
          %1782 = vmatprep.subr.mxu0 0.0
          %1783 = vmatpush1.msra.mxu0 0.0
          %1784 = vmatprep.subr.mxu0 0.0
          %1785 = vmatpush1.msra.mxu0 0.0
          %1786 = vmatprep.subr.mxu0 0.0
          %1787 = vmatpush1.msra.mxu0 0.0
          %1788 = vmatprep.subr.mxu0 0.0
          %1789 = vmatpush1.msra.mxu0 0.0
          %1790 = vmatprep.subr.mxu0 0.0
          %1791 = vmatpush1.msra.mxu0 0.0
          %1792 = vmatprep.subr.mxu0 0.0
          %1793 = vmatpush1.msra.mxu0 0.0
          %1794 = vmatprep.subr.mxu0 0.0
          %1795 = vmatpush1.msra.mxu0 0.0
          %1796 = vmatprep.mubr.f32.mxu0 0.0
          %1797 = vmatmul.mubr.f32.gmra.mrb[0].mxu0 %v1724
          %v1798 = vpop.f32.mrb[0].mxu0
          %v1799 = vadd.f32 0.0, %v1798
          %v1800 = vpop.f32.mrb[0].mxu0
          %1801 = vmatprep.mubr.f32.mxu0 0.0
          %1802 = vmatmul.mubr.f32.gmra.mrb[0].mxu0 %v1726
          %v1803 = vpop.f32.mrb[0].mxu0
          %v1804 = vadd.f32 0.0, %v1803
          %v1805 = vpop.f32.mrb[0].mxu0
          %1806 = vmatprep.mubr.f32.mxu0 0.0
          %1807 = vmatmul.mubr.f32.gmra.mrb[0].mxu0 %v1728
          %v1808 = vpop.f32.mrb[0].mxu0
          %v1809 = vadd.f32 0.0, %v1808
          %v1810 = vpop.f32.mrb[0].mxu0
          %1811 = vmatprep.mubr.f32.mxu0 0.0
          %1812 = vmatmul.mubr.f32.gmra.mrb[0].mxu0 %v1730
          %v1813 = vpop.f32.mrb[0].mxu0
          %v1814 = vadd.f32 0.0, %v1813
          %v1815 = vpop.f32.mrb[0].mxu0
          %1816 = vdwg.mxu0
          %1821 = vrot.lane.b32.xlu0 %v1698, 16
          %v1822 = vpop.permute.xlu0 %1821
          %1823 = vrot.lane.b32.xlu0 %v1703, 16
          %v1824 = vpop.permute.xlu0 %1823
          %1825 = vrot.lane.b32.xlu0 %v1708, 16
          %v1826 = vpop.permute.xlu0 %1825
          %1827 = vrot.lane.b32.xlu0 %v1713, 16
          %v1828 = vpop.permute.xlu0 %1827
          %v1833 = vsel %vm881, %v1698, %v1822
          %v1834 = vsel %vm881, %v1703, %v1824
          %v1835 = vsel %vm881, %v1708, %v1826
          %v1836 = vsel %vm881, %v1713, %v1828
          %1841 = vrot.lane.b32.xlu0 %v1799, 16
          %v1842 = vpop.permute.xlu0 %1841
          %1843 = vrot.lane.b32.xlu0 %v1804, 16
          %v1844 = vpop.permute.xlu0 %1843
          %1845 = vrot.lane.b32.xlu0 %v1809, 16
          %v1846 = vpop.permute.xlu0 %1845
          %1847 = vrot.lane.b32.xlu0 %v1814, 16
          %v1848 = vpop.permute.xlu0 %1847
          %v1853 = vsel %vm881, %v1799, %v1842
          %v1854 = vsel %vm881, %v1804, %v1844
          %v1855 = vsel %vm881, %v1809, %v1846
          %v1856 = vsel %vm881, %v1814, %v1848
          %v1857 = vld [vmem:[%s456] sm:$0xff]
          %v1858 = vld [vmem:[%s456 + $0x10] sm:$0xff]
          %v1859 = vld [vmem:[%s456 + $0x20] sm:$0xff]
          %v1860 = vld [vmem:[%s456 + $0x30] sm:$0xff]
          %1865 = vrot.lane.b32.xlu0 %v1833, 64
          %v1866 = vpop.permute.xlu0 %1865
          %1867 = vrot.lane.b32.xlu0 %v1834, 64
          %v1868 = vpop.permute.xlu0 %1867
          %1869 = vrot.lane.b32.xlu0 %v1835, 64
          %v1870 = vpop.permute.xlu0 %1869
          %1871 = vrot.lane.b32.xlu0 %v1836, 64
          %v1872 = vpop.permute.xlu0 %1871
          %v1877 = vmul.f32 %v1857, %v1866
          %v1878 = vmul.f32 %v1858, %v1868
          %v1879 = vmul.f32 %v1859, %v1870
          %v1880 = vmul.f32 %v1860, %v1872
          %1885 = vrot.lane.b32.xlu0 %v1853, 64
          %v1886 = vpop.permute.xlu0 %1885
          %1887 = vrot.lane.b32.xlu0 %v1854, 64
          %v1888 = vpop.permute.xlu0 %1887
          %1889 = vrot.lane.b32.xlu0 %v1855, 64
          %v1890 = vpop.permute.xlu0 %1889
          %1891 = vrot.lane.b32.xlu0 %v1856, 64
          %v1892 = vpop.permute.xlu0 %1891
          %v1897 = vadd.f32 %v1877, %v1886
          %v1898 = vadd.f32 %v1878, %v1888
          %v1899 = vadd.f32 %v1879, %v1890
          %v1900 = vadd.f32 %v1880, %v1892
          %vm1901 = vcmask 785920
          %1902 = vst.msk [vmem:[%s442] sm:$0xff] %vm1901, %v1897
          %1903 = vst.msk [vmem:[%s442 + $0x10] sm:$0xff] %vm1901, %v1898
          %1904 = vst.msk [vmem:[%s442 + $0x20] sm:$0xff] %vm1901, %v1899
          %1905 = vst.msk [vmem:[%s442 + $0x30] sm:$0xff] %vm1901, %v1900
          %1906 = vrot.lane.b32.xlu0 %v1039, 104
          %v1907 = vpop.permute.xlu0 %1906
          %1908 = vrot.lane.b32.xlu0 %v1040, 104
          %v1909 = vpop.permute.xlu0 %1908
          %1910 = vrot.lane.b32.xlu0 %v1041, 104
          %v1911 = vpop.permute.xlu0 %1910
          %1912 = vrot.lane.b32.xlu0 %v1042, 104
          %v1913 = vpop.permute.xlu0 %1912
          %v1914 = vsel %vm1072, %v1907, 0
          %v1916 = vsel %vm1072, %v1909, 0
          %v1918 = vsel %vm1072, %v1911, 0
          %v1920 = vsel %vm1072, %v1913, 0
          %1922 = vmatprep.subr.mxu0 0.0
          %1923 = vmatpush1.msra.mxu0 %v1071
          %1924 = vmatprep.subr.mxu0 0.0
          %1925 = vmatpush1.msra.mxu0 0.0
          %1926 = vmatprep.subr.mxu0 0.0
          %1927 = vmatpush1.msra.mxu0 0.0
          %1928 = vmatprep.subr.mxu0 0.0
          %1929 = vmatpush1.msra.mxu0 0.0
          %1930 = vmatprep.subr.mxu0 0.0
          %1931 = vmatpush1.msra.mxu0 0.0
          %1932 = vmatprep.subr.mxu0 0.0
          %1933 = vmatpush1.msra.mxu0 0.0
          %1934 = vmatprep.subr.mxu0 0.0
          %1935 = vmatpush1.msra.mxu0 0.0
          %1936 = vmatprep.subr.mxu0 0.0
          %1937 = vmatpush1.msra.mxu0 0.0
          %1938 = vmatprep.subr.mxu0 0.0
          %1939 = vmatpush1.msra.mxu0 0.0
          %1940 = vmatprep.subr.mxu0 0.0
          %1941 = vmatpush1.msra.mxu0 0.0
          %1942 = vmatprep.subr.mxu0 0.0
          %1943 = vmatpush1.msra.mxu0 0.0
          %1944 = vmatprep.subr.mxu0 0.0
          %1945 = vmatpush1.msra.mxu0 0.0
          %1946 = vmatprep.subr.mxu0 0.0
          %1947 = vmatpush1.msra.mxu0 0.0
          %1948 = vmatprep.subr.mxu0 0.0
          %1949 = vmatpush1.msra.mxu0 0.0
          %1950 = vmatprep.subr.mxu0 0.0
          %1951 = vmatpush1.msra.mxu0 0.0
          %1952 = vmatprep.subr.mxu0 0.0
          %1953 = vmatpush1.msra.mxu0 0.0
          %1954 = vmatprep.subr.mxu0 0.0
          %1955 = vmatpush1.msra.mxu0 0.0
          %1956 = vmatprep.subr.mxu0 0.0
          %1957 = vmatpush1.msra.mxu0 0.0
          %1958 = vmatprep.subr.mxu0 0.0
          %1959 = vmatpush1.msra.mxu0 0.0
          %1960 = vmatprep.subr.mxu0 0.0
          %1961 = vmatpush1.msra.mxu0 0.0
          %1962 = vmatprep.subr.mxu0 0.0
          %1963 = vmatpush1.msra.mxu0 0.0
          %1964 = vmatprep.subr.mxu0 0.0
          %1965 = vmatpush1.msra.mxu0 0.0
          %1966 = vmatprep.subr.mxu0 0.0
          %1967 = vmatpush1.msra.mxu0 0.0
          %1968 = vmatprep.subr.mxu0 0.0
          %1969 = vmatpush1.msra.mxu0 0.0
          %1970 = vmatprep.subr.mxu0 0.0
          %1971 = vmatpush1.msra.mxu0 0.0
          %1972 = vmatprep.subr.mxu0 0.0
          %1973 = vmatpush1.msra.mxu0 0.0
          %1974 = vmatprep.subr.mxu0 0.0
          %1975 = vmatpush1.msra.mxu0 0.0
          %1976 = vmatprep.subr.mxu0 0.0
          %1977 = vmatpush1.msra.mxu0 0.0
          %1978 = vmatprep.subr.mxu0 0.0
          %1979 = vmatpush1.msra.mxu0 0.0
          %1980 = vmatprep.subr.mxu0 0.0
          %1981 = vmatpush1.msra.mxu0 0.0
          %1982 = vmatprep.subr.mxu0 0.0
          %1983 = vmatpush1.msra.mxu0 0.0
          %1984 = vmatprep.subr.mxu0 0.0
          %1985 = vmatpush1.msra.mxu0 0.0
          %1986 = vmatprep.mubr.f32.mxu0 0.0
          %1987 = vmatmul.mubr.f32.gmra.mrb[0].mxu0 %v1914
          %v1988 = vpop.f32.mrb[0].mxu0
          %v1989 = vadd.f32 0.0, %v1988
          %v1990 = vpop.f32.mrb[0].mxu0
          %1991 = vmatprep.mubr.f32.mxu0 0.0
          %1992 = vmatmul.mubr.f32.gmra.mrb[0].mxu0 %v1916
          %v1993 = vpop.f32.mrb[0].mxu0
          %v1994 = vadd.f32 0.0, %v1993
          %v1995 = vpop.f32.mrb[0].mxu0
          %1996 = vmatprep.mubr.f32.mxu0 0.0
          %1997 = vmatmul.mubr.f32.gmra.mrb[0].mxu0 %v1918
          %v1998 = vpop.f32.mrb[0].mxu0
          %v1999 = vadd.f32 0.0, %v1998
          %v2000 = vpop.f32.mrb[0].mxu0
          %2001 = vmatprep.mubr.f32.mxu0 0.0
          %2002 = vmatmul.mubr.f32.gmra.mrb[0].mxu0 %v1920
          %v2003 = vpop.f32.mrb[0].mxu0
          %v2004 = vadd.f32 0.0, %v2003
          %v2005 = vpop.f32.mrb[0].mxu0
          %2006 = vdwg.mxu0
          %2007 = vrot.lane.b32.xlu0 %v1067, 104
          %v2008 = vpop.permute.xlu0 %2007
          %2009 = vrot.lane.b32.xlu0 %v1068, 104
          %v2010 = vpop.permute.xlu0 %2009
          %2011 = vrot.lane.b32.xlu0 %v1069, 104
          %v2012 = vpop.permute.xlu0 %2011
          %2013 = vrot.lane.b32.xlu0 %v1070, 104
          %v2014 = vpop.permute.xlu0 %2013
          %v2015 = vsel %vm1072, %v2008, 0
          %v2017 = vsel %vm1072, %v2010, 0
          %v2019 = vsel %vm1072, %v2012, 0
          %v2021 = vsel %vm1072, %v2014, 0
          %2023 = vmatprep.subr.mxu0 0.0
          %2024 = vmatpush1.msra.mxu0 %v1071
          %2025 = vmatprep.subr.mxu0 0.0
          %2026 = vmatpush1.msra.mxu0 0.0
          %2027 = vmatprep.subr.mxu0 0.0
          %2028 = vmatpush1.msra.mxu0 0.0
          %2029 = vmatprep.subr.mxu0 0.0
          %2030 = vmatpush1.msra.mxu0 0.0
          %2031 = vmatprep.subr.mxu0 0.0
          %2032 = vmatpush1.msra.mxu0 0.0
          %2033 = vmatprep.subr.mxu0 0.0
          %2034 = vmatpush1.msra.mxu0 0.0
          %2035 = vmatprep.subr.mxu0 0.0
          %2036 = vmatpush1.msra.mxu0 0.0
          %2037 = vmatprep.subr.mxu0 0.0
          %2038 = vmatpush1.msra.mxu0 0.0
          %2039 = vmatprep.subr.mxu0 0.0
          %2040 = vmatpush1.msra.mxu0 0.0
          %2041 = vmatprep.subr.mxu0 0.0
          %2042 = vmatpush1.msra.mxu0 0.0
          %2043 = vmatprep.subr.mxu0 0.0
          %2044 = vmatpush1.msra.mxu0 0.0
          %2045 = vmatprep.subr.mxu0 0.0
          %2046 = vmatpush1.msra.mxu0 0.0
          %2047 = vmatprep.subr.mxu0 0.0
          %2048 = vmatpush1.msra.mxu0 0.0
          %2049 = vmatprep.subr.mxu0 0.0
          %2050 = vmatpush1.msra.mxu0 0.0
          %2051 = vmatprep.subr.mxu0 0.0
          %2052 = vmatpush1.msra.mxu0 0.0
          %2053 = vmatprep.subr.mxu0 0.0
          %2054 = vmatpush1.msra.mxu0 0.0
          %2055 = vmatprep.subr.mxu0 0.0
          %2056 = vmatpush1.msra.mxu0 0.0
          %2057 = vmatprep.subr.mxu0 0.0
          %2058 = vmatpush1.msra.mxu0 0.0
          %2059 = vmatprep.subr.mxu0 0.0
          %2060 = vmatpush1.msra.mxu0 0.0
          %2061 = vmatprep.subr.mxu0 0.0
          %2062 = vmatpush1.msra.mxu0 0.0
          %2063 = vmatprep.subr.mxu0 0.0
          %2064 = vmatpush1.msra.mxu0 0.0
          %2065 = vmatprep.subr.mxu0 0.0
          %2066 = vmatpush1.msra.mxu0 0.0
          %2067 = vmatprep.subr.mxu0 0.0
          %2068 = vmatpush1.msra.mxu0 0.0
          %2069 = vmatprep.subr.mxu0 0.0
          %2070 = vmatpush1.msra.mxu0 0.0
          %2071 = vmatprep.subr.mxu0 0.0
          %2072 = vmatpush1.msra.mxu0 0.0
          %2073 = vmatprep.subr.mxu0 0.0
          %2074 = vmatpush1.msra.mxu0 0.0
          %2075 = vmatprep.subr.mxu0 0.0
          %2076 = vmatpush1.msra.mxu0 0.0
          %2077 = vmatprep.subr.mxu0 0.0
          %2078 = vmatpush1.msra.mxu0 0.0
          %2079 = vmatprep.subr.mxu0 0.0
          %2080 = vmatpush1.msra.mxu0 0.0
          %2081 = vmatprep.subr.mxu0 0.0
          %2082 = vmatpush1.msra.mxu0 0.0
          %2083 = vmatprep.subr.mxu0 0.0
          %2084 = vmatpush1.msra.mxu0 0.0
          %2085 = vmatprep.subr.mxu0 0.0
          %2086 = vmatpush1.msra.mxu0 0.0
          %2087 = vmatprep.mubr.f32.mxu0 0.0
          %2088 = vmatmul.mubr.f32.gmra.mrb[0].mxu0 %v2015
          %v2089 = vpop.f32.mrb[0].mxu0
          %v2090 = vadd.f32 0.0, %v2089
          %v2091 = vpop.f32.mrb[0].mxu0
          %2092 = vmatprep.mubr.f32.mxu0 0.0
          %2093 = vmatmul.mubr.f32.gmra.mrb[0].mxu0 %v2017
          %v2094 = vpop.f32.mrb[0].mxu0
          %v2095 = vadd.f32 0.0, %v2094
          %v2096 = vpop.f32.mrb[0].mxu0
          %2097 = vmatprep.mubr.f32.mxu0 0.0
          %2098 = vmatmul.mubr.f32.gmra.mrb[0].mxu0 %v2019
          %v2099 = vpop.f32.mrb[0].mxu0
          %v2100 = vadd.f32 0.0, %v2099
          %v2101 = vpop.f32.mrb[0].mxu0
          %2102 = vmatprep.mubr.f32.mxu0 0.0
          %2103 = vmatmul.mubr.f32.gmra.mrb[0].mxu0 %v2021
          %v2104 = vpop.f32.mrb[0].mxu0
          %v2105 = vadd.f32 0.0, %v2104
          %v2106 = vpop.f32.mrb[0].mxu0
          %2107 = vdwg.mxu0
          %2112 = vrot.lane.b32.xlu0 %v1989, 16
          %v2113 = vpop.permute.xlu0 %2112
          %2114 = vrot.lane.b32.xlu0 %v1994, 16
          %v2115 = vpop.permute.xlu0 %2114
          %2116 = vrot.lane.b32.xlu0 %v1999, 16
          %v2117 = vpop.permute.xlu0 %2116
          %2118 = vrot.lane.b32.xlu0 %v2004, 16
          %v2119 = vpop.permute.xlu0 %2118
          %v2124 = vsel %vm881, %v1989, %v2113
          %v2125 = vsel %vm881, %v1994, %v2115
          %v2126 = vsel %vm881, %v1999, %v2117
          %v2127 = vsel %vm881, %v2004, %v2119
          %2132 = vrot.lane.b32.xlu0 %v2090, 16
          %v2133 = vpop.permute.xlu0 %2132
          %2134 = vrot.lane.b32.xlu0 %v2095, 16
          %v2135 = vpop.permute.xlu0 %2134
          %2136 = vrot.lane.b32.xlu0 %v2100, 16
          %v2137 = vpop.permute.xlu0 %2136
          %2138 = vrot.lane.b32.xlu0 %v2105, 16
          %v2139 = vpop.permute.xlu0 %2138
          %v2144 = vsel %vm881, %v2090, %v2133
          %v2145 = vsel %vm881, %v2095, %v2135
          %v2146 = vsel %vm881, %v2100, %v2137
          %v2147 = vsel %vm881, %v2105, %v2139
          %v2148 = vld [vmem:[%s456] sm:$0xff]
          %v2149 = vld [vmem:[%s456 + $0x10] sm:$0xff]
          %v2150 = vld [vmem:[%s456 + $0x20] sm:$0xff]
          %v2151 = vld [vmem:[%s456 + $0x30] sm:$0xff]
          %2156 = vrot.lane.b32.xlu0 %v2124, 96
          %v2157 = vpop.permute.xlu0 %2156
          %2158 = vrot.lane.b32.xlu0 %v2125, 96
          %v2159 = vpop.permute.xlu0 %2158
          %2160 = vrot.lane.b32.xlu0 %v2126, 96
          %v2161 = vpop.permute.xlu0 %2160
          %2162 = vrot.lane.b32.xlu0 %v2127, 96
          %v2163 = vpop.permute.xlu0 %2162
          %v2168 = vmul.f32 %v2148, %v2157
          %v2169 = vmul.f32 %v2149, %v2159
          %v2170 = vmul.f32 %v2150, %v2161
          %v2171 = vmul.f32 %v2151, %v2163
          %2176 = vrot.lane.b32.xlu0 %v2144, 96
          %v2177 = vpop.permute.xlu0 %2176
          %2178 = vrot.lane.b32.xlu0 %v2145, 96
          %v2179 = vpop.permute.xlu0 %2178
          %2180 = vrot.lane.b32.xlu0 %v2146, 96
          %v2181 = vpop.permute.xlu0 %2180
          %2182 = vrot.lane.b32.xlu0 %v2147, 96
          %v2183 = vpop.permute.xlu0 %2182
          %v2188 = vadd.f32 %v2168, %v2177
          %v2189 = vadd.f32 %v2169, %v2179
          %v2190 = vadd.f32 %v2170, %v2181
          %v2191 = vadd.f32 %v2171, %v2183
          %vm2192 = vcmask 1048320
          %2193 = vst.msk [vmem:[%s442] sm:$0xff] %vm2192, %v2188
          %2194 = vst.msk [vmem:[%s442 + $0x10] sm:$0xff] %vm2192, %v2189
          %2195 = vst.msk [vmem:[%s442 + $0x20] sm:$0xff] %vm2192, %v2190
          %2196 = vst.msk [vmem:[%s442 + $0x30] sm:$0xff] %vm2192, %v2191
          %2197 = vrot.lane.b32.xlu0 %v1039, 96
          %v2198 = vpop.permute.xlu0 %2197
          %2199 = vrot.lane.b32.xlu0 %v1040, 96
          %v2200 = vpop.permute.xlu0 %2199
          %2201 = vrot.lane.b32.xlu0 %v1041, 96
          %v2202 = vpop.permute.xlu0 %2201
          %2203 = vrot.lane.b32.xlu0 %v1042, 96
          %v2204 = vpop.permute.xlu0 %2203
          %v2205 = vsel %vm1072, %v2198, 0
          %v2207 = vsel %vm1072, %v2200, 0
          %v2209 = vsel %vm1072, %v2202, 0
          %v2211 = vsel %vm1072, %v2204, 0
          %2213 = vmatprep.subr.mxu0 0.0
          %2214 = vmatpush1.msra.mxu0 %v1071
          %2215 = vmatprep.subr.mxu0 0.0
          %2216 = vmatpush1.msra.mxu0 0.0
          %2217 = vmatprep.subr.mxu0 0.0
          %2218 = vmatpush1.msra.mxu0 0.0
          %2219 = vmatprep.subr.mxu0 0.0
          %2220 = vmatpush1.msra.mxu0 0.0
          %2221 = vmatprep.subr.mxu0 0.0
          %2222 = vmatpush1.msra.mxu0 0.0
          %2223 = vmatprep.subr.mxu0 0.0
          %2224 = vmatpush1.msra.mxu0 0.0
          %2225 = vmatprep.subr.mxu0 0.0
          %2226 = vmatpush1.msra.mxu0 0.0
          %2227 = vmatprep.subr.mxu0 0.0
          %2228 = vmatpush1.msra.mxu0 0.0
          %2229 = vmatprep.subr.mxu0 0.0
          %2230 = vmatpush1.msra.mxu0 0.0
          %2231 = vmatprep.subr.mxu0 0.0
          %2232 = vmatpush1.msra.mxu0 0.0
          %2233 = vmatprep.subr.mxu0 0.0
          %2234 = vmatpush1.msra.mxu0 0.0
          %2235 = vmatprep.subr.mxu0 0.0
          %2236 = vmatpush1.msra.mxu0 0.0
          %2237 = vmatprep.subr.mxu0 0.0
          %2238 = vmatpush1.msra.mxu0 0.0
          %2239 = vmatprep.subr.mxu0 0.0
          %2240 = vmatpush1.msra.mxu0 0.0
          %2241 = vmatprep.subr.mxu0 0.0
          %2242 = vmatpush1.msra.mxu0 0.0
          %2243 = vmatprep.subr.mxu0 0.0
          %2244 = vmatpush1.msra.mxu0 0.0
          %2245 = vmatprep.subr.mxu0 0.0
          %2246 = vmatpush1.msra.mxu0 0.0
          %2247 = vmatprep.subr.mxu0 0.0
          %2248 = vmatpush1.msra.mxu0 0.0
          %2249 = vmatprep.subr.mxu0 0.0
          %2250 = vmatpush1.msra.mxu0 0.0
          %2251 = vmatprep.subr.mxu0 0.0
          %2252 = vmatpush1.msra.mxu0 0.0
          %2253 = vmatprep.subr.mxu0 0.0
          %2254 = vmatpush1.msra.mxu0 0.0
          %2255 = vmatprep.subr.mxu0 0.0
          %2256 = vmatpush1.msra.mxu0 0.0
          %2257 = vmatprep.subr.mxu0 0.0
          %2258 = vmatpush1.msra.mxu0 0.0
          %2259 = vmatprep.subr.mxu0 0.0
          %2260 = vmatpush1.msra.mxu0 0.0
          %2261 = vmatprep.subr.mxu0 0.0
          %2262 = vmatpush1.msra.mxu0 0.0
          %2263 = vmatprep.subr.mxu0 0.0
          %2264 = vmatpush1.msra.mxu0 0.0
          %2265 = vmatprep.subr.mxu0 0.0
          %2266 = vmatpush1.msra.mxu0 0.0
          %2267 = vmatprep.subr.mxu0 0.0
          %2268 = vmatpush1.msra.mxu0 0.0
          %2269 = vmatprep.subr.mxu0 0.0
          %2270 = vmatpush1.msra.mxu0 0.0
          %2271 = vmatprep.subr.mxu0 0.0
          %2272 = vmatpush1.msra.mxu0 0.0
          %2273 = vmatprep.subr.mxu0 0.0
          %2274 = vmatpush1.msra.mxu0 0.0
          %2275 = vmatprep.subr.mxu0 0.0
          %2276 = vmatpush1.msra.mxu0 0.0
          %2277 = vmatprep.mubr.f32.mxu0 0.0
          %2278 = vmatmul.mubr.f32.gmra.mrb[0].mxu0 %v2205
          %v2279 = vpop.f32.mrb[0].mxu0
          %v2280 = vadd.f32 0.0, %v2279
          %v2281 = vpop.f32.mrb[0].mxu0
          %2282 = vmatprep.mubr.f32.mxu0 0.0
          %2283 = vmatmul.mubr.f32.gmra.mrb[0].mxu0 %v2207
          %v2284 = vpop.f32.mrb[0].mxu0
          %v2285 = vadd.f32 0.0, %v2284
          %v2286 = vpop.f32.mrb[0].mxu0
          %2287 = vmatprep.mubr.f32.mxu0 0.0
          %2288 = vmatmul.mubr.f32.gmra.mrb[0].mxu0 %v2209
          %v2289 = vpop.f32.mrb[0].mxu0
          %v2290 = vadd.f32 0.0, %v2289
          %v2291 = vpop.f32.mrb[0].mxu0
          %2292 = vmatprep.mubr.f32.mxu0 0.0
          %2293 = vmatmul.mubr.f32.gmra.mrb[0].mxu0 %v2211
          %v2294 = vpop.f32.mrb[0].mxu0
          %v2295 = vadd.f32 0.0, %v2294
          %v2296 = vpop.f32.mrb[0].mxu0
          %2297 = vdwg.mxu0
          %2298 = vrot.lane.b32.xlu0 %v1067, 96
          %v2299 = vpop.permute.xlu0 %2298
          %2300 = vrot.lane.b32.xlu0 %v1068, 96
          %v2301 = vpop.permute.xlu0 %2300
          %2302 = vrot.lane.b32.xlu0 %v1069, 96
          %v2303 = vpop.permute.xlu0 %2302
          %2304 = vrot.lane.b32.xlu0 %v1070, 96
          %v2305 = vpop.permute.xlu0 %2304
          %v2306 = vsel %vm1072, %v2299, 0
          %v2308 = vsel %vm1072, %v2301, 0
          %v2310 = vsel %vm1072, %v2303, 0
          %v2312 = vsel %vm1072, %v2305, 0
          %2314 = vmatprep.subr.mxu0 0.0
          %2315 = vmatpush1.msra.mxu0 %v1071
          %2316 = vmatprep.subr.mxu0 0.0
          %2317 = vmatpush1.msra.mxu0 0.0
          %2318 = vmatprep.subr.mxu0 0.0
          %2319 = vmatpush1.msra.mxu0 0.0
          %2320 = vmatprep.subr.mxu0 0.0
          %2321 = vmatpush1.msra.mxu0 0.0
          %2322 = vmatprep.subr.mxu0 0.0
          %2323 = vmatpush1.msra.mxu0 0.0
          %2324 = vmatprep.subr.mxu0 0.0
          %2325 = vmatpush1.msra.mxu0 0.0
          %2326 = vmatprep.subr.mxu0 0.0
          %2327 = vmatpush1.msra.mxu0 0.0
          %2328 = vmatprep.subr.mxu0 0.0
          %2329 = vmatpush1.msra.mxu0 0.0
          %2330 = vmatprep.subr.mxu0 0.0
          %2331 = vmatpush1.msra.mxu0 0.0
          %2332 = vmatprep.subr.mxu0 0.0
          %2333 = vmatpush1.msra.mxu0 0.0
          %2334 = vmatprep.subr.mxu0 0.0
          %2335 = vmatpush1.msra.mxu0 0.0
          %2336 = vmatprep.subr.mxu0 0.0
          %2337 = vmatpush1.msra.mxu0 0.0
          %2338 = vmatprep.subr.mxu0 0.0
          %2339 = vmatpush1.msra.mxu0 0.0
          %2340 = vmatprep.subr.mxu0 0.0
          %2341 = vmatpush1.msra.mxu0 0.0
          %2342 = vmatprep.subr.mxu0 0.0
          %2343 = vmatpush1.msra.mxu0 0.0
          %2344 = vmatprep.subr.mxu0 0.0
          %2345 = vmatpush1.msra.mxu0 0.0
          %2346 = vmatprep.subr.mxu0 0.0
          %2347 = vmatpush1.msra.mxu0 0.0
          %2348 = vmatprep.subr.mxu0 0.0
          %2349 = vmatpush1.msra.mxu0 0.0
          %2350 = vmatprep.subr.mxu0 0.0
          %2351 = vmatpush1.msra.mxu0 0.0
          %2352 = vmatprep.subr.mxu0 0.0
          %2353 = vmatpush1.msra.mxu0 0.0
          %2354 = vmatprep.subr.mxu0 0.0
          %2355 = vmatpush1.msra.mxu0 0.0
          %2356 = vmatprep.subr.mxu0 0.0
          %2357 = vmatpush1.msra.mxu0 0.0
          %2358 = vmatprep.subr.mxu0 0.0
          %2359 = vmatpush1.msra.mxu0 0.0
          %2360 = vmatprep.subr.mxu0 0.0
          %2361 = vmatpush1.msra.mxu0 0.0
          %2362 = vmatprep.subr.mxu0 0.0
          %2363 = vmatpush1.msra.mxu0 0.0
          %2364 = vmatprep.subr.mxu0 0.0
          %2365 = vmatpush1.msra.mxu0 0.0
          %2366 = vmatprep.subr.mxu0 0.0
          %2367 = vmatpush1.msra.mxu0 0.0
          %2368 = vmatprep.subr.mxu0 0.0
          %2369 = vmatpush1.msra.mxu0 0.0
          %2370 = vmatprep.subr.mxu0 0.0
          %2371 = vmatpush1.msra.mxu0 0.0
          %2372 = vmatprep.subr.mxu0 0.0
          %2373 = vmatpush1.msra.mxu0 0.0
          %2374 = vmatprep.subr.mxu0 0.0
          %2375 = vmatpush1.msra.mxu0 0.0
          %2376 = vmatprep.subr.mxu0 0.0
          %2377 = vmatpush1.msra.mxu0 0.0
          %2378 = vmatprep.mubr.f32.mxu0 0.0
          %2379 = vmatmul.mubr.f32.gmra.mrb[0].mxu0 %v2306
          %v2380 = vpop.f32.mrb[0].mxu0
          %v2381 = vadd.f32 0.0, %v2380
          %v2382 = vpop.f32.mrb[0].mxu0
          %2383 = vmatprep.mubr.f32.mxu0 0.0
          %2384 = vmatmul.mubr.f32.gmra.mrb[0].mxu0 %v2308
          %v2385 = vpop.f32.mrb[0].mxu0
          %v2386 = vadd.f32 0.0, %v2385
          %v2387 = vpop.f32.mrb[0].mxu0
          %2388 = vmatprep.mubr.f32.mxu0 0.0
          %2389 = vmatmul.mubr.f32.gmra.mrb[0].mxu0 %v2310
          %v2390 = vpop.f32.mrb[0].mxu0
          %v2391 = vadd.f32 0.0, %v2390
          %v2392 = vpop.f32.mrb[0].mxu0
          %2393 = vmatprep.mubr.f32.mxu0 0.0
          %2394 = vmatmul.mubr.f32.gmra.mrb[0].mxu0 %v2312
          %v2395 = vpop.f32.mrb[0].mxu0
          %v2396 = vadd.f32 0.0, %v2395
          %v2397 = vpop.f32.mrb[0].mxu0
          %2398 = vdwg.mxu0
          %2403 = vrot.lane.b32.xlu0 %v2280, 16
          %v2404 = vpop.permute.xlu0 %2403
          %2405 = vrot.lane.b32.xlu0 %v2285, 16
          %v2406 = vpop.permute.xlu0 %2405
          %2407 = vrot.lane.b32.xlu0 %v2290, 16
          %v2408 = vpop.permute.xlu0 %2407
          %2409 = vrot.lane.b32.xlu0 %v2295, 16
          %v2410 = vpop.permute.xlu0 %2409
          %v2415 = vsel %vm881, %v2280, %v2404
          %v2416 = vsel %vm881, %v2285, %v2406
          %v2417 = vsel %vm881, %v2290, %v2408
          %v2418 = vsel %vm881, %v2295, %v2410
          %2423 = vrot.lane.b32.xlu0 %v2381, 16
          %v2424 = vpop.permute.xlu0 %2423
          %2425 = vrot.lane.b32.xlu0 %v2386, 16
          %v2426 = vpop.permute.xlu0 %2425
          %2427 = vrot.lane.b32.xlu0 %v2391, 16
          %v2428 = vpop.permute.xlu0 %2427
          %2429 = vrot.lane.b32.xlu0 %v2396, 16
          %v2430 = vpop.permute.xlu0 %2429
          %v2435 = vsel %vm881, %v2381, %v2424
          %v2436 = vsel %vm881, %v2386, %v2426
          %v2437 = vsel %vm881, %v2391, %v2428
          %v2438 = vsel %vm881, %v2396, %v2430
          %v2439 = vld [vmem:[%s456 + $0x8] sm:$0xff]
          %v2440 = vld [vmem:[%s456 + $0x18] sm:$0xff]
          %v2441 = vld [vmem:[%s456 + $0x28] sm:$0xff]
          %v2442 = vld [vmem:[%s456 + $0x38] sm:$0xff]
          %v2443 = vmul.f32 %v2439, %v2415
          %v2444 = vmul.f32 %v2440, %v2416
          %v2445 = vmul.f32 %v2441, %v2417
          %v2446 = vmul.f32 %v2442, %v2418
          %v2447 = vadd.f32 %v2443, %v2435
          %v2448 = vadd.f32 %v2444, %v2436
          %v2449 = vadd.f32 %v2445, %v2437
          %v2450 = vadd.f32 %v2446, %v2438
          %2451 = vst.msk [vmem:[%s442 + $0x8] sm:$0xff] %vm1319, %v2447
          %2452 = vst.msk [vmem:[%s442 + $0x18] sm:$0xff] %vm1319, %v2448
          %2453 = vst.msk [vmem:[%s442 + $0x28] sm:$0xff] %vm1319, %v2449
          %2454 = vst.msk [vmem:[%s442 + $0x38] sm:$0xff] %vm1319, %v2450
          %2455 = vrot.lane.b32.xlu0 %v1039, 88
          %v2456 = vpop.permute.xlu0 %2455
          %2457 = vrot.lane.b32.xlu0 %v1040, 88
          %v2458 = vpop.permute.xlu0 %2457
          %2459 = vrot.lane.b32.xlu0 %v1041, 88
          %v2460 = vpop.permute.xlu0 %2459
          %2461 = vrot.lane.b32.xlu0 %v1042, 88
          %v2462 = vpop.permute.xlu0 %2461
          %v2463 = vsel %vm1072, %v2456, 0
          %v2465 = vsel %vm1072, %v2458, 0
          %v2467 = vsel %vm1072, %v2460, 0
          %v2469 = vsel %vm1072, %v2462, 0
          %2471 = vmatprep.subr.mxu0 0.0
          %2472 = vmatpush1.msra.mxu0 %v1071
          %2473 = vmatprep.subr.mxu0 0.0
          %2474 = vmatpush1.msra.mxu0 0.0
          %2475 = vmatprep.subr.mxu0 0.0
          %2476 = vmatpush1.msra.mxu0 0.0
          %2477 = vmatprep.subr.mxu0 0.0
          %2478 = vmatpush1.msra.mxu0 0.0
          %2479 = vmatprep.subr.mxu0 0.0
          %2480 = vmatpush1.msra.mxu0 0.0
          %2481 = vmatprep.subr.mxu0 0.0
          %2482 = vmatpush1.msra.mxu0 0.0
          %2483 = vmatprep.subr.mxu0 0.0
          %2484 = vmatpush1.msra.mxu0 0.0
          %2485 = vmatprep.subr.mxu0 0.0
          %2486 = vmatpush1.msra.mxu0 0.0
          %2487 = vmatprep.subr.mxu0 0.0
          %2488 = vmatpush1.msra.mxu0 0.0
          %2489 = vmatprep.subr.mxu0 0.0
          %2490 = vmatpush1.msra.mxu0 0.0
          %2491 = vmatprep.subr.mxu0 0.0
          %2492 = vmatpush1.msra.mxu0 0.0
          %2493 = vmatprep.subr.mxu0 0.0
          %2494 = vmatpush1.msra.mxu0 0.0
          %2495 = vmatprep.subr.mxu0 0.0
          %2496 = vmatpush1.msra.mxu0 0.0
          %2497 = vmatprep.subr.mxu0 0.0
          %2498 = vmatpush1.msra.mxu0 0.0
          %2499 = vmatprep.subr.mxu0 0.0
          %2500 = vmatpush1.msra.mxu0 0.0
          %2501 = vmatprep.subr.mxu0 0.0
          %2502 = vmatpush1.msra.mxu0 0.0
          %2503 = vmatprep.subr.mxu0 0.0
          %2504 = vmatpush1.msra.mxu0 0.0
          %2505 = vmatprep.subr.mxu0 0.0
          %2506 = vmatpush1.msra.mxu0 0.0
          %2507 = vmatprep.subr.mxu0 0.0
          %2508 = vmatpush1.msra.mxu0 0.0
          %2509 = vmatprep.subr.mxu0 0.0
          %2510 = vmatpush1.msra.mxu0 0.0
          %2511 = vmatprep.subr.mxu0 0.0
          %2512 = vmatpush1.msra.mxu0 0.0
          %2513 = vmatprep.subr.mxu0 0.0
          %2514 = vmatpush1.msra.mxu0 0.0
          %2515 = vmatprep.subr.mxu0 0.0
          %2516 = vmatpush1.msra.mxu0 0.0
          %2517 = vmatprep.subr.mxu0 0.0
          %2518 = vmatpush1.msra.mxu0 0.0
          %2519 = vmatprep.subr.mxu0 0.0
          %2520 = vmatpush1.msra.mxu0 0.0
          %2521 = vmatprep.subr.mxu0 0.0
          %2522 = vmatpush1.msra.mxu0 0.0
          %2523 = vmatprep.subr.mxu0 0.0
          %2524 = vmatpush1.msra.mxu0 0.0
          %2525 = vmatprep.subr.mxu0 0.0
          %2526 = vmatpush1.msra.mxu0 0.0
          %2527 = vmatprep.subr.mxu0 0.0
          %2528 = vmatpush1.msra.mxu0 0.0
          %2529 = vmatprep.subr.mxu0 0.0
          %2530 = vmatpush1.msra.mxu0 0.0
          %2531 = vmatprep.subr.mxu0 0.0
          %2532 = vmatpush1.msra.mxu0 0.0
          %2533 = vmatprep.subr.mxu0 0.0
          %2534 = vmatpush1.msra.mxu0 0.0
          %2535 = vmatprep.mubr.f32.mxu0 0.0
          %2536 = vmatmul.mubr.f32.gmra.mrb[0].mxu0 %v2463
          %v2537 = vpop.f32.mrb[0].mxu0
          %v2538 = vadd.f32 0.0, %v2537
          %v2539 = vpop.f32.mrb[0].mxu0
          %2540 = vmatprep.mubr.f32.mxu0 0.0
          %2541 = vmatmul.mubr.f32.gmra.mrb[0].mxu0 %v2465
          %v2542 = vpop.f32.mrb[0].mxu0
          %v2543 = vadd.f32 0.0, %v2542
          %v2544 = vpop.f32.mrb[0].mxu0
          %2545 = vmatprep.mubr.f32.mxu0 0.0
          %2546 = vmatmul.mubr.f32.gmra.mrb[0].mxu0 %v2467
          %v2547 = vpop.f32.mrb[0].mxu0
          %v2548 = vadd.f32 0.0, %v2547
          %v2549 = vpop.f32.mrb[0].mxu0
          %2550 = vmatprep.mubr.f32.mxu0 0.0
          %2551 = vmatmul.mubr.f32.gmra.mrb[0].mxu0 %v2469
          %v2552 = vpop.f32.mrb[0].mxu0
          %v2553 = vadd.f32 0.0, %v2552
          %v2554 = vpop.f32.mrb[0].mxu0
          %2555 = vdwg.mxu0
          %2556 = vrot.lane.b32.xlu0 %v1067, 88
          %v2557 = vpop.permute.xlu0 %2556
          %2558 = vrot.lane.b32.xlu0 %v1068, 88
          %v2559 = vpop.permute.xlu0 %2558
          %2560 = vrot.lane.b32.xlu0 %v1069, 88
          %v2561 = vpop.permute.xlu0 %2560
          %2562 = vrot.lane.b32.xlu0 %v1070, 88
          %v2563 = vpop.permute.xlu0 %2562
          %v2564 = vsel %vm1072, %v2557, 0
          %v2566 = vsel %vm1072, %v2559, 0
          %v2568 = vsel %vm1072, %v2561, 0
          %v2570 = vsel %vm1072, %v2563, 0
          %2572 = vmatprep.subr.mxu0 0.0
          %2573 = vmatpush1.msra.mxu0 %v1071
          %2574 = vmatprep.subr.mxu0 0.0
          %2575 = vmatpush1.msra.mxu0 0.0
          %2576 = vmatprep.subr.mxu0 0.0
          %2577 = vmatpush1.msra.mxu0 0.0
          %2578 = vmatprep.subr.mxu0 0.0
          %2579 = vmatpush1.msra.mxu0 0.0
          %2580 = vmatprep.subr.mxu0 0.0
          %2581 = vmatpush1.msra.mxu0 0.0
          %2582 = vmatprep.subr.mxu0 0.0
          %2583 = vmatpush1.msra.mxu0 0.0
          %2584 = vmatprep.subr.mxu0 0.0
          %2585 = vmatpush1.msra.mxu0 0.0
          %2586 = vmatprep.subr.mxu0 0.0
          %2587 = vmatpush1.msra.mxu0 0.0
          %2588 = vmatprep.subr.mxu0 0.0
          %2589 = vmatpush1.msra.mxu0 0.0
          %2590 = vmatprep.subr.mxu0 0.0
          %2591 = vmatpush1.msra.mxu0 0.0
          %2592 = vmatprep.subr.mxu0 0.0
          %2593 = vmatpush1.msra.mxu0 0.0
          %2594 = vmatprep.subr.mxu0 0.0
          %2595 = vmatpush1.msra.mxu0 0.0
          %2596 = vmatprep.subr.mxu0 0.0
          %2597 = vmatpush1.msra.mxu0 0.0
          %2598 = vmatprep.subr.mxu0 0.0
          %2599 = vmatpush1.msra.mxu0 0.0
          %2600 = vmatprep.subr.mxu0 0.0
          %2601 = vmatpush1.msra.mxu0 0.0
          %2602 = vmatprep.subr.mxu0 0.0
          %2603 = vmatpush1.msra.mxu0 0.0
          %2604 = vmatprep.subr.mxu0 0.0
          %2605 = vmatpush1.msra.mxu0 0.0
          %2606 = vmatprep.subr.mxu0 0.0
          %2607 = vmatpush1.msra.mxu0 0.0
          %2608 = vmatprep.subr.mxu0 0.0
          %2609 = vmatpush1.msra.mxu0 0.0
          %2610 = vmatprep.subr.mxu0 0.0
          %2611 = vmatpush1.msra.mxu0 0.0
          %2612 = vmatprep.subr.mxu0 0.0
          %2613 = vmatpush1.msra.mxu0 0.0
          %2614 = vmatprep.subr.mxu0 0.0
          %2615 = vmatpush1.msra.mxu0 0.0
          %2616 = vmatprep.subr.mxu0 0.0
          %2617 = vmatpush1.msra.mxu0 0.0
          %2618 = vmatprep.subr.mxu0 0.0
          %2619 = vmatpush1.msra.mxu0 0.0
          %2620 = vmatprep.subr.mxu0 0.0
          %2621 = vmatpush1.msra.mxu0 0.0
          %2622 = vmatprep.subr.mxu0 0.0
          %2623 = vmatpush1.msra.mxu0 0.0
          %2624 = vmatprep.subr.mxu0 0.0
          %2625 = vmatpush1.msra.mxu0 0.0
          %2626 = vmatprep.subr.mxu0 0.0
          %2627 = vmatpush1.msra.mxu0 0.0
          %2628 = vmatprep.subr.mxu0 0.0
          %2629 = vmatpush1.msra.mxu0 0.0
          %2630 = vmatprep.subr.mxu0 0.0
          %2631 = vmatpush1.msra.mxu0 0.0
          %2632 = vmatprep.subr.mxu0 0.0
          %2633 = vmatpush1.msra.mxu0 0.0
          %2634 = vmatprep.subr.mxu0 0.0
          %2635 = vmatpush1.msra.mxu0 0.0
          %2636 = vmatprep.mubr.f32.mxu0 0.0
          %2637 = vmatmul.mubr.f32.gmra.mrb[0].mxu0 %v2564
          %v2638 = vpop.f32.mrb[0].mxu0
          %v2639 = vadd.f32 0.0, %v2638
          %v2640 = vpop.f32.mrb[0].mxu0
          %2641 = vmatprep.mubr.f32.mxu0 0.0
          %2642 = vmatmul.mubr.f32.gmra.mrb[0].mxu0 %v2566
          %v2643 = vpop.f32.mrb[0].mxu0
          %v2644 = vadd.f32 0.0, %v2643
          %v2645 = vpop.f32.mrb[0].mxu0
          %2646 = vmatprep.mubr.f32.mxu0 0.0
          %2647 = vmatmul.mubr.f32.gmra.mrb[0].mxu0 %v2568
          %v2648 = vpop.f32.mrb[0].mxu0
          %v2649 = vadd.f32 0.0, %v2648
          %v2650 = vpop.f32.mrb[0].mxu0
          %2651 = vmatprep.mubr.f32.mxu0 0.0
          %2652 = vmatmul.mubr.f32.gmra.mrb[0].mxu0 %v2570
          %v2653 = vpop.f32.mrb[0].mxu0
          %v2654 = vadd.f32 0.0, %v2653
          %v2655 = vpop.f32.mrb[0].mxu0
          %2656 = vdwg.mxu0
          %2661 = vrot.lane.b32.xlu0 %v2538, 16
          %v2662 = vpop.permute.xlu0 %2661
          %2663 = vrot.lane.b32.xlu0 %v2543, 16
          %v2664 = vpop.permute.xlu0 %2663
          %2665 = vrot.lane.b32.xlu0 %v2548, 16
          %v2666 = vpop.permute.xlu0 %2665
          %2667 = vrot.lane.b32.xlu0 %v2553, 16
          %v2668 = vpop.permute.xlu0 %2667
          %v2673 = vsel %vm881, %v2538, %v2662
          %v2674 = vsel %vm881, %v2543, %v2664
          %v2675 = vsel %vm881, %v2548, %v2666
          %v2676 = vsel %vm881, %v2553, %v2668
          %2681 = vrot.lane.b32.xlu0 %v2639, 16
          %v2682 = vpop.permute.xlu0 %2681
          %2683 = vrot.lane.b32.xlu0 %v2644, 16
          %v2684 = vpop.permute.xlu0 %2683
          %2685 = vrot.lane.b32.xlu0 %v2649, 16
          %v2686 = vpop.permute.xlu0 %2685
          %2687 = vrot.lane.b32.xlu0 %v2654, 16
          %v2688 = vpop.permute.xlu0 %2687
          %v2693 = vsel %vm881, %v2639, %v2682
          %v2694 = vsel %vm881, %v2644, %v2684
          %v2695 = vsel %vm881, %v2649, %v2686
          %v2696 = vsel %vm881, %v2654, %v2688
          %v2697 = vld [vmem:[%s456 + $0x8] sm:$0xff]
          %v2698 = vld [vmem:[%s456 + $0x18] sm:$0xff]
          %v2699 = vld [vmem:[%s456 + $0x28] sm:$0xff]
          %v2700 = vld [vmem:[%s456 + $0x38] sm:$0xff]
          %2705 = vrot.lane.b32.xlu0 %v2673, 32
          %v2706 = vpop.permute.xlu0 %2705
          %2707 = vrot.lane.b32.xlu0 %v2674, 32
          %v2708 = vpop.permute.xlu0 %2707
          %2709 = vrot.lane.b32.xlu0 %v2675, 32
          %v2710 = vpop.permute.xlu0 %2709
          %2711 = vrot.lane.b32.xlu0 %v2676, 32
          %v2712 = vpop.permute.xlu0 %2711
          %v2717 = vmul.f32 %v2697, %v2706
          %v2718 = vmul.f32 %v2698, %v2708
          %v2719 = vmul.f32 %v2699, %v2710
          %v2720 = vmul.f32 %v2700, %v2712
          %2725 = vrot.lane.b32.xlu0 %v2693, 32
          %v2726 = vpop.permute.xlu0 %2725
          %2727 = vrot.lane.b32.xlu0 %v2694, 32
          %v2728 = vpop.permute.xlu0 %2727
          %2729 = vrot.lane.b32.xlu0 %v2695, 32
          %v2730 = vpop.permute.xlu0 %2729
          %2731 = vrot.lane.b32.xlu0 %v2696, 32
          %v2732 = vpop.permute.xlu0 %2731
          %v2737 = vadd.f32 %v2717, %v2726
          %v2738 = vadd.f32 %v2718, %v2728
          %v2739 = vadd.f32 %v2719, %v2730
          %v2740 = vadd.f32 %v2720, %v2732
          %2741 = vst.msk [vmem:[%s442 + $0x8] sm:$0xff] %vm1610, %v2737
          %2742 = vst.msk [vmem:[%s442 + $0x18] sm:$0xff] %vm1610, %v2738
          %2743 = vst.msk [vmem:[%s442 + $0x28] sm:$0xff] %vm1610, %v2739
          %2744 = vst.msk [vmem:[%s442 + $0x38] sm:$0xff] %vm1610, %v2740
          %2745 = vrot.lane.b32.xlu0 %v1039, 80
          %v2746 = vpop.permute.xlu0 %2745
          %2747 = vrot.lane.b32.xlu0 %v1040, 80
          %v2748 = vpop.permute.xlu0 %2747
          %2749 = vrot.lane.b32.xlu0 %v1041, 80
          %v2750 = vpop.permute.xlu0 %2749
          %2751 = vrot.lane.b32.xlu0 %v1042, 80
          %v2752 = vpop.permute.xlu0 %2751
          %v2753 = vsel %vm1072, %v2746, 0
          %v2755 = vsel %vm1072, %v2748, 0
          %v2757 = vsel %vm1072, %v2750, 0
          %v2759 = vsel %vm1072, %v2752, 0
          %2761 = vmatprep.subr.mxu0 0.0
          %2762 = vmatpush1.msra.mxu0 %v1071
          %2763 = vmatprep.subr.mxu0 0.0
          %2764 = vmatpush1.msra.mxu0 0.0
          %2765 = vmatprep.subr.mxu0 0.0
          %2766 = vmatpush1.msra.mxu0 0.0
          %2767 = vmatprep.subr.mxu0 0.0
          %2768 = vmatpush1.msra.mxu0 0.0
          %2769 = vmatprep.subr.mxu0 0.0
          %2770 = vmatpush1.msra.mxu0 0.0
          %2771 = vmatprep.subr.mxu0 0.0
          %2772 = vmatpush1.msra.mxu0 0.0
          %2773 = vmatprep.subr.mxu0 0.0
          %2774 = vmatpush1.msra.mxu0 0.0
          %2775 = vmatprep.subr.mxu0 0.0
          %2776 = vmatpush1.msra.mxu0 0.0
          %2777 = vmatprep.subr.mxu0 0.0
          %2778 = vmatpush1.msra.mxu0 0.0
          %2779 = vmatprep.subr.mxu0 0.0
          %2780 = vmatpush1.msra.mxu0 0.0
          %2781 = vmatprep.subr.mxu0 0.0
          %2782 = vmatpush1.msra.mxu0 0.0
          %2783 = vmatprep.subr.mxu0 0.0
          %2784 = vmatpush1.msra.mxu0 0.0
          %2785 = vmatprep.subr.mxu0 0.0
          %2786 = vmatpush1.msra.mxu0 0.0
          %2787 = vmatprep.subr.mxu0 0.0
          %2788 = vmatpush1.msra.mxu0 0.0
          %2789 = vmatprep.subr.mxu0 0.0
          %2790 = vmatpush1.msra.mxu0 0.0
          %2791 = vmatprep.subr.mxu0 0.0
          %2792 = vmatpush1.msra.mxu0 0.0
          %2793 = vmatprep.subr.mxu0 0.0
          %2794 = vmatpush1.msra.mxu0 0.0
          %2795 = vmatprep.subr.mxu0 0.0
          %2796 = vmatpush1.msra.mxu0 0.0
          %2797 = vmatprep.subr.mxu0 0.0
          %2798 = vmatpush1.msra.mxu0 0.0
          %2799 = vmatprep.subr.mxu0 0.0
          %2800 = vmatpush1.msra.mxu0 0.0
          %2801 = vmatprep.subr.mxu0 0.0
          %2802 = vmatpush1.msra.mxu0 0.0
          %2803 = vmatprep.subr.mxu0 0.0
          %2804 = vmatpush1.msra.mxu0 0.0
          %2805 = vmatprep.subr.mxu0 0.0
          %2806 = vmatpush1.msra.mxu0 0.0
          %2807 = vmatprep.subr.mxu0 0.0
          %2808 = vmatpush1.msra.mxu0 0.0
          %2809 = vmatprep.subr.mxu0 0.0
          %2810 = vmatpush1.msra.mxu0 0.0
          %2811 = vmatprep.subr.mxu0 0.0
          %2812 = vmatpush1.msra.mxu0 0.0
          %2813 = vmatprep.subr.mxu0 0.0
          %2814 = vmatpush1.msra.mxu0 0.0
          %2815 = vmatprep.subr.mxu0 0.0
          %2816 = vmatpush1.msra.mxu0 0.0
          %2817 = vmatprep.subr.mxu0 0.0
          %2818 = vmatpush1.msra.mxu0 0.0
          %2819 = vmatprep.subr.mxu0 0.0
          %2820 = vmatpush1.msra.mxu0 0.0
          %2821 = vmatprep.subr.mxu0 0.0
          %2822 = vmatpush1.msra.mxu0 0.0
          %2823 = vmatprep.subr.mxu0 0.0
          %2824 = vmatpush1.msra.mxu0 0.0
          %2825 = vmatprep.mubr.f32.mxu0 0.0
          %2826 = vmatmul.mubr.f32.gmra.mrb[0].mxu0 %v2753
          %v2827 = vpop.f32.mrb[0].mxu0
          %v2828 = vadd.f32 0.0, %v2827
          %v2829 = vpop.f32.mrb[0].mxu0
          %2830 = vmatprep.mubr.f32.mxu0 0.0
          %2831 = vmatmul.mubr.f32.gmra.mrb[0].mxu0 %v2755
          %v2832 = vpop.f32.mrb[0].mxu0
          %v2833 = vadd.f32 0.0, %v2832
          %v2834 = vpop.f32.mrb[0].mxu0
          %2835 = vmatprep.mubr.f32.mxu0 0.0
          %2836 = vmatmul.mubr.f32.gmra.mrb[0].mxu0 %v2757
          %v2837 = vpop.f32.mrb[0].mxu0
          %v2838 = vadd.f32 0.0, %v2837
          %v2839 = vpop.f32.mrb[0].mxu0
          %2840 = vmatprep.mubr.f32.mxu0 0.0
          %2841 = vmatmul.mubr.f32.gmra.mrb[0].mxu0 %v2759
          %v2842 = vpop.f32.mrb[0].mxu0
          %v2843 = vadd.f32 0.0, %v2842
          %v2844 = vpop.f32.mrb[0].mxu0
          %2845 = vdwg.mxu0
          %2846 = vrot.lane.b32.xlu0 %v1067, 80
          %v2847 = vpop.permute.xlu0 %2846
          %2848 = vrot.lane.b32.xlu0 %v1068, 80
          %v2849 = vpop.permute.xlu0 %2848
          %2850 = vrot.lane.b32.xlu0 %v1069, 80
          %v2851 = vpop.permute.xlu0 %2850
          %2852 = vrot.lane.b32.xlu0 %v1070, 80
          %v2853 = vpop.permute.xlu0 %2852
          %v2854 = vsel %vm1072, %v2847, 0
          %v2856 = vsel %vm1072, %v2849, 0
          %v2858 = vsel %vm1072, %v2851, 0
          %v2860 = vsel %vm1072, %v2853, 0
          %2862 = vmatprep.subr.mxu0 0.0
          %2863 = vmatpush1.msra.mxu0 %v1071
          %2864 = vmatprep.subr.mxu0 0.0
          %2865 = vmatpush1.msra.mxu0 0.0
          %2866 = vmatprep.subr.mxu0 0.0
          %2867 = vmatpush1.msra.mxu0 0.0
          %2868 = vmatprep.subr.mxu0 0.0
          %2869 = vmatpush1.msra.mxu0 0.0
          %2870 = vmatprep.subr.mxu0 0.0
          %2871 = vmatpush1.msra.mxu0 0.0
          %2872 = vmatprep.subr.mxu0 0.0
          %2873 = vmatpush1.msra.mxu0 0.0
          %2874 = vmatprep.subr.mxu0 0.0
          %2875 = vmatpush1.msra.mxu0 0.0
          %2876 = vmatprep.subr.mxu0 0.0
          %2877 = vmatpush1.msra.mxu0 0.0
          %2878 = vmatprep.subr.mxu0 0.0
          %2879 = vmatpush1.msra.mxu0 0.0
          %2880 = vmatprep.subr.mxu0 0.0
          %2881 = vmatpush1.msra.mxu0 0.0
          %2882 = vmatprep.subr.mxu0 0.0
          %2883 = vmatpush1.msra.mxu0 0.0
          %2884 = vmatprep.subr.mxu0 0.0
          %2885 = vmatpush1.msra.mxu0 0.0
          %2886 = vmatprep.subr.mxu0 0.0
          %2887 = vmatpush1.msra.mxu0 0.0
          %2888 = vmatprep.subr.mxu0 0.0
          %2889 = vmatpush1.msra.mxu0 0.0
          %2890 = vmatprep.subr.mxu0 0.0
          %2891 = vmatpush1.msra.mxu0 0.0
          %2892 = vmatprep.subr.mxu0 0.0
          %2893 = vmatpush1.msra.mxu0 0.0
          %2894 = vmatprep.subr.mxu0 0.0
          %2895 = vmatpush1.msra.mxu0 0.0
          %2896 = vmatprep.subr.mxu0 0.0
          %2897 = vmatpush1.msra.mxu0 0.0
          %2898 = vmatprep.subr.mxu0 0.0
          %2899 = vmatpush1.msra.mxu0 0.0
          %2900 = vmatprep.subr.mxu0 0.0
          %2901 = vmatpush1.msra.mxu0 0.0
          %2902 = vmatprep.subr.mxu0 0.0
          %2903 = vmatpush1.msra.mxu0 0.0
          %2904 = vmatprep.subr.mxu0 0.0
          %2905 = vmatpush1.msra.mxu0 0.0
          %2906 = vmatprep.subr.mxu0 0.0
          %2907 = vmatpush1.msra.mxu0 0.0
          %2908 = vmatprep.subr.mxu0 0.0
          %2909 = vmatpush1.msra.mxu0 0.0
          %2910 = vmatprep.subr.mxu0 0.0
          %2911 = vmatpush1.msra.mxu0 0.0
          %2912 = vmatprep.subr.mxu0 0.0
          %2913 = vmatpush1.msra.mxu0 0.0
          %2914 = vmatprep.subr.mxu0 0.0
          %2915 = vmatpush1.msra.mxu0 0.0
          %2916 = vmatprep.subr.mxu0 0.0
          %2917 = vmatpush1.msra.mxu0 0.0
          %2918 = vmatprep.subr.mxu0 0.0
          %2919 = vmatpush1.msra.mxu0 0.0
          %2920 = vmatprep.subr.mxu0 0.0
          %2921 = vmatpush1.msra.mxu0 0.0
          %2922 = vmatprep.subr.mxu0 0.0
          %2923 = vmatpush1.msra.mxu0 0.0
          %2924 = vmatprep.subr.mxu0 0.0
          %2925 = vmatpush1.msra.mxu0 0.0
          %2926 = vmatprep.mubr.f32.mxu0 0.0
          %2927 = vmatmul.mubr.f32.gmra.mrb[0].mxu0 %v2854
          %v2928 = vpop.f32.mrb[0].mxu0
          %v2929 = vadd.f32 0.0, %v2928
          %v2930 = vpop.f32.mrb[0].mxu0
          %2931 = vmatprep.mubr.f32.mxu0 0.0
          %2932 = vmatmul.mubr.f32.gmra.mrb[0].mxu0 %v2856
          %v2933 = vpop.f32.mrb[0].mxu0
          %v2934 = vadd.f32 0.0, %v2933
          %v2935 = vpop.f32.mrb[0].mxu0
          %2936 = vmatprep.mubr.f32.mxu0 0.0
          %2937 = vmatmul.mubr.f32.gmra.mrb[0].mxu0 %v2858
          %v2938 = vpop.f32.mrb[0].mxu0
          %v2939 = vadd.f32 0.0, %v2938
          %v2940 = vpop.f32.mrb[0].mxu0
          %2941 = vmatprep.mubr.f32.mxu0 0.0
          %2942 = vmatmul.mubr.f32.gmra.mrb[0].mxu0 %v2860
          %v2943 = vpop.f32.mrb[0].mxu0
          %v2944 = vadd.f32 0.0, %v2943
          %v2945 = vpop.f32.mrb[0].mxu0
          %2946 = vdwg.mxu0
          %2951 = vrot.lane.b32.xlu0 %v2828, 16
          %v2952 = vpop.permute.xlu0 %2951
          %2953 = vrot.lane.b32.xlu0 %v2833, 16
          %v2954 = vpop.permute.xlu0 %2953
          %2955 = vrot.lane.b32.xlu0 %v2838, 16
          %v2956 = vpop.permute.xlu0 %2955
          %2957 = vrot.lane.b32.xlu0 %v2843, 16
          %v2958 = vpop.permute.xlu0 %2957
          %v2963 = vsel %vm881, %v2828, %v2952
          %v2964 = vsel %vm881, %v2833, %v2954
          %v2965 = vsel %vm881, %v2838, %v2956
          %v2966 = vsel %vm881, %v2843, %v2958
          %2971 = vrot.lane.b32.xlu0 %v2929, 16
          %v2972 = vpop.permute.xlu0 %2971
          %2973 = vrot.lane.b32.xlu0 %v2934, 16
          %v2974 = vpop.permute.xlu0 %2973
          %2975 = vrot.lane.b32.xlu0 %v2939, 16
          %v2976 = vpop.permute.xlu0 %2975
          %2977 = vrot.lane.b32.xlu0 %v2944, 16
          %v2978 = vpop.permute.xlu0 %2977
          %v2983 = vsel %vm881, %v2929, %v2972
          %v2984 = vsel %vm881, %v2934, %v2974
          %v2985 = vsel %vm881, %v2939, %v2976
          %v2986 = vsel %vm881, %v2944, %v2978
          %v2987 = vld [vmem:[%s456 + $0x8] sm:$0xff]
          %v2988 = vld [vmem:[%s456 + $0x18] sm:$0xff]
          %v2989 = vld [vmem:[%s456 + $0x28] sm:$0xff]
          %v2990 = vld [vmem:[%s456 + $0x38] sm:$0xff]
          %2995 = vrot.lane.b32.xlu0 %v2963, 64
          %v2996 = vpop.permute.xlu0 %2995
          %2997 = vrot.lane.b32.xlu0 %v2964, 64
          %v2998 = vpop.permute.xlu0 %2997
          %2999 = vrot.lane.b32.xlu0 %v2965, 64
          %v3000 = vpop.permute.xlu0 %2999
          %3001 = vrot.lane.b32.xlu0 %v2966, 64
          %v3002 = vpop.permute.xlu0 %3001
          %v3007 = vmul.f32 %v2987, %v2996
          %v3008 = vmul.f32 %v2988, %v2998
          %v3009 = vmul.f32 %v2989, %v3000
          %v3010 = vmul.f32 %v2990, %v3002
          %3015 = vrot.lane.b32.xlu0 %v2983, 64
          %v3016 = vpop.permute.xlu0 %3015
          %3017 = vrot.lane.b32.xlu0 %v2984, 64
          %v3018 = vpop.permute.xlu0 %3017
          %3019 = vrot.lane.b32.xlu0 %v2985, 64
          %v3020 = vpop.permute.xlu0 %3019
          %3021 = vrot.lane.b32.xlu0 %v2986, 64
          %v3022 = vpop.permute.xlu0 %3021
          %v3027 = vadd.f32 %v3007, %v3016
          %v3028 = vadd.f32 %v3008, %v3018
          %v3029 = vadd.f32 %v3009, %v3020
          %v3030 = vadd.f32 %v3010, %v3022
          %3031 = vst.msk [vmem:[%s442 + $0x8] sm:$0xff] %vm1901, %v3027
          %3032 = vst.msk [vmem:[%s442 + $0x18] sm:$0xff] %vm1901, %v3028
          %3033 = vst.msk [vmem:[%s442 + $0x28] sm:$0xff] %vm1901, %v3029
          %3034 = vst.msk [vmem:[%s442 + $0x38] sm:$0xff] %vm1901, %v3030
          %3035 = vrot.lane.b32.xlu0 %v1039, 72
          %v3036 = vpop.permute.xlu0 %3035
          %3037 = vrot.lane.b32.xlu0 %v1040, 72
          %v3038 = vpop.permute.xlu0 %3037
          %3039 = vrot.lane.b32.xlu0 %v1041, 72
          %v3040 = vpop.permute.xlu0 %3039
          %3041 = vrot.lane.b32.xlu0 %v1042, 72
          %v3042 = vpop.permute.xlu0 %3041
          %v3043 = vsel %vm1072, %v3036, 0
          %v3045 = vsel %vm1072, %v3038, 0
          %v3047 = vsel %vm1072, %v3040, 0
          %v3049 = vsel %vm1072, %v3042, 0
          %3051 = vmatprep.subr.mxu0 0.0
          %3052 = vmatpush1.msra.mxu0 %v1071
          %3053 = vmatprep.subr.mxu0 0.0
          %3054 = vmatpush1.msra.mxu0 0.0
          %3055 = vmatprep.subr.mxu0 0.0
          %3056 = vmatpush1.msra.mxu0 0.0
          %3057 = vmatprep.subr.mxu0 0.0
          %3058 = vmatpush1.msra.mxu0 0.0
          %3059 = vmatprep.subr.mxu0 0.0
          %3060 = vmatpush1.msra.mxu0 0.0
          %3061 = vmatprep.subr.mxu0 0.0
          %3062 = vmatpush1.msra.mxu0 0.0
          %3063 = vmatprep.subr.mxu0 0.0
          %3064 = vmatpush1.msra.mxu0 0.0
          %3065 = vmatprep.subr.mxu0 0.0
          %3066 = vmatpush1.msra.mxu0 0.0
          %3067 = vmatprep.subr.mxu0 0.0
          %3068 = vmatpush1.msra.mxu0 0.0
          %3069 = vmatprep.subr.mxu0 0.0
          %3070 = vmatpush1.msra.mxu0 0.0
          %3071 = vmatprep.subr.mxu0 0.0
          %3072 = vmatpush1.msra.mxu0 0.0
          %3073 = vmatprep.subr.mxu0 0.0
          %3074 = vmatpush1.msra.mxu0 0.0
          %3075 = vmatprep.subr.mxu0 0.0
          %3076 = vmatpush1.msra.mxu0 0.0
          %3077 = vmatprep.subr.mxu0 0.0
          %3078 = vmatpush1.msra.mxu0 0.0
          %3079 = vmatprep.subr.mxu0 0.0
          %3080 = vmatpush1.msra.mxu0 0.0
          %3081 = vmatprep.subr.mxu0 0.0
          %3082 = vmatpush1.msra.mxu0 0.0
          %3083 = vmatprep.subr.mxu0 0.0
          %3084 = vmatpush1.msra.mxu0 0.0
          %3085 = vmatprep.subr.mxu0 0.0
          %3086 = vmatpush1.msra.mxu0 0.0
          %3087 = vmatprep.subr.mxu0 0.0
          %3088 = vmatpush1.msra.mxu0 0.0
          %3089 = vmatprep.subr.mxu0 0.0
          %3090 = vmatpush1.msra.mxu0 0.0
          %3091 = vmatprep.subr.mxu0 0.0
          %3092 = vmatpush1.msra.mxu0 0.0
          %3093 = vmatprep.subr.mxu0 0.0
          %3094 = vmatpush1.msra.mxu0 0.0
          %3095 = vmatprep.subr.mxu0 0.0
          %3096 = vmatpush1.msra.mxu0 0.0
          %3097 = vmatprep.subr.mxu0 0.0
          %3098 = vmatpush1.msra.mxu0 0.0
          %3099 = vmatprep.subr.mxu0 0.0
          %3100 = vmatpush1.msra.mxu0 0.0
          %3101 = vmatprep.subr.mxu0 0.0
          %3102 = vmatpush1.msra.mxu0 0.0
          %3103 = vmatprep.subr.mxu0 0.0
          %3104 = vmatpush1.msra.mxu0 0.0
          %3105 = vmatprep.subr.mxu0 0.0
          %3106 = vmatpush1.msra.mxu0 0.0
          %3107 = vmatprep.subr.mxu0 0.0
          %3108 = vmatpush1.msra.mxu0 0.0
          %3109 = vmatprep.subr.mxu0 0.0
          %3110 = vmatpush1.msra.mxu0 0.0
          %3111 = vmatprep.subr.mxu0 0.0
          %3112 = vmatpush1.msra.mxu0 0.0
          %3113 = vmatprep.subr.mxu0 0.0
          %3114 = vmatpush1.msra.mxu0 0.0
          %3115 = vmatprep.mubr.f32.mxu0 0.0
          %3116 = vmatmul.mubr.f32.gmra.mrb[0].mxu0 %v3043
          %v3117 = vpop.f32.mrb[0].mxu0
          %v3118 = vadd.f32 0.0, %v3117
          %v3119 = vpop.f32.mrb[0].mxu0
          %3120 = vmatprep.mubr.f32.mxu0 0.0
          %3121 = vmatmul.mubr.f32.gmra.mrb[0].mxu0 %v3045
          %v3122 = vpop.f32.mrb[0].mxu0
          %v3123 = vadd.f32 0.0, %v3122
          %v3124 = vpop.f32.mrb[0].mxu0
          %3125 = vmatprep.mubr.f32.mxu0 0.0
          %3126 = vmatmul.mubr.f32.gmra.mrb[0].mxu0 %v3047
          %v3127 = vpop.f32.mrb[0].mxu0
          %v3128 = vadd.f32 0.0, %v3127
          %v3129 = vpop.f32.mrb[0].mxu0
          %3130 = vmatprep.mubr.f32.mxu0 0.0
          %3131 = vmatmul.mubr.f32.gmra.mrb[0].mxu0 %v3049
          %v3132 = vpop.f32.mrb[0].mxu0
          %v3133 = vadd.f32 0.0, %v3132
          %v3134 = vpop.f32.mrb[0].mxu0
          %3135 = vdwg.mxu0
          %3136 = vrot.lane.b32.xlu0 %v1067, 72
          %v3137 = vpop.permute.xlu0 %3136
          %3138 = vrot.lane.b32.xlu0 %v1068, 72
          %v3139 = vpop.permute.xlu0 %3138
          %3140 = vrot.lane.b32.xlu0 %v1069, 72
          %v3141 = vpop.permute.xlu0 %3140
          %3142 = vrot.lane.b32.xlu0 %v1070, 72
          %v3143 = vpop.permute.xlu0 %3142
          %v3144 = vsel %vm1072, %v3137, 0
          %v3146 = vsel %vm1072, %v3139, 0
          %v3148 = vsel %vm1072, %v3141, 0
          %v3150 = vsel %vm1072, %v3143, 0
          %3152 = vmatprep.subr.mxu0 0.0
          %3153 = vmatpush1.msra.mxu0 %v1071
          %3154 = vmatprep.subr.mxu0 0.0
          %3155 = vmatpush1.msra.mxu0 0.0
          %3156 = vmatprep.subr.mxu0 0.0
          %3157 = vmatpush1.msra.mxu0 0.0
          %3158 = vmatprep.subr.mxu0 0.0
          %3159 = vmatpush1.msra.mxu0 0.0
          %3160 = vmatprep.subr.mxu0 0.0
          %3161 = vmatpush1.msra.mxu0 0.0
          %3162 = vmatprep.subr.mxu0 0.0
          %3163 = vmatpush1.msra.mxu0 0.0
          %3164 = vmatprep.subr.mxu0 0.0
          %3165 = vmatpush1.msra.mxu0 0.0
          %3166 = vmatprep.subr.mxu0 0.0
          %3167 = vmatpush1.msra.mxu0 0.0
          %3168 = vmatprep.subr.mxu0 0.0
          %3169 = vmatpush1.msra.mxu0 0.0
          %3170 = vmatprep.subr.mxu0 0.0
          %3171 = vmatpush1.msra.mxu0 0.0
          %3172 = vmatprep.subr.mxu0 0.0
          %3173 = vmatpush1.msra.mxu0 0.0
          %3174 = vmatprep.subr.mxu0 0.0
          %3175 = vmatpush1.msra.mxu0 0.0
          %3176 = vmatprep.subr.mxu0 0.0
          %3177 = vmatpush1.msra.mxu0 0.0
          %3178 = vmatprep.subr.mxu0 0.0
          %3179 = vmatpush1.msra.mxu0 0.0
          %3180 = vmatprep.subr.mxu0 0.0
          %3181 = vmatpush1.msra.mxu0 0.0
          %3182 = vmatprep.subr.mxu0 0.0
          %3183 = vmatpush1.msra.mxu0 0.0
          %3184 = vmatprep.subr.mxu0 0.0
          %3185 = vmatpush1.msra.mxu0 0.0
          %3186 = vmatprep.subr.mxu0 0.0
          %3187 = vmatpush1.msra.mxu0 0.0
          %3188 = vmatprep.subr.mxu0 0.0
          %3189 = vmatpush1.msra.mxu0 0.0
          %3190 = vmatprep.subr.mxu0 0.0
          %3191 = vmatpush1.msra.mxu0 0.0
          %3192 = vmatprep.subr.mxu0 0.0
          %3193 = vmatpush1.msra.mxu0 0.0
          %3194 = vmatprep.subr.mxu0 0.0
          %3195 = vmatpush1.msra.mxu0 0.0
          %3196 = vmatprep.subr.mxu0 0.0
          %3197 = vmatpush1.msra.mxu0 0.0
          %3198 = vmatprep.subr.mxu0 0.0
          %3199 = vmatpush1.msra.mxu0 0.0
          %3200 = vmatprep.subr.mxu0 0.0
          %3201 = vmatpush1.msra.mxu0 0.0
          %3202 = vmatprep.subr.mxu0 0.0
          %3203 = vmatpush1.msra.mxu0 0.0
          %3204 = vmatprep.subr.mxu0 0.0
          %3205 = vmatpush1.msra.mxu0 0.0
          %3206 = vmatprep.subr.mxu0 0.0
          %3207 = vmatpush1.msra.mxu0 0.0
          %3208 = vmatprep.subr.mxu0 0.0
          %3209 = vmatpush1.msra.mxu0 0.0
          %3210 = vmatprep.subr.mxu0 0.0
          %3211 = vmatpush1.msra.mxu0 0.0
          %3212 = vmatprep.subr.mxu0 0.0
          %3213 = vmatpush1.msra.mxu0 0.0
          %3214 = vmatprep.subr.mxu0 0.0
          %3215 = vmatpush1.msra.mxu0 0.0
          %3216 = vmatprep.mubr.f32.mxu0 0.0
          %3217 = vmatmul.mubr.f32.gmra.mrb[0].mxu0 %v3144
          %v3218 = vpop.f32.mrb[0].mxu0
          %v3219 = vadd.f32 0.0, %v3218
          %v3220 = vpop.f32.mrb[0].mxu0
          %3221 = vmatprep.mubr.f32.mxu0 0.0
          %3222 = vmatmul.mubr.f32.gmra.mrb[0].mxu0 %v3146
          %v3223 = vpop.f32.mrb[0].mxu0
          %v3224 = vadd.f32 0.0, %v3223
          %v3225 = vpop.f32.mrb[0].mxu0
          %3226 = vmatprep.mubr.f32.mxu0 0.0
          %3227 = vmatmul.mubr.f32.gmra.mrb[0].mxu0 %v3148
          %v3228 = vpop.f32.mrb[0].mxu0
          %v3229 = vadd.f32 0.0, %v3228
          %v3230 = vpop.f32.mrb[0].mxu0
          %3231 = vmatprep.mubr.f32.mxu0 0.0
          %3232 = vmatmul.mubr.f32.gmra.mrb[0].mxu0 %v3150
          %v3233 = vpop.f32.mrb[0].mxu0
          %v3234 = vadd.f32 0.0, %v3233
          %v3235 = vpop.f32.mrb[0].mxu0
          %3236 = vdwg.mxu0
          %3241 = vrot.lane.b32.xlu0 %v3118, 16
          %v3242 = vpop.permute.xlu0 %3241
          %3243 = vrot.lane.b32.xlu0 %v3123, 16
          %v3244 = vpop.permute.xlu0 %3243
          %3245 = vrot.lane.b32.xlu0 %v3128, 16
          %v3246 = vpop.permute.xlu0 %3245
          %3247 = vrot.lane.b32.xlu0 %v3133, 16
          %v3248 = vpop.permute.xlu0 %3247
          %v3253 = vsel %vm881, %v3118, %v3242
          %v3254 = vsel %vm881, %v3123, %v3244
          %v3255 = vsel %vm881, %v3128, %v3246
          %v3256 = vsel %vm881, %v3133, %v3248
          %3261 = vrot.lane.b32.xlu0 %v3219, 16
          %v3262 = vpop.permute.xlu0 %3261
          %3263 = vrot.lane.b32.xlu0 %v3224, 16
          %v3264 = vpop.permute.xlu0 %3263
          %3265 = vrot.lane.b32.xlu0 %v3229, 16
          %v3266 = vpop.permute.xlu0 %3265
          %3267 = vrot.lane.b32.xlu0 %v3234, 16
          %v3268 = vpop.permute.xlu0 %3267
          %v3273 = vsel %vm881, %v3219, %v3262
          %v3274 = vsel %vm881, %v3224, %v3264
          %v3275 = vsel %vm881, %v3229, %v3266
          %v3276 = vsel %vm881, %v3234, %v3268
          %v3277 = vld [vmem:[%s456 + $0x8] sm:$0xff]
          %v3278 = vld [vmem:[%s456 + $0x18] sm:$0xff]
          %v3279 = vld [vmem:[%s456 + $0x28] sm:$0xff]
          %v3280 = vld [vmem:[%s456 + $0x38] sm:$0xff]
          %3285 = vrot.lane.b32.xlu0 %v3253, 96
          %v3286 = vpop.permute.xlu0 %3285
          %3287 = vrot.lane.b32.xlu0 %v3254, 96
          %v3288 = vpop.permute.xlu0 %3287
          %3289 = vrot.lane.b32.xlu0 %v3255, 96
          %v3290 = vpop.permute.xlu0 %3289
          %3291 = vrot.lane.b32.xlu0 %v3256, 96
          %v3292 = vpop.permute.xlu0 %3291
          %v3297 = vmul.f32 %v3277, %v3286
          %v3298 = vmul.f32 %v3278, %v3288
          %v3299 = vmul.f32 %v3279, %v3290
          %v3300 = vmul.f32 %v3280, %v3292
          %3305 = vrot.lane.b32.xlu0 %v3273, 96
          %v3306 = vpop.permute.xlu0 %3305
          %3307 = vrot.lane.b32.xlu0 %v3274, 96
          %v3308 = vpop.permute.xlu0 %3307
          %3309 = vrot.lane.b32.xlu0 %v3275, 96
          %v3310 = vpop.permute.xlu0 %3309
          %3311 = vrot.lane.b32.xlu0 %v3276, 96
          %v3312 = vpop.permute.xlu0 %3311
          %v3317 = vadd.f32 %v3297, %v3306
          %v3318 = vadd.f32 %v3298, %v3308
          %v3319 = vadd.f32 %v3299, %v3310
          %v3320 = vadd.f32 %v3300, %v3312
          %3321 = vst.msk [vmem:[%s442 + $0x8] sm:$0xff] %vm2192, %v3317
          %3322 = vst.msk [vmem:[%s442 + $0x18] sm:$0xff] %vm2192, %v3318
          %3323 = vst.msk [vmem:[%s442 + $0x28] sm:$0xff] %vm2192, %v3319
          %3324 = vst.msk [vmem:[%s442 + $0x38] sm:$0xff] %vm2192, %v3320
        $region68: #{tpu_custom_call.1} parent=51 // pred_fallthru
          _
        %s3325 = sand.u32 %s268, 1
        %s3326 = scalar_lea.sflag [#allocation7], %s3325
        %s3327 = sand.u32 %s268, 1
        %s3328 = smul.addr %s3327, 64
        %s3329 = scalar_lea.vmem [#allocation6], %s3328
        // Predicated region
        $region69: #{tpu_custom_call.1} parent=51 // pred_check
          %p3330 = pneg %p278
        $region70: #{tpu_custom_call.1} parent=51 // pred_check_branch
          %3332 = sbr.rel (%p3330) target = $region72
        $region71: #{tpu_custom_call.1} parent=51 // pred_region
          %s3333 = smul.u32 %s31, %s30
          %s3334 = smul.u32 4, %s29
          %s3335 = smul.u32 2, %s3333
          %s3337 = ssub.s32 1024, 1024
          %3338 = vsyncadd %s3326, %s3337
          %s3339 = smul.addr %s3334, 2
          %s3340 = sadd.s32 %s3335, %s3339
          %s3341 = smul.addr %s28, 16
          %s3342 = sadd.s32 %s3340, %s3341
          %s3343 = smul.addr %s3342, 128
          %s3344 = scalar_lea.hbm %s8, %s3343
          %s3345 = sshll.u32 %s3329, 4
          %s3346 = int_to_ptr.vmem [resolvable:$true] %s3345
          %3351 = dma.vmem_to_hbm [thread:$0]  %s3346, 1024, %s3344, %s3326, 256, 256, 16
        $region72: #{tpu_custom_call.1} parent=51 // pred_fallthru
          _
      $region52: #{tpu_custom_call.1} parent=5 // pred_fallthru
        _
      %p3352 = scmp.le.s32.totalorder 2, %s17
      // Predicated region
      $region73: #{tpu_custom_call.1} parent=5 // pred_check
        %p3353 = pneg %p3352
      $region74: #{tpu_custom_call.1} parent=5 // pred_check_branch
        %3355 = sbr.rel (%p3353) target = $region76
      $region75: #{tpu_custom_call.1} parent=5 // pred_region
        %s3356 = ssub.s32 %s17, 2
        // Predicated region
        $region77: #{tpu_custom_call.1} parent=75 // pred_check
          %p3357 = pneg %p284
        $region78: #{tpu_custom_call.1} parent=75 // pred_check_branch
          %3359 = sbr.rel (%p3357) target = $region80
        $region79: #{tpu_custom_call.1} parent=75 // pred_region
          %s3360 = sand.u32 %s269, 1
          %s3361 = scalar_lea.sflag [#allocation7], %s3360
          %s3362 = sand.u32 %s269, 1
          %s3363 = smul.addr %s3362, 64
          %s3364 = scalar_lea.vmem [#allocation6], %s3363
          %3365 = dma.done %s3361, 1024
        $region80: #{tpu_custom_call.1} parent=75 // pred_fallthru
          _
      $region76: #{tpu_custom_call.1} parent=5 // pred_fallthru
        _
    $region6: #{tpu_custom_call.1} parent=1 // loop_footer
      %s21 = sadd.s32 1, %s17
    $region7: #{tpu_custom_call.1} parent=1 // loop_footer_branch
      %16 = sbr.rel target = $region3
    $region8: #{tpu_custom_call.1} parent=1 // loop_exit
      _
    %3366 = vsyncpa [#allocation7], 1
    %s3367 = scalar_lea.sflag [#allocation7], 1
    %3368 = vsyncpa %s3367, 1

</llo_original>
